<compile_context>
chip_gen: v7x
topology: tpu7x:2x2x1
jax: 0.10.0
libtpu: 0.0.40
codegen_flags: <defaults>
</compile_context>

<pallas_src>
import jax
import jax.numpy as jnp
from jax import lax
from jax.experimental import pallas as pl
from jax.experimental.pallas import tpu as pltpu


def _legommender_kernel(hist_ids_ref, cand_ids_ref,            # scalar prefetch (SMEM)
                        table_ref, lens_ref, w_ref, b_ref, q_ref,   # inputs (VMEM)
                        out_ref,                                 # packed output (VMEM)
                        clicks_buf, items_buf):                  # scratch (VMEM)
    TB = lens_ref.shape[0]
    L = clicks_buf.shape[0] // TB
    K = items_buf.shape[0] // TB
    D = table_ref.shape[1]
    A = w_ref.shape[1]
    OUT_W = out_ref.shape[1]

    # ---- fused embedding gather (ids in SMEM, table resident in VMEM) -------
    # The gathered rows live only in VMEM scratch: no extra HBM pass.
    base_h = pl.program_id(0) * (TB * L)
    base_c = pl.program_id(0) * (TB * K)

    def gather_hist(r, carry):
        rid = hist_ids_ref[base_h + r]
        clicks_buf[pl.ds(r, 1), :] = table_ref[pl.ds(rid, 1), :]
        return carry

    def gather_cand(r, carry):
        rid = cand_ids_ref[base_c + r]
        items_buf[pl.ds(r, 1), :] = table_ref[pl.ds(rid, 1), :]
        return carry

    lax.fori_loop(0, TB * L, gather_hist, 0)
    lax.fori_loop(0, TB * K, gather_cand, 0)

    clicks = clicks_buf[...]                                   # [TB*L, D] f32
    clicks_bf = clicks.astype(jnp.bfloat16)                    # MXU operand
    items_bf = items_buf[...].astype(jnp.bfloat16).reshape(TB, K, D)

    # ---- user operator: additive attention pooling ---------------------------
    # tall-skinny MXU matmul [TB*L, D] @ [D, A], bf16 in / f32 accumulate
    h = jnp.dot(clicks_bf, w_ref[...], preferred_element_type=jnp.float32)
    h = jnp.tanh(h + b_ref[...])                               # bias + EUP tanh
    h = h.reshape(TB, L, A)                                    # split sublane dim only
    att = jnp.sum(h * q_ref[...][None], axis=-1)               # [TB, L]

    # prefix mask rebuilt from history lengths (replaces the [B, L] mask input)
    lens = lens_ref[...]                                       # [TB, 1] int32
    pos = lax.broadcasted_iota(jnp.int32, (TB, L), 1)
    maskf = (pos < lens).astype(jnp.float32)

    # masked softmax over history length (f32; rows with len==0 degrade to
    # alpha==0 / scores==0 / loss==log K thanks to the denom guard)
    att = jnp.where(maskf > 0, att, -3.0e38)
    att_max = jnp.max(att, axis=-1, keepdims=True)
    p = jnp.exp(att - att_max) * maskf
    denom = jnp.maximum(jnp.sum(p, axis=-1, keepdims=True), 1e-30)
    alpha = p / denom                  # exact divide: this loss may drive gradients

    # user embedding: alpha-weighted pooling routed through the MXU
    user = jnp.einsum('bql,bld->bqd',
                      alpha.astype(jnp.bfloat16)[:, None, :],
                      clicks_bf.reshape(TB, L, D),
                      preferred_element_type=jnp.float32)      # [TB, 1, D] f32

    # ---- predictor: dot product over candidates (MXU) ------------------------
    scores = jnp.einsum('bqd,bkd->bqk',
                        user.astype(jnp.bfloat16), items_bf,
                        preferred_element_type=jnp.float32)[:, 0, :]   # [TB, K]

    # ---- loss: CrossEntropy with labels == 0 (positive is candidate 0) ------
    smax = jnp.max(scores, axis=-1, keepdims=True)
    lse = jnp.log(jnp.sum(jnp.exp(scores - smax), axis=-1, keepdims=True)) + smax
    per_loss = lse - scores[:, 0:1]                            # [TB, 1]

    # ---- lane-dense packed writeback: [scores | loss | 0-pad] ----------------
    out_ref[...] = jnp.zeros((TB, OUT_W), jnp.float32)
    out_ref[:, :K] = scores
    out_ref[:, K:K + 1] = per_loss


def _pick_block_b(B, L, K, D, out_w, vmem_budget_bytes=24 * 1024 * 1024):
    """Largest batch tile whose rough per-step VMEM footprint fits the budget.

    Generation-specific budgets: keep tiles ~40-48 MiB on v7x (64 MiB physical
    per TC), up to ~96 MiB on v5e/v6e (128 MiB physical) once vmem_limit_bytes
    is raised above the scoped defaults (16/32 MiB).
    """
    def footprint(tb):
        scratch = tb * (L + K) * D * 4              # gathered rows (f32 scratch)
        streams = 2 * (tb * 4 + tb * out_w * 4)     # double-buffered lens + output
        interm = tb * L * (D + 8) * 4               # live f32 intermediates (rough)
        return scratch + streams + interm

    valid = [tb for tb in range(1, B + 1)
             if B % tb == 0 and (tb % 8 == 0 or tb == B)]
    fitting = [tb for tb in valid if footprint(tb) <= vmem_budget_bytes]
    return max(fitting) if fitting else min(valid)


def legommender_forward(item_table, W_att, b_att, q_att,
                        history_ids, history_mask, candidate_ids,
                        *, block_b=None, vmem_limit_bytes=48 * 1024 * 1024):
    """Embedding gather + additive-attention user op + dot predictor + CE loss."""
    B, L = history_ids.shape
    _, K = candidate_ids.shape
    N, D = item_table.shape
    A = W_att.shape[1]
    OUT_W = max(128, ((K + 1 + 127) // 128) * 128)   # lane-dense packed output width

    if block_b is None:
        block_b = _pick_block_b(B, L, K, D, OUT_W)
    assert B % block_b == 0 and (block_b % 8 == 0 or block_b == B)

    # TODO(synk): histories are assumed left-aligned (prefix masks, as produced
    # by the data pipeline); arbitrary masks would be shipped as int8 [B, L].
    hist_len = jnp.sum(history_mask > 0, axis=1).astype(jnp.int32).reshape(B, 1)
    hist_ids = history_ids.astype(jnp.int32).reshape(-1)     # flat -> tiny SMEM pad
    cand_ids = candidate_ids.astype(jnp.int32).reshape(-1)
    table_f32 = item_table.astype(jnp.float32)
    w_bf16 = W_att.astype(jnp.bfloat16)

    grid = (B // block_b,)

    cost = pl.CostEstimate(
        flops=2 * B * L * D * A + 2 * B * L * A + 2 * B * L * D + 2 * B * K * D,
        transcendentals=B * L * A + B * L + B * K,
        bytes_accessed=(N * D * 4 + (B * L + B * K) * 4 + B * 4
                        + D * A * 2 + 2 * A * 4 + B * OUT_W * 4),
    )

    packed = pl.pallas_call(
        _legommender_kernel,
        out_shape=jax.ShapeDtypeStruct((B, OUT_W), jnp.float32),
        grid_spec=pltpu.PrefetchScalarGridSpec(
            num_scalar_prefetch=2,                       # history ids, candidate ids
            grid=grid,
            in_specs=[
                pl.BlockSpec((N, D), lambda i, hid, cid: (0, 0)),         # item table (resident)
                pl.BlockSpec((block_b, 1), lambda i, hid, cid: (i, 0)),   # history lengths
                pl.BlockSpec((D, A), lambda i, hid, cid: (0, 0)),         # W (resident)
                pl.BlockSpec((1, A), lambda i, hid, cid: (0, 0)),         # b (resident)
                pl.BlockSpec((1, A), lambda i, hid, cid: (0, 0)),         # q (resident)
            ],
            out_specs=pl.BlockSpec((block_b, OUT_W), lambda i, hid, cid: (i, 0)),
            scratch_shapes=[
                pltpu.VMEM((block_b * L, D), jnp.float32),   # gathered clicks
                pltpu.VMEM((block_b * K, D), jnp.float32),   # gathered candidates
            ],
        ),
        compiler_params=pltpu.CompilerParams(
            # batch tiles are independent; TODO(synk): use pltpu.CORE_PARALLEL
            # on v7x if profiling shows only one TensorCore active.
            dimension_semantics=("parallel",),
            vmem_limit_bytes=vmem_limit_bytes,
        ),
        cost_estimate=cost,
    )(hist_ids, cand_ids, table_f32, hist_len, w_bf16,
      b_att.astype(jnp.float32), q_att.astype(jnp.float32))

    scores = packed[:, :K]
    loss = jnp.mean(packed[:, K])
    return scores, loss


def legommender_reference(item_table, W_att, b_att, q_att,
                          history_ids, history_mask, candidate_ids):
    """Pure-JAX f32 reference of the same forward pass."""
    clicks = jnp.take(item_table, history_ids, axis=0)
    items = jnp.take(item_table, candidate_ids, axis=0)
    mask = history_mask.astype(jnp.float32)
    h = jnp.tanh(jnp.einsum('bld,da->bla', clicks, W_att) + b_att[None])
    att = jnp.sum(h * q_att[None], axis=-1)
    att = jnp.where(mask > 0, att, -3.0e38)
    att_max = jnp.max(att, axis=-1, keepdims=True)
    p = jnp.exp(att - att_max) * mask
    denom = jnp.maximum(jnp.sum(p, axis=-1, keepdims=True), 1e-30)
    alpha = p / denom
    user = jnp.einsum('bl,bld->bd', alpha, clicks)
    scores = jnp.einsum('bd,bkd->bk', user, items)
    loss = jnp.mean(jax.nn.logsumexp(scores, axis=-1) - scores[:, 0])
    return scores, loss


if __name__ == "__main__":
    key = jax.random.PRNGKey(0)
    # K = 1 positive + 4 negatives.
    B, L, K, D, A, NUM_ITEMS = 64, 16, 5, 32, 16, 200

    k1, k2, k3, k4, k5 = jax.random.split(key, 5)
    # deterministic synthetic parameters (no checkpoint loading)
    item_table = jax.random.normal(k1, (NUM_ITEMS, D), jnp.float32) * 0.1
    W_att = jax.random.normal(k2, (D, A), jnp.float32) * 0.1
    b_att = jnp.zeros((1, A), jnp.float32)
    q_att = jax.random.normal(k3, (1, A), jnp.float32) * 0.1

    # synthetic batch: clicked-item history (+prefix mask) and candidate items
    history_ids = jax.random.randint(k4, (B, L), 0, NUM_ITEMS, jnp.int32)
    hist_len = (jnp.arange(B, dtype=jnp.int32) % L) + 1           # always >= 1
    history_mask = (jnp.arange(L)[None, :] < hist_len[:, None]).astype(jnp.float32)
    candidate_ids = jax.random.randint(k5, (B, K), 0, NUM_ITEMS, jnp.int32)

    # block_b=16 exercises a multi-step pipelined grid; block_b=None would let
    # the VMEM-budget picker choose the largest tile.
    scores, loss = legommender_forward(item_table, W_att, b_att, q_att,
                                       history_ids, history_mask, candidate_ids,
                                       block_b=16)
    jax.block_until_ready((scores, loss))

    ref_scores, ref_loss = legommender_reference(item_table, W_att, b_att, q_att,
                                                 history_ids, history_mask,
                                                 candidate_ids)
    assert jnp.allclose(scores, ref_scores, atol=2e-2, rtol=2e-2), (scores, ref_scores)
    assert jnp.allclose(loss, ref_loss, atol=2e-2, rtol=2e-2), (loss, ref_loss)

    # TODO(synk): LM-based item content operators / ReprCacher fast-eval paths
    # and the BCEWithLogits ranking branch have no static-shape Pallas
    # equivalent here and are omitted.
    print("KERNEL_OK")
</pallas_src>

<mosaic_0001>
module attributes {stable_mosaic.version = 11 : i64} {
  func.func @_legommender_kernel(%arg0: i32, %arg1: memref<1024xi32, #tpu.memory_space<smem>>, %arg2: memref<320xi32, #tpu.memory_space<smem>>, %arg3: memref<200x32xf32, #tpu.memory_space<vmem>>, %arg4: memref<16x1xi32, #tpu.memory_space<vmem>>, %arg5: memref<32x16xbf16, #tpu.memory_space<vmem>>, %arg6: memref<1x16xf32, #tpu.memory_space<vmem>>, %arg7: memref<1x16xf32, #tpu.memory_space<vmem>>, %arg8: memref<16x128xf32, #tpu.memory_space<vmem>>, %arg9: memref<256x32xf32, #tpu.memory_space<vmem>>, %arg10: memref<80x32xf32, #tpu.memory_space<vmem>>) attributes {dimension_semantics = [#tpu.dimension_semantics<parallel>], iteration_bounds = array<i64: 4>, scalar_prefetch = 2 : i64, scratch_operands = 2 : i64, tpu.core_type = #tpu.core_type<tc>, window_params = [{pipeline_mode = #tpu.pipeline_mode<synchronous>, transform_indices = @transform_0, window_bounds = array<i64: 200, 32>}, {transform_indices = @transform_1, window_bounds = array<i64: 16, 1>}, {pipeline_mode = #tpu.pipeline_mode<synchronous>, transform_indices = @transform_2, window_bounds = array<i64: 32, 16>}, {pipeline_mode = #tpu.pipeline_mode<synchronous>, transform_indices = @transform_3, window_bounds = array<i64: 1, 16>}, {pipeline_mode = #tpu.pipeline_mode<synchronous>, transform_indices = @transform_4, window_bounds = array<i64: 1, 16>}, {transform_indices = @transform_5, window_bounds = array<i64: 16, 128>}]} {
    %c256_i32 = arith.constant 256 : i32
    %0 = arith.muli %arg0, %c256_i32 : i32
    %c80_i32 = arith.constant 80 : i32
    %1 = arith.muli %arg0, %c80_i32 : i32
    %c0_i32 = arith.constant 0 : i32
    %c256_i32_0 = arith.constant 256 : i32
    %2 = arith.addi %c0_i32, %c256_i32_0 : i32
    %c1_i32 = arith.constant 1 : i32
    scf.for %arg11 = %c0_i32 to %2 step %c1_i32  : i32 {
      %65 = arith.addi %0, %arg11 : i32
      %66 = arith.index_cast %65 : i32 to index
      %67 = memref.load %arg1[%66] : memref<1024xi32, #tpu.memory_space<smem>>
      %68 = arith.index_cast %67 : i32 to index
      %c0_33 = arith.constant 0 : index
      %69 = vector.load %arg3[%68, %c0_33] : memref<200x32xf32, #tpu.memory_space<vmem>>, vector<1x32xf32>
      %70 = arith.index_cast %arg11 : i32 to index
      %c0_34 = arith.constant 0 : index
      %71 = vector.load %arg9[%70, %c0_34] : memref<256x32xf32, #tpu.memory_space<vmem>>, vector<1x32xf32>
      tpu.vector_store %arg9[%70, %c0_34], %69 {strides = array<i32>} : memref<256x32xf32, #tpu.memory_space<vmem>>, vector<1x32xf32>,
    }
    %c256_i32_1 = arith.constant 256 : i32
    %c0_i32_2 = arith.constant 0 : i32
    %c80_i32_3 = arith.constant 80 : i32
    %3 = arith.addi %c0_i32_2, %c80_i32_3 : i32
    %c1_i32_4 = arith.constant 1 : i32
    scf.for %arg11 = %c0_i32_2 to %3 step %c1_i32_4  : i32 {
      %65 = arith.addi %1, %arg11 : i32
      %66 = arith.index_cast %65 : i32 to index
      %67 = memref.load %arg2[%66] : memref<320xi32, #tpu.memory_space<smem>>
      %68 = arith.index_cast %67 : i32 to index
      %c0_33 = arith.constant 0 : index
      %69 = vector.load %arg3[%68, %c0_33] : memref<200x32xf32, #tpu.memory_space<vmem>>, vector<1x32xf32>
      %70 = arith.index_cast %arg11 : i32 to index
      %c0_34 = arith.constant 0 : index
      %71 = vector.load %arg10[%70, %c0_34] : memref<80x32xf32, #tpu.memory_space<vmem>>, vector<1x32xf32>
      tpu.vector_store %arg10[%70, %c0_34], %69 {strides = array<i32>} : memref<80x32xf32, #tpu.memory_space<vmem>>, vector<1x32xf32>,
    }
    %c80_i32_5 = arith.constant 80 : i32
    %c0 = arith.constant 0 : index
    %c0_6 = arith.constant 0 : index
    %4 = vector.load %arg9[%c0, %c0_6] : memref<256x32xf32, #tpu.memory_space<vmem>>, vector<256x32xf32>
    %5 = arith.truncf %4 : vector<256x32xf32> to vector<256x32xbf16>
    %c0_7 = arith.constant 0 : index
    %c0_8 = arith.constant 0 : index
    %6 = vector.load %arg10[%c0_7, %c0_8] : memref<80x32xf32, #tpu.memory_space<vmem>>, vector<80x32xf32>
    %7 = arith.truncf %6 : vector<80x32xf32> to vector<80x32xbf16>
    %8 = vector.shape_cast %7 : vector<80x32xbf16> to vector<16x5x32xbf16>
    %c0_9 = arith.constant 0 : index
    %c0_10 = arith.constant 0 : index
    %9 = vector.load %arg5[%c0_9, %c0_10] : memref<32x16xbf16, #tpu.memory_space<vmem>>, vector<32x16xbf16>
    %cst = arith.constant dense<0.000000e+00> : vector<256x16xf32>
    %10 = tpu.matmul %5, %9, %cst {dimension_numbers = #tpu.dot_dimension_numbers<[1], [0], [0], [1], [0, 0, 1, 1], [], []>} : vector<256x32xbf16>, vector<32x16xbf16>, vector<256x16xf32> -> vector<256x16xf32>
    %c0_11 = arith.constant 0 : index
    %c0_12 = arith.constant 0 : index
    %11 = vector.load %arg6[%c0_11, %c0_12] : memref<1x16xf32, #tpu.memory_space<vmem>>, vector<1x16xf32>
    %12 = vector.broadcast %11 : vector<1x16xf32> to vector<256x16xf32>
    %13 = arith.addf %10, %12 : vector<256x16xf32>
    %14 = math.tanh %13 : vector<256x16xf32>
    %15 = vector.shape_cast %14 : vector<256x16xf32> to vector<16x16x16xf32>
    %c0_13 = arith.constant 0 : index
    %c0_14 = arith.constant 0 : index
    %16 = vector.load %arg7[%c0_13, %c0_14] : memref<1x16xf32, #tpu.memory_space<vmem>>, vector<1x16xf32>
    %17 = vector.shape_cast %16 : vector<1x16xf32> to vector<1x1x16xf32>
    %18 = vector.broadcast %17 : vector<1x1x16xf32> to vector<16x16x16xf32>
    %19 = arith.mulf %15, %18 : vector<16x16x16xf32>
    %cst_15 = arith.constant dense<0.000000e+00> : vector<16x16xf32>
    %20 = vector.multi_reduction <add>, %19, %cst_15 [2] : vector<16x16x16xf32> to vector<16x16xf32>
    %c0_16 = arith.constant 0 : index
    %c0_17 = arith.constant 0 : index
    %21 = vector.load %arg4[%c0_16, %c0_17] : memref<16x1xi32, #tpu.memory_space<vmem>>, vector<16x1xi32>
    %22 = tpu.iota {dimensions = array<i32: 1>} : vector<16x16xi32>
    %23 = vector.broadcast %21 : vector<16x1xi32> to vector<16x16xi32>
    %24 = arith.cmpi slt, %22, %23 : vector<16x16xi32>
    %25 = arith.extui %24 : vector<16x16xi1> to vector<16x16xi32>
    %26 = arith.sitofp %25 : vector<16x16xi32> to vector<16x16xf32>
    %cst_18 = arith.constant 0.000000e+00 : f32
    %27 = vector.broadcast %cst_18 : f32 to vector<16x16xf32>
    %28 = arith.cmpf ogt, %26, %27 : vector<16x16xf32>
    %cst_19 = arith.constant -3.000000e+38 : f32
    %29 = vector.broadcast %cst_19 : f32 to vector<16x16xf32>
    %30 = arith.select %28, %20, %29 : vector<16x16xi1>, vector<16x16xf32>
    %cst_20 = arith.constant dense<0xFF800000> : vector<16xf32>
    %31 = vector.multi_reduction <maximumf>, %30, %cst_20 [1] : vector<16x16xf32> to vector<16xf32>
    %32 = vector.shape_cast %31 : vector<16xf32> to vector<16x1xf32>
    %33 = vector.broadcast %32 : vector<16x1xf32> to vector<16x16xf32>
    %34 = arith.subf %30, %33 : vector<16x16xf32>
    %35 = math.exp %34 : vector<16x16xf32>
    %36 = arith.mulf %35, %26 : vector<16x16xf32>
    %cst_21 = arith.constant dense<0.000000e+00> : vector<16xf32>
    %37 = vector.multi_reduction <add>, %36, %cst_21 [1] : vector<16x16xf32> to vector<16xf32>
    %38 = vector.shape_cast %37 : vector<16xf32> to vector<16x1xf32>
    %cst_22 = arith.constant 1.000000e-30 : f32
    %39 = vector.broadcast %cst_22 : f32 to vector<16x1xf32>
    %40 = arith.maximumf %38, %39 : vector<16x1xf32>
    %41 = vector.broadcast %40 : vector<16x1xf32> to vector<16x16xf32>
    %42 = arith.divf %36, %41 : vector<16x16xf32>
    %43 = arith.truncf %42 : vector<16x16xf32> to vector<16x16xbf16>
    %44 = vector.shape_cast %43 : vector<16x16xbf16> to vector<16x1x16xbf16>
    %45 = vector.shape_cast %5 : vector<256x32xbf16> to vector<16x16x32xbf16>
    "tpu.trace_start"() <{level = 10 : i32, message = "bql,bld->bqd"}> : () -> ()
    %cst_23 = arith.constant dense<0.000000e+00> : vector<16x1x32xf32>
    %46 = tpu.matmul %44, %45, %cst_23 {dimension_numbers = #tpu.dot_dimension_numbers<[2], [1], [1], [2], [0, 0, 0, 1, 1, 2], [0], [0]>} : vector<16x1x16xbf16>, vector<16x16x32xbf16>, vector<16x1x32xf32> -> vector<16x1x32xf32>
    "tpu.trace_stop"() : () -> ()
    %47 = arith.truncf %46 : vector<16x1x32xf32> to vector<16x1x32xbf16>
    "tpu.trace_start"() <{level = 10 : i32, message = "bqd,bkd->bqk"}> : () -> ()
    %cst_24 = arith.constant dense<0.000000e+00> : vector<16x1x5xf32>
    %48 = tpu.matmul %47, %8, %cst_24 {dimension_numbers = #tpu.dot_dimension_numbers<[2], [2], [1], [1], [0, 0, 0, 1, 1, 1], [0], [0]>} : vector<16x1x32xbf16>, vector<16x5x32xbf16>, vector<16x1x5xf32> -> vector<16x1x5xf32>
    "tpu.trace_stop"() : () -> ()
    %49 = vector.shape_cast %48 : vector<16x1x5xf32> to vector<16x5xf32>
    %cst_25 = arith.constant dense<0xFF800000> : vector<16xf32>
    %50 = vector.multi_reduction <maximumf>, %49, %cst_25 [1] : vector<16x5xf32> to vector<16xf32>
    %51 = vector.shape_cast %50 : vector<16xf32> to vector<16x1xf32>
    %52 = vector.broadcast %51 : vector<16x1xf32> to vector<16x5xf32>
    %53 = arith.subf %49, %52 : vector<16x5xf32>
    %54 = math.exp %53 : vector<16x5xf32>
    %cst_26 = arith.constant dense<0.000000e+00> : vector<16xf32>
    %55 = vector.multi_reduction <add>, %54, %cst_26 [1] : vector<16x5xf32> to vector<16xf32>
    %56 = vector.shape_cast %55 : vector<16xf32> to vector<16x1xf32>
    %57 = math.log %56 : vector<16x1xf32>
    %58 = arith.addf %57, %51 : vector<16x1xf32>
    %59 = vector.extract_strided_slice %49 {offsets = [0, 0], sizes = [16, 1], strides = [1, 1]} : vector<16x5xf32> to vector<16x1xf32>
    %60 = arith.subf %58, %59 : vector<16x1xf32>
    %cst_27 = arith.constant 0.000000e+00 : f32
    %61 = vector.broadcast %cst_27 : f32 to vector<16x128xf32>
    %c0_28 = arith.constant 0 : index
    %c0_29 = arith.constant 0 : index
    %62 = vector.load %arg8[%c0_28, %c0_29] : memref<16x128xf32, #tpu.memory_space<vmem>>, vector<16x128xf32>
    tpu.vector_store %arg8[%c0_28, %c0_29], %61 {strides = array<i32>} : memref<16x128xf32, #tpu.memory_space<vmem>>, vector<16x128xf32>,
    %c0_30 = arith.constant 0 : index
    %c0_31 = arith.constant 0 : index
    %63 = vector.load %arg8[%c0_30, %c0_31] : memref<16x128xf32, #tpu.memory_space<vmem>>, vector<16x5xf32>
    tpu.vector_store %arg8[%c0_30, %c0_31], %49 {strides = array<i32>} : memref<16x128xf32, #tpu.memory_space<vmem>>, vector<16x5xf32>,
    %c0_32 = arith.constant 0 : index
    %c5 = arith.constant 5 : index
    %64 = vector.load %arg8[%c0_32, %c5] : memref<16x128xf32, #tpu.memory_space<vmem>>, vector<16x1xf32>
    tpu.vector_store %arg8[%c0_32, %c5], %60 {strides = array<i32>} : memref<16x128xf32, #tpu.memory_space<vmem>>, vector<16x1xf32>,
    return
  }
  func.func @transform_0(%arg0: i32, %arg1: memref<1024xi32, #tpu.memory_space<smem>>, %arg2: memref<320xi32, #tpu.memory_space<smem>>) -> (i32, i32) {
    %c0_i32 = arith.constant 0 : i32
    %c0_i32_0 = arith.constant 0 : i32
    %c0_i32_1 = arith.constant 0 : i32
    return %c0_i32, %c0_i32_0 : i32, i32
  }
  func.func @transform_1(%arg0: i32, %arg1: memref<1024xi32, #tpu.memory_space<smem>>, %arg2: memref<320xi32, #tpu.memory_space<smem>>) -> (i32, i32) {
    %c0_i32 = arith.constant 0 : i32
    %c0_i32_0 = arith.constant 0 : i32
    return %arg0, %c0_i32 : i32, i32
  }
  func.func @transform_2(%arg0: i32, %arg1: memref<1024xi32, #tpu.memory_space<smem>>, %arg2: memref<320xi32, #tpu.memory_space<smem>>) -> (i32, i32) {
    %c0_i32 = arith.constant 0 : i32
    %c0_i32_0 = arith.constant 0 : i32
    %c0_i32_1 = arith.constant 0 : i32
    return %c0_i32, %c0_i32_0 : i32, i32
  }
  func.func @transform_3(%arg0: i32, %arg1: memref<1024xi32, #tpu.memory_space<smem>>, %arg2: memref<320xi32, #tpu.memory_space<smem>>) -> (i32, i32) {
    %c0_i32 = arith.constant 0 : i32
    %c0_i32_0 = arith.constant 0 : i32
    %c0_i32_1 = arith.constant 0 : i32
    return %c0_i32, %c0_i32_0 : i32, i32
  }
  func.func @transform_4(%arg0: i32, %arg1: memref<1024xi32, #tpu.memory_space<smem>>, %arg2: memref<320xi32, #tpu.memory_space<smem>>) -> (i32, i32) {
    %c0_i32 = arith.constant 0 : i32
    %c0_i32_0 = arith.constant 0 : i32
    %c0_i32_1 = arith.constant 0 : i32
    return %c0_i32, %c0_i32_0 : i32, i32
  }
  func.func @transform_5(%arg0: i32, %arg1: memref<1024xi32, #tpu.memory_space<smem>>, %arg2: memref<320xi32, #tpu.memory_space<smem>>) -> (i32, i32) {
    %c0_i32 = arith.constant 0 : i32
    %c0_i32_0 = arith.constant 0 : i32
    return %arg0, %c0_i32 : i32, i32
  }
}

</mosaic_0001>

<llo_original>
// kernel: tpu_custom_call.1
$region0: #{tpu_custom_call.1}
  #allocation0 [shape = 'u32[]', space=smem, size = 0x4, offset = 0x4, fixed_abs, tag = 'smem constant byte address 0x4 - core index']
  #allocation1 [shape = 'u32[144,128]{1,0:T(1,128)}', space=vmem, size = 0x12000, scoped, tag = 'internal scratch']
  #allocation2 [shape = 'f32[256,32]{1,0:T(8,128)}', space=vmem, size = 0x20000, scoped, tag = 'scratch operand']
  #allocation3 [shape = 'f32[80,32]{1,0:T(8,128)}', space=vmem, size = 0xa000, scoped, tag = 'scratch operand']
  #allocation4 [shape = 's32[1]{0}', space=sflag, size = 0x4, scoped, tag = 'scoped memory for tpu_custom_call.1']
  #allocation5 [shape = 'u8[4096]{0}', space=smem, size = 0x1000, scoped, tag = 'prefetched SMEM operand 0']
  #allocation6 [shape = 'u8[1536]{0}', space=smem, size = 0x600, scoped, tag = 'prefetched SMEM operand 1']
  %s0 = inlined_call_operand.vmem [shape: s32[1024], index: 0, kind: input, shape index: {}]
  %s1 = inlined_call_operand.vmem [shape: s32[320], index: 1, kind: input, shape index: {}]
  %s2 = inlined_call_operand.vmem [shape: f32[200,32], index: 2, kind: input, shape index: {}]
  %s3 = inlined_call_operand.vmem [shape: s32[64,1], index: 3, kind: input, shape index: {}]
  %s4 = inlined_call_operand.vmem [shape: bf16[32,16], index: 4, kind: input, shape index: {}]
  %s5 = inlined_call_operand.vmem [shape: f32[1,16], index: 5, kind: input, shape index: {}]
  %s6 = inlined_call_operand.vmem [shape: f32[1,16], index: 6, kind: input, shape index: {}]
  %s7 = inlined_call_operand.hbm [shape: f32[64,128], index: 7, kind: output, shape index: {}]
  %s8 = sld [smem:[#allocation0]]
  $region67: #{tpu_custom_call.1} parent=0
    _
  %s10 = ssub.s32 1, %s8
  %s11 = scalar_select 0, %s10, %s8
  %s12 = sshll.u32 %s0, 4
  %s13 = int_to_ptr.vmem [resolvable:$true] %s12
  %15 = dma.vmem_to_smem %s13, 128, [#allocation5], [#allocation4]
  %s16 = sshll.u32 %s1, 4
  %s17 = int_to_ptr.vmem [resolvable:$true] %s16
  %19 = dma.vmem_to_smem %s17, 48, [#allocation6], [#allocation4]
  %20 = dma.done [#allocation4], 176
  %21 = sfence
  $region1: #{tpu_custom_call.1} parent=0
    #allocation7 [shape = 'u8[16384]{0}', space=vmem, size = 0x4000, scoped, tag = 'output window, operand 0']
    #allocation8 [shape = 's32[2]{0}', space=sflag, size = 0x8, scoped, tag = 'scoped memory for tpu_custom_call.1']
    %22 = vsyncpa [#allocation8], 0
    %s23 = scalar_lea.sflag [#allocation8], 1
    %24 = vsyncpa %s23, 0
    loop: start=0, step=1, limit=6
    $region2: #{tpu_custom_call.1} parent=1 // loop_pre_header
      _
    $region3: #{tpu_custom_call.1} parent=1 // loop_header
      %s26 = sphi 0, %s30
      %p27 = scmp.ge.s32.totalorder %s26, 6
      %s34 = sphi 0, %s34
      %s36 = sphi 0, %s34
      %s37 = sphi 0, %s36
      %s51 = sphi 0, %s37
      %s57 = sphi 0, %s59
      %s60 = sphi 0, %s57
      %s61 = sphi 0, %s60
      %s77 = sphi 0, %s61
      %s81 = sphi 0, %s81
      %s83 = sphi 0, %s81
      %s84 = sphi 0, %s83
      %s98 = sphi 0, %s84
      %s102 = sphi 0, %s102
      %s104 = sphi 0, %s102
      %s105 = sphi 0, %s104
      %s119 = sphi 0, %s105
      %s123 = sphi 0, %s123
      %s125 = sphi 0, %s123
      %s126 = sphi 0, %s125
      %s140 = sphi 0, %s126
      %s146 = sphi 0, %s148
      %s149 = sphi 0, %s146
      %s150 = sphi 0, %s149
      %s166 = sphi 0, %s150
    $region4: #{tpu_custom_call.1} parent=1 // loop_header_branch
      %29 = sbr.rel (%p27) target = $region8
    $region5: #{tpu_custom_call.1} parent=1 // loop_body
      %s31 = ssub.s32 %s26, 1
      %s32 = ssub.s32 %s26, 2
      %s33 = sadd.s32 %s26, 1
      %s35 = sadd.s32 %s34, 1
      %p38 = scmp.eq.s32.totalorder %s26, 3
      %p39 = scmp.ne.s32.totalorder %s34, %s36
      %p40 = scmp.eq.s32.totalorder %s26, 0
      %p41 = por %p39, %p40
      %p42 = scmp.ne.s32.totalorder %s34, %s36
      %p43 = scmp.eq.s32.totalorder %s31, 3
      %p44 = por %p42, %p43
      %p45 = scmp.ne.s32.totalorder %s36, %s37
      %p46 = scmp.eq.s32.totalorder %s31, 0
      %p47 = por %p45, %p46
      %p48 = scmp.ne.s32.totalorder %s36, %s37
      %p49 = scmp.eq.s32.totalorder %s32, 3
      %p50 = por %p48, %p49
      %p52 = scmp.ne.s32.totalorder %s37, %s51
      %p53 = scmp.eq.s32.totalorder %s32, 0
      %p54 = por %p52, %p53
      %s55 = ssub.s32 %s26, %s33
      %p56 = scmp.eq.s32.totalorder %s55, 0
      %s58 = sadd.s32 %s57, 1
      %s59 = scalar_select %p56, %s57, %s58
      %p62 = pneg %p56
      %p63 = scmp.eq.s32.totalorder %s26, 3
      %p64 = por %p62, %p63
      %p65 = scmp.ne.s32.totalorder %s57, %s60
      %p66 = scmp.eq.s32.totalorder %s26, 0
      %p67 = por %p65, %p66
      %p68 = scmp.ne.s32.totalorder %s57, %s60
      %p69 = scmp.eq.s32.totalorder %s31, 3
      %p70 = por %p68, %p69
      %p71 = scmp.ne.s32.totalorder %s60, %s61
      %p72 = scmp.eq.s32.totalorder %s31, 0
      %p73 = por %p71, %p72
      %p74 = scmp.ne.s32.totalorder %s60, %s61
      %p75 = scmp.eq.s32.totalorder %s32, 3
      %p76 = por %p74, %p75
      %p78 = scmp.ne.s32.totalorder %s61, %s77
      %p79 = scmp.eq.s32.totalorder %s32, 0
      %p80 = por %p78, %p79
      %s82 = sadd.s32 %s81, 1
      %p85 = scmp.eq.s32.totalorder %s26, 3
      %p86 = scmp.ne.s32.totalorder %s81, %s83
      %p87 = scmp.eq.s32.totalorder %s26, 0
      %p88 = por %p86, %p87
      %p89 = scmp.ne.s32.totalorder %s81, %s83
      %p90 = scmp.eq.s32.totalorder %s31, 3
      %p91 = por %p89, %p90
      %p92 = scmp.ne.s32.totalorder %s83, %s84
      %p93 = scmp.eq.s32.totalorder %s31, 0
      %p94 = por %p92, %p93
      %p95 = scmp.ne.s32.totalorder %s83, %s84
      %p96 = scmp.eq.s32.totalorder %s32, 3
      %p97 = por %p95, %p96
      %p99 = scmp.ne.s32.totalorder %s84, %s98
      %p100 = scmp.eq.s32.totalorder %s32, 0
      %p101 = por %p99, %p100
      %s103 = sadd.s32 %s102, 1
      %p106 = scmp.eq.s32.totalorder %s26, 3
      %p107 = scmp.ne.s32.totalorder %s102, %s104
      %p108 = scmp.eq.s32.totalorder %s26, 0
      %p109 = por %p107, %p108
      %p110 = scmp.ne.s32.totalorder %s102, %s104
      %p111 = scmp.eq.s32.totalorder %s31, 3
      %p112 = por %p110, %p111
      %p113 = scmp.ne.s32.totalorder %s104, %s105
      %p114 = scmp.eq.s32.totalorder %s31, 0
      %p115 = por %p113, %p114
      %p116 = scmp.ne.s32.totalorder %s104, %s105
      %p117 = scmp.eq.s32.totalorder %s32, 3
      %p118 = por %p116, %p117
      %p120 = scmp.ne.s32.totalorder %s105, %s119
      %p121 = scmp.eq.s32.totalorder %s32, 0
      %p122 = por %p120, %p121
      %s124 = sadd.s32 %s123, 1
      %p127 = scmp.eq.s32.totalorder %s26, 3
      %p128 = scmp.ne.s32.totalorder %s123, %s125
      %p129 = scmp.eq.s32.totalorder %s26, 0
      %p130 = por %p128, %p129
      %p131 = scmp.ne.s32.totalorder %s123, %s125
      %p132 = scmp.eq.s32.totalorder %s31, 3
      %p133 = por %p131, %p132
      %p134 = scmp.ne.s32.totalorder %s125, %s126
      %p135 = scmp.eq.s32.totalorder %s31, 0
      %p136 = por %p134, %p135
      %p137 = scmp.ne.s32.totalorder %s125, %s126
      %p138 = scmp.eq.s32.totalorder %s32, 3
      %p139 = por %p137, %p138
      %p141 = scmp.ne.s32.totalorder %s126, %s140
      %p142 = scmp.eq.s32.totalorder %s32, 0
      %p143 = por %p141, %p142
      %s144 = ssub.s32 %s26, %s33
      %p145 = scmp.eq.s32.totalorder %s144, 0
      %s147 = sadd.s32 %s146, 1
      %s148 = scalar_select %p145, %s146, %s147
      %p151 = pneg %p145
      %p152 = scmp.eq.s32.totalorder %s26, 3
      %p153 = por %p151, %p152
      %p154 = scmp.ne.s32.totalorder %s146, %s149
      %p155 = scmp.eq.s32.totalorder %s26, 0
      %p156 = por %p154, %p155
      %p157 = scmp.ne.s32.totalorder %s146, %s149
      %p158 = scmp.eq.s32.totalorder %s31, 3
      %p159 = por %p157, %p158
      %p160 = scmp.ne.s32.totalorder %s149, %s150
      %p161 = scmp.eq.s32.totalorder %s31, 0
      %p162 = por %p160, %p161
      %p163 = scmp.ne.s32.totalorder %s149, %s150
      %p164 = scmp.eq.s32.totalorder %s32, 3
      %p165 = por %p163, %p164
      %p167 = scmp.ne.s32.totalorder %s150, %s166
      %p168 = scmp.eq.s32.totalorder %s32, 0
      %p169 = por %p167, %p168
      %p170 = scmp.le.s32.totalorder 1, %s26
      %p171 = scmp.lt.s32.totalorder %s26, 5
      %p172 = pnand %p170, %p171
      %p173 = pneg %p172
      // Predicated region
      $region9: #{tpu_custom_call.1} parent=5 // pred_check
        _
      $region10: #{tpu_custom_call.1} parent=5 // pred_check_branch
        %175 = sbr.rel (%p172) target = $region12
      $region11: #{tpu_custom_call.1} parent=5 // pred_region
        %s176 = ssub.s32 %s26, 1
        // Predicated region
        $region13: #{tpu_custom_call.1} parent=11 // pred_check
          %p177 = pneg %p47
        $region14: #{tpu_custom_call.1} parent=11 // pred_check_branch
          %179 = sbr.rel (%p177) target = $region16
        $region15: #{tpu_custom_call.1} parent=11 // pred_region
          _
        $region16: #{tpu_custom_call.1} parent=11 // pred_fallthru
          _
        // Predicated region
        $region17: #{tpu_custom_call.1} parent=11 // pred_check
          %p180 = pneg %p94
        $region18: #{tpu_custom_call.1} parent=11 // pred_check_branch
          %182 = sbr.rel (%p180) target = $region20
        $region19: #{tpu_custom_call.1} parent=11 // pred_region
          _
        $region20: #{tpu_custom_call.1} parent=11 // pred_fallthru
          _
        // Predicated region
        $region21: #{tpu_custom_call.1} parent=11 // pred_check
          %p183 = pneg %p115
        $region22: #{tpu_custom_call.1} parent=11 // pred_check_branch
          %185 = sbr.rel (%p183) target = $region24
        $region23: #{tpu_custom_call.1} parent=11 // pred_region
          _
        $region24: #{tpu_custom_call.1} parent=11 // pred_fallthru
          _
        // Predicated region
        $region25: #{tpu_custom_call.1} parent=11 // pred_check
          %p186 = pneg %p136
        $region26: #{tpu_custom_call.1} parent=11 // pred_check_branch
          %188 = sbr.rel (%p186) target = $region28
        $region27: #{tpu_custom_call.1} parent=11 // pred_region
          _
        $region28: #{tpu_custom_call.1} parent=11 // pred_fallthru
          _
      $region12: #{tpu_custom_call.1} parent=5 // pred_fallthru
        _
      %p189 = scmp.lt.s32.totalorder %s26, 4
      // Predicated region
      $region29: #{tpu_custom_call.1} parent=5 // pred_check
        %p190 = pneg %p189
      $region30: #{tpu_custom_call.1} parent=5 // pred_check_branch
        %192 = sbr.rel (%p190) target = $region32
      $region31: #{tpu_custom_call.1} parent=5 // pred_region
        // Predicated region
        $region33: #{tpu_custom_call.1} parent=31 // pred_check
          %p193 = pneg %p67
        $region34: #{tpu_custom_call.1} parent=31 // pred_check_branch
          %195 = sbr.rel (%p193) target = $region36
        $region35: #{tpu_custom_call.1} parent=31 // pred_region
          %s196 = smul.u32 2, %s26
          %p197 = scmp.lt.s32.totalorder %s196, 7
          %s198 = scalar_select %p197, %s196, 7
          %s199 = smul.addr %s198, 8
          %s200 = scalar_lea.vmem %s3, %s199
          %s201 = smul.u32 2, %s26
        $region36: #{tpu_custom_call.1} parent=31 // pred_fallthru
          _
      $region32: #{tpu_custom_call.1} parent=5 // pred_fallthru
        _
      %p202 = scmp.le.s32.totalorder 1, %s26
      %p203 = scmp.lt.s32.totalorder %s26, 5
      %p204 = pnand %p202, %p203
      %p205 = pneg %p204
      // Predicated region
      $region37: #{tpu_custom_call.1} parent=5 // pred_check
        _
      $region38: #{tpu_custom_call.1} parent=5 // pred_check_branch
        %207 = sbr.rel (%p204) target = $region40
      $region39: #{tpu_custom_call.1} parent=5 // pred_region
        %s208 = ssub.s32 %s26, 1
        %p209 = pneg %p47
        %p210 = pneg %p44
        %s211 = smul.u32 2, %s31
        %p212 = scmp.lt.s32.totalorder %s211, 7
        %s213 = scalar_select %p212, %s211, 7
        %s214 = smul.addr %s213, 8
        %s215 = scalar_lea.vmem %s3, %s214
        %p216 = pneg %p73
        %p217 = pneg %p70
        %p218 = pneg %p94
        %p219 = pneg %p91
        %p220 = pneg %p115
        %p221 = pneg %p112
        %p222 = pneg %p136
        %p223 = pneg %p133
        %p224 = pneg %p162
        %p225 = pneg %p159
        %s226 = sand.u32 %s149, 1
        %s227 = scalar_lea.sflag [#allocation8], %s226
        %s228 = sand.u32 %s149, 1
        %s229 = smul.addr %s228, 16
        %s230 = scalar_lea.vmem [#allocation7], %s229
        %s231 = smul.u32 2, %s31
        %p232 = scmp.lt.s32.totalorder %s231, 7
        %s233 = scalar_select %p232, %s231, 7
        %s234 = smul.addr %s233, 8
        %s235 = scalar_lea.vmem %s3, %s234
        %s236 = smul.u32 2, %s31
        %s237 = smul.u32 2, %s31
        %s239 = smul.u32 %s31, 256
        %s240 = smul.u32 %s31, 80
        loop: start=0, step=1, limit=256
        $region41: #{tpu_custom_call.1} parent=39 // loop_pre_header
          _
        $region42: #{tpu_custom_call.1} parent=39 // loop_header
          %s242 = sphi 0, %s246
          %p243 = scmp.ge.s32.totalorder %s242, 256
        $region43: #{tpu_custom_call.1} parent=39 // loop_header_branch
          %245 = sbr.rel (%p243) target = $region47
        $region44: #{tpu_custom_call.1} parent=39 // loop_body
          %s247 = sadd.s32 %s239, %s242
          %s248 = sld [smem:[#allocation5 + %s247]]
          %s249 = scalar_lea.vmem %s2, %s248
          %v250 = vld [vmem:[%s249] sm:$0x1]
          %s251 = scalar_lea.vmem [#allocation2], %s242
          %vm252 = vcmask 253952
          %253 = vst.msk [vmem:[%s251] sm:$0x1] %vm252, %v250
        $region45: #{tpu_custom_call.1} parent=39 // loop_footer
          %s246 = sadd.s32 1, %s242
        $region46: #{tpu_custom_call.1} parent=39 // loop_footer_branch
          %241 = sbr.rel target = $region42
        $region47: #{tpu_custom_call.1} parent=39 // loop_exit
          _
        loop: start=0, step=1, limit=80
        $region48: #{tpu_custom_call.1} parent=39 // loop_pre_header
          _
        $region49: #{tpu_custom_call.1} parent=39 // loop_header
          %s255 = sphi 0, %s259
          %p256 = scmp.ge.s32.totalorder %s255, 80
        $region50: #{tpu_custom_call.1} parent=39 // loop_header_branch
          %258 = sbr.rel (%p256) target = $region54
        $region51: #{tpu_custom_call.1} parent=39 // loop_body
          %s260 = sadd.s32 %s240, %s255
          %s261 = sld [smem:[#allocation6 + %s260]]
          %s262 = scalar_lea.vmem %s2, %s261
          %v263 = vld [vmem:[%s262] sm:$0x1]
          %s264 = scalar_lea.vmem [#allocation3], %s255
          %vm265 = vcmask 253952
          %266 = vst.msk [vmem:[%s264] sm:$0x1] %vm265, %v263
        $region52: #{tpu_custom_call.1} parent=39 // loop_footer
          %s259 = sadd.s32 1, %s255
        $region53: #{tpu_custom_call.1} parent=39 // loop_footer_branch
          %254 = sbr.rel target = $region49
        $region54: #{tpu_custom_call.1} parent=39 // loop_exit
          _
        %v267 = vld [vmem:[#allocation2] sm:$0xff]
        %v268 = vld [vmem:[#allocation2 + $0x8] sm:$0xff]
        %v269 = vld [vmem:[#allocation2 + $0x10] sm:$0xff]
        %v270 = vld [vmem:[#allocation2 + $0x18] sm:$0xff]
        %v271 = vld [vmem:[#allocation2 + $0x20] sm:$0xff]
        %v272 = vld [vmem:[#allocation2 + $0x28] sm:$0xff]
        %v273 = vld [vmem:[#allocation2 + $0x30] sm:$0xff]
        %v274 = vld [vmem:[#allocation2 + $0x38] sm:$0xff]
        %v275 = vld [vmem:[#allocation2 + $0x40] sm:$0xff]
        %v276 = vld [vmem:[#allocation2 + $0x48] sm:$0xff]
        %v277 = vld [vmem:[#allocation2 + $0x50] sm:$0xff]
        %v278 = vld [vmem:[#allocation2 + $0x58] sm:$0xff]
        %v279 = vld [vmem:[#allocation2 + $0x60] sm:$0xff]
        %v280 = vld [vmem:[#allocation2 + $0x68] sm:$0xff]
        %v281 = vld [vmem:[#allocation2 + $0x70] sm:$0xff]
        %v282 = vld [vmem:[#allocation2 + $0x78] sm:$0xff]
        %v283 = vld [vmem:[#allocation2 + $0x80] sm:$0xff]
        %v284 = vld [vmem:[#allocation2 + $0x88] sm:$0xff]
        %v285 = vld [vmem:[#allocation2 + $0x90] sm:$0xff]
        %v286 = vld [vmem:[#allocation2 + $0x98] sm:$0xff]
        %v287 = vld [vmem:[#allocation2 + $0xa0] sm:$0xff]
        %v288 = vld [vmem:[#allocation2 + $0xa8] sm:$0xff]
        %v289 = vld [vmem:[#allocation2 + $0xb0] sm:$0xff]
        %v290 = vld [vmem:[#allocation2 + $0xb8] sm:$0xff]
        %v291 = vld [vmem:[#allocation2 + $0xc0] sm:$0xff]
        %v292 = vld [vmem:[#allocation2 + $0xc8] sm:$0xff]
        %v293 = vld [vmem:[#allocation2 + $0xd0] sm:$0xff]
        %v294 = vld [vmem:[#allocation2 + $0xd8] sm:$0xff]
        %v295 = vld [vmem:[#allocation2 + $0xe0] sm:$0xff]
        %v296 = vld [vmem:[#allocation2 + $0xe8] sm:$0xff]
        %v297 = vld [vmem:[#allocation2 + $0xf0] sm:$0xff]
        %v298 = vld [vmem:[#allocation2 + $0xf8] sm:$0xff]
        %v299 = vpack.c.bf16 %v268, %v267
        %v300 = vpack.c.bf16 %v270, %v269
        %v301 = vpack.c.bf16 %v272, %v271
        %v302 = vpack.c.bf16 %v274, %v273
        %v303 = vpack.c.bf16 %v276, %v275
        %v304 = vpack.c.bf16 %v278, %v277
        %v305 = vpack.c.bf16 %v280, %v279
        %v306 = vpack.c.bf16 %v282, %v281
        %v307 = vpack.c.bf16 %v284, %v283
        %v308 = vpack.c.bf16 %v286, %v285
        %v309 = vpack.c.bf16 %v288, %v287
        %v310 = vpack.c.bf16 %v290, %v289
        %v311 = vpack.c.bf16 %v292, %v291
        %v312 = vpack.c.bf16 %v294, %v293
        %v313 = vpack.c.bf16 %v296, %v295
        %v314 = vpack.c.bf16 %v298, %v297
        %v315 = vld [vmem:[#allocation3] sm:$0xff]
        %v316 = vld [vmem:[#allocation3 + $0x8] sm:$0xff]
        %v317 = vld [vmem:[#allocation3 + $0x10] sm:$0xff]
        %v318 = vld [vmem:[#allocation3 + $0x18] sm:$0xff]
        %v319 = vld [vmem:[#allocation3 + $0x20] sm:$0xff]
        %v320 = vld [vmem:[#allocation3 + $0x28] sm:$0xff]
        %v321 = vld [vmem:[#allocation3 + $0x30] sm:$0xff]
        %v322 = vld [vmem:[#allocation3 + $0x38] sm:$0xff]
        %v323 = vld [vmem:[#allocation3 + $0x40] sm:$0xff]
        %v324 = vld [vmem:[#allocation3 + $0x48] sm:$0xff]
        %v325 = vpack.c.bf16 %v316, %v315
        %v326 = vpack.c.bf16 %v318, %v317
        %v327 = vpack.c.bf16 %v320, %v319
        %v328 = vpack.c.bf16 %v322, %v321
        %v329 = vpack.c.bf16 %v324, %v323
        %v335 = vcombine.high %v325, %v325
        %v337 = vunpack.c.l.s4 1966171168
        %v338 = vunpack.c.0.s8 %v337
        %v339 = vlaneseq
        %v340 = vshrl.u32 %v339, 7
        %v341 = vsub.s32 %v338, %v340
        %v342 = vrot.slane %v325, %v341
        %v344 = vunpack.c.l.s4 1966171168
        %v345 = vunpack.c.0.s8 %v344
        %v346 = vlaneseq
        %v347 = vshrl.u32 %v346, 7
        %v348 = vsub.s32 %v345, %v347
        %v349 = vrot.slane %v335, %v348
        %v350 = vcombine.high %v342, %v342
        %v351 = vcombine.high %v349, %v349
        %v353 = vunpack.c.l.s4 1966171168
        %v354 = vunpack.c.0.s8 %v353
        %v355 = vlaneseq
        %v356 = vshrl.u32 %v355, 7
        %v357 = vsub.s32 %v354, %v356
        %v358 = vrot.slane %v342, %v357
        %v360 = vunpack.c.l.s4 1966171168
        %v361 = vunpack.c.0.s8 %v360
        %v362 = vlaneseq
        %v363 = vshrl.u32 %v362, 7
        %v364 = vsub.s32 %v361, %v363
        %v365 = vrot.slane %v349, %v364
        %v367 = vunpack.c.l.s4 1966171168
        %v368 = vunpack.c.0.s8 %v367
        %v369 = vlaneseq
        %v370 = vshrl.u32 %v369, 7
        %v371 = vsub.s32 %v368, %v370
        %v372 = vrot.slane %v350, %v371
        %v374 = vunpack.c.l.s4 1966171168
        %v375 = vunpack.c.0.s8 %v374
        %v376 = vlaneseq
        %v377 = vshrl.u32 %v376, 7
        %v378 = vsub.s32 %v375, %v377
        %v379 = vrot.slane %v351, %v378
        %v380 = vcombine.high %v358, %v358
        %v381 = vcombine.high %v365, %v365
        %v382 = vcombine.high %v372, %v372
        %v383 = vcombine.high %v379, %v379
        %v384 = vcombine.high %v326, %v326
        %v386 = vunpack.c.l.s4 1966171168
        %v387 = vunpack.c.0.s8 %v386
        %v388 = vlaneseq
        %v389 = vshrl.u32 %v388, 7
        %v390 = vsub.s32 %v387, %v389
        %v391 = vrot.slane %v326, %v390
        %v393 = vunpack.c.l.s4 1966171168
        %v394 = vunpack.c.0.s8 %v393
        %v395 = vlaneseq
        %v396 = vshrl.u32 %v395, 7
        %v397 = vsub.s32 %v394, %v396
        %v398 = vrot.slane %v384, %v397
        %v399 = vcombine.high %v391, %v391
        %v400 = vcombine.high %v398, %v398
        %v402 = vunpack.c.l.s4 1966171168
        %v403 = vunpack.c.0.s8 %v402
        %v404 = vlaneseq
        %v405 = vshrl.u32 %v404, 7
        %v406 = vsub.s32 %v403, %v405
        %v407 = vrot.slane %v391, %v406
        %v409 = vunpack.c.l.s4 1966171168
        %v410 = vunpack.c.0.s8 %v409
        %v411 = vlaneseq
        %v412 = vshrl.u32 %v411, 7
        %v413 = vsub.s32 %v410, %v412
        %v414 = vrot.slane %v398, %v413
        %v416 = vunpack.c.l.s4 1966171168
        %v417 = vunpack.c.0.s8 %v416
        %v418 = vlaneseq
        %v419 = vshrl.u32 %v418, 7
        %v420 = vsub.s32 %v417, %v419
        %v421 = vrot.slane %v399, %v420
        %v423 = vunpack.c.l.s4 1966171168
        %v424 = vunpack.c.0.s8 %v423
        %v425 = vlaneseq
        %v426 = vshrl.u32 %v425, 7
        %v427 = vsub.s32 %v424, %v426
        %v428 = vrot.slane %v400, %v427
        %v429 = vcombine.high %v407, %v407
        %v430 = vcombine.high %v414, %v414
        %v431 = vcombine.high %v421, %v421
        %v432 = vcombine.high %v428, %v428
        %v433 = vcombine.high %v327, %v327
        %v435 = vunpack.c.l.s4 1966171168
        %v436 = vunpack.c.0.s8 %v435
        %v437 = vlaneseq
        %v438 = vshrl.u32 %v437, 7
        %v439 = vsub.s32 %v436, %v438
        %v440 = vrot.slane %v327, %v439
        %v442 = vunpack.c.l.s4 1966171168
        %v443 = vunpack.c.0.s8 %v442
        %v444 = vlaneseq
        %v445 = vshrl.u32 %v444, 7
        %v446 = vsub.s32 %v443, %v445
        %v447 = vrot.slane %v433, %v446
        %v448 = vcombine.high %v440, %v440
        %v449 = vcombine.high %v447, %v447
        %v451 = vunpack.c.l.s4 1966171168
        %v452 = vunpack.c.0.s8 %v451
        %v453 = vlaneseq
        %v454 = vshrl.u32 %v453, 7
        %v455 = vsub.s32 %v452, %v454
        %v456 = vrot.slane %v440, %v455
        %v458 = vunpack.c.l.s4 1966171168
        %v459 = vunpack.c.0.s8 %v458
        %v460 = vlaneseq
        %v461 = vshrl.u32 %v460, 7
        %v462 = vsub.s32 %v459, %v461
        %v463 = vrot.slane %v447, %v462
        %v465 = vunpack.c.l.s4 1966171168
        %v466 = vunpack.c.0.s8 %v465
        %v467 = vlaneseq
        %v468 = vshrl.u32 %v467, 7
        %v469 = vsub.s32 %v466, %v468
        %v470 = vrot.slane %v448, %v469
        %v472 = vunpack.c.l.s4 1966171168
        %v473 = vunpack.c.0.s8 %v472
        %v474 = vlaneseq
        %v475 = vshrl.u32 %v474, 7
        %v476 = vsub.s32 %v473, %v475
        %v477 = vrot.slane %v449, %v476
        %v478 = vcombine.high %v456, %v456
        %v479 = vcombine.high %v463, %v463
        %v480 = vcombine.high %v470, %v470
        %v481 = vcombine.high %v477, %v477
        %v482 = vcombine.high %v328, %v328
        %v484 = vunpack.c.l.s4 1966171168
        %v485 = vunpack.c.0.s8 %v484
        %v486 = vlaneseq
        %v487 = vshrl.u32 %v486, 7
        %v488 = vsub.s32 %v485, %v487
        %v489 = vrot.slane %v328, %v488
        %v491 = vunpack.c.l.s4 1966171168
        %v492 = vunpack.c.0.s8 %v491
        %v493 = vlaneseq
        %v494 = vshrl.u32 %v493, 7
        %v495 = vsub.s32 %v492, %v494
        %v496 = vrot.slane %v482, %v495
        %v497 = vcombine.high %v489, %v489
        %v498 = vcombine.high %v496, %v496
        %v500 = vunpack.c.l.s4 1966171168
        %v501 = vunpack.c.0.s8 %v500
        %v502 = vlaneseq
        %v503 = vshrl.u32 %v502, 7
        %v504 = vsub.s32 %v501, %v503
        %v505 = vrot.slane %v489, %v504
        %v507 = vunpack.c.l.s4 1966171168
        %v508 = vunpack.c.0.s8 %v507
        %v509 = vlaneseq
        %v510 = vshrl.u32 %v509, 7
        %v511 = vsub.s32 %v508, %v510
        %v512 = vrot.slane %v496, %v511
        %v514 = vunpack.c.l.s4 1966171168
        %v515 = vunpack.c.0.s8 %v514
        %v516 = vlaneseq
        %v517 = vshrl.u32 %v516, 7
        %v518 = vsub.s32 %v515, %v517
        %v519 = vrot.slane %v497, %v518
        %v521 = vunpack.c.l.s4 1966171168
        %v522 = vunpack.c.0.s8 %v521
        %v523 = vlaneseq
        %v524 = vshrl.u32 %v523, 7
        %v525 = vsub.s32 %v522, %v524
        %v526 = vrot.slane %v498, %v525
        %v527 = vcombine.high %v505, %v505
        %v528 = vcombine.high %v512, %v512
        %v529 = vcombine.high %v519, %v519
        %v530 = vcombine.high %v526, %v526
        %v531 = vcombine.high %v329, %v329
        %v533 = vunpack.c.l.s4 1966171168
        %v534 = vunpack.c.0.s8 %v533
        %v535 = vlaneseq
        %v536 = vshrl.u32 %v535, 7
        %v537 = vsub.s32 %v534, %v536
        %v538 = vrot.slane %v329, %v537
        %v540 = vunpack.c.l.s4 1966171168
        %v541 = vunpack.c.0.s8 %v540
        %v542 = vlaneseq
        %v543 = vshrl.u32 %v542, 7
        %v544 = vsub.s32 %v541, %v543
        %v545 = vrot.slane %v531, %v544
        %v546 = vcombine.high %v538, %v538
        %v547 = vcombine.high %v545, %v545
        %v549 = vunpack.c.l.s4 1966171168
        %v550 = vunpack.c.0.s8 %v549
        %v551 = vlaneseq
        %v552 = vshrl.u32 %v551, 7
        %v553 = vsub.s32 %v550, %v552
        %v554 = vrot.slane %v538, %v553
        %v556 = vunpack.c.l.s4 1966171168
        %v557 = vunpack.c.0.s8 %v556
        %v558 = vlaneseq
        %v559 = vshrl.u32 %v558, 7
        %v560 = vsub.s32 %v557, %v559
        %v561 = vrot.slane %v545, %v560
        %v563 = vunpack.c.l.s4 1966171168
        %v564 = vunpack.c.0.s8 %v563
        %v565 = vlaneseq
        %v566 = vshrl.u32 %v565, 7
        %v567 = vsub.s32 %v564, %v566
        %v568 = vrot.slane %v546, %v567
        %v570 = vunpack.c.l.s4 1966171168
        %v571 = vunpack.c.0.s8 %v570
        %v572 = vlaneseq
        %v573 = vshrl.u32 %v572, 7
        %v574 = vsub.s32 %v571, %v573
        %v575 = vrot.slane %v547, %v574
        %v576 = vcombine.high %v554, %v554
        %v577 = vcombine.high %v561, %v561
        %v578 = vcombine.high %v568, %v568
        %v579 = vcombine.high %v575, %v575
        %v580 = vunpack.i.l.s16 %v358
        %v581 = vunpack.i.h.s16 %v358
        %v582 = vunpack.i.l.s16 %v372
        %v583 = vunpack.i.h.s16 %v372
        %v584 = vunpack.i.l.s16 %v380
        %v585 = vunpack.i.h.s16 %v380
        %v586 = vunpack.i.l.s16 %v382
        %v587 = vunpack.i.h.s16 %v382
        %v588 = vunpack.i.l.s16 %v365
        %v589 = vunpack.i.h.s16 %v365
        %v590 = vunpack.i.l.s16 %v379
        %v591 = vunpack.i.h.s16 %v379
        %v592 = vunpack.i.l.s16 %v381
        %v593 = vunpack.i.h.s16 %v381
        %v594 = vunpack.i.l.s16 %v383
        %v595 = vunpack.i.h.s16 %v383
        %v596 = vunpack.i.l.s16 %v407
        %v597 = vunpack.i.h.s16 %v407
        %v598 = vunpack.i.l.s16 %v421
        %v599 = vunpack.i.h.s16 %v421
        %v600 = vunpack.i.l.s16 %v429
        %v601 = vunpack.i.h.s16 %v429
        %v602 = vunpack.i.l.s16 %v431
        %v603 = vunpack.i.h.s16 %v431
        %v604 = vunpack.i.l.s16 %v414
        %v605 = vunpack.i.h.s16 %v414
        %v606 = vunpack.i.l.s16 %v428
        %v607 = vunpack.i.h.s16 %v428
        %v608 = vunpack.i.l.s16 %v430
        %v609 = vunpack.i.h.s16 %v430
        %v610 = vunpack.i.l.s16 %v432
        %v611 = vunpack.i.h.s16 %v432
        %v612 = vunpack.i.l.s16 %v456
        %v613 = vunpack.i.h.s16 %v456
        %v614 = vunpack.i.l.s16 %v470
        %v615 = vunpack.i.h.s16 %v470
        %v616 = vunpack.i.l.s16 %v478
        %v617 = vunpack.i.h.s16 %v478
        %v618 = vunpack.i.l.s16 %v480
        %v619 = vunpack.i.h.s16 %v480
        %v620 = vunpack.i.l.s16 %v463
        %v621 = vunpack.i.h.s16 %v463
        %v622 = vunpack.i.l.s16 %v477
        %v623 = vunpack.i.h.s16 %v477
        %v624 = vunpack.i.l.s16 %v479
        %v625 = vunpack.i.h.s16 %v479
        %v626 = vunpack.i.l.s16 %v481
        %v627 = vunpack.i.h.s16 %v481
        %v628 = vunpack.i.l.s16 %v505
        %v629 = vunpack.i.h.s16 %v505
        %v630 = vunpack.i.l.s16 %v519
        %v631 = vunpack.i.h.s16 %v519
        %v632 = vunpack.i.l.s16 %v527
        %v633 = vunpack.i.h.s16 %v527
        %v634 = vunpack.i.l.s16 %v529
        %v635 = vunpack.i.h.s16 %v529
        %v636 = vunpack.i.l.s16 %v512
        %v637 = vunpack.i.h.s16 %v512
        %v638 = vunpack.i.l.s16 %v526
        %v639 = vunpack.i.h.s16 %v526
        %v640 = vunpack.i.l.s16 %v528
        %v641 = vunpack.i.h.s16 %v528
        %v642 = vunpack.i.l.s16 %v530
        %v643 = vunpack.i.h.s16 %v530
        %v644 = vunpack.i.l.s16 %v554
        %v645 = vunpack.i.h.s16 %v554
        %v646 = vunpack.i.l.s16 %v568
        %v647 = vunpack.i.h.s16 %v568
        %v648 = vunpack.i.l.s16 %v576
        %v649 = vunpack.i.h.s16 %v576
        %v650 = vunpack.i.l.s16 %v578
        %v651 = vunpack.i.h.s16 %v578
        %v652 = vunpack.i.l.s16 %v561
        %v653 = vunpack.i.h.s16 %v561
        %v654 = vunpack.i.l.s16 %v575
        %v655 = vunpack.i.h.s16 %v575
        %v656 = vunpack.i.l.s16 %v577
        %v657 = vunpack.i.h.s16 %v577
        %v658 = vunpack.i.l.s16 %v579
        %v659 = vunpack.i.h.s16 %v579
        %v660 = vld [vmem:[%s4] sm:$0xf]
        %v661 = vld [vmem:[%s4 + $0x4] sm:$0xf]
        %v662 = vld [vmem:[%s4 + $0x8] sm:$0xf]
        %v663 = vld [vmem:[%s4 + $0xc] sm:$0xf]
        %v664 = vld [vmem:[%s5] sm:$0x1]
        %v666 = vlaneseq
        %v667 = vshrl.u32 %v666, 7
        %v668 = vsub.s32 0, %v667
        %v669 = vrot.slane %v664, %v668
        %v675 = vunpack.c.l.b16 %v660
        %v676 = vunpack.c.l.b16 %v661
        %v677 = vunpack.c.l.b16 %v662
        %v678 = vunpack.c.l.b16 %v663
        %v679 = vpack.c.b16 %v676, %v675
        %v680 = vpack.c.b16 %v678, %v677
        %vm683 = vcmask 261120
        %v685 = vsel %vm683, %v299, 0
        %v688 = vsel %vm683, %v300, 0
        %v691 = vsel %vm683, %v301, 0
        %v694 = vsel %vm683, %v302, 0
        %v697 = vsel %vm683, %v303, 0
        %v700 = vsel %vm683, %v304, 0
        %v703 = vsel %vm683, %v305, 0
        %v706 = vsel %vm683, %v306, 0
        %v709 = vsel %vm683, %v307, 0
        %v712 = vsel %vm683, %v308, 0
        %v715 = vsel %vm683, %v309, 0
        %v718 = vsel %vm683, %v310, 0
        %v721 = vsel %vm683, %v311, 0
        %v724 = vsel %vm683, %v312, 0
        %v727 = vsel %vm683, %v313, 0
        %v730 = vsel %vm683, %v314, 0
        %732 = vmatprep.subr.bf16.mxu0 0
        %733 = vmatpush1.bf16.msra.mxu0 %v679
        %734 = vmatprep.subr.bf16.mxu0 0
        %735 = vmatpush1.bf16.msra.mxu0 %v680
        %736 = vmatprep.subr.bf16.mxu0 0
        %737 = vmatpush1.bf16.msra.mxu0 0
        %738 = vmatprep.subr.bf16.mxu0 0
        %739 = vmatpush1.bf16.msra.mxu0 0
        %740 = vmatprep.subr.bf16.mxu0 0
        %741 = vmatpush1.bf16.msra.mxu0 0
        %742 = vmatprep.subr.bf16.mxu0 0
        %743 = vmatpush1.bf16.msra.mxu0 0
        %744 = vmatprep.subr.bf16.mxu0 0
        %745 = vmatpush1.bf16.msra.mxu0 0
        %746 = vmatprep.subr.bf16.mxu0 0
        %747 = vmatpush1.bf16.msra.mxu0 0
        %748 = vmatprep.subr.bf16.mxu0 0
        %749 = vmatpush1.bf16.msra.mxu0 0
        %750 = vmatprep.subr.bf16.mxu0 0
        %751 = vmatpush1.bf16.msra.mxu0 0
        %752 = vmatprep.subr.bf16.mxu0 0
        %753 = vmatpush1.bf16.msra.mxu0 0
        %754 = vmatprep.subr.bf16.mxu0 0
        %755 = vmatpush1.bf16.msra.mxu0 0
        %756 = vmatprep.subr.bf16.mxu0 0
        %757 = vmatpush1.bf16.msra.mxu0 0
        %758 = vmatprep.subr.bf16.mxu0 0
        %759 = vmatpush1.bf16.msra.mxu0 0
        %760 = vmatprep.subr.bf16.mxu0 0
        %761 = vmatpush1.bf16.msra.mxu0 0
        %762 = vmatprep.subr.bf16.mxu0 0
        %763 = vmatpush1.bf16.msra.mxu0 0
        %764 = vmatprep.mubr.bf16.mxu0 0
        %765 = vmatmul.mubr.bf16.gmra.mrb[0].mxu0 %v685
        %v766 = vpop.f32.mrb[0].mxu0
        %v767 = vadd.f32 %v669, %v766
        %v768 = vpop.f32.mrb[0].mxu0
        %v769 = vpop.f32.mrb[0].mxu0
        %v770 = vadd.f32 %v669, %v769
        %v771 = vpop.f32.mrb[0].mxu0
        %772 = vmatprep.mubr.bf16.mxu0 0
        %773 = vmatmul.mubr.bf16.gmra.mrb[0].mxu0 %v688
        %v774 = vpop.f32.mrb[0].mxu0
        %v775 = vadd.f32 %v669, %v774
        %v776 = vpop.f32.mrb[0].mxu0
        %v777 = vpop.f32.mrb[0].mxu0
        %v778 = vadd.f32 %v669, %v777
        %v779 = vpop.f32.mrb[0].mxu0
        %780 = vmatprep.mubr.bf16.mxu0 0
        %781 = vmatmul.mubr.bf16.gmra.mrb[0].mxu0 %v691
        %v782 = vpop.f32.mrb[0].mxu0
        %v783 = vadd.f32 %v669, %v782
        %v784 = vpop.f32.mrb[0].mxu0
        %v785 = vpop.f32.mrb[0].mxu0
        %v786 = vadd.f32 %v669, %v785
        %v787 = vpop.f32.mrb[0].mxu0
        %788 = vmatprep.mubr.bf16.mxu0 0
        %789 = vmatmul.mubr.bf16.gmra.mrb[0].mxu0 %v694
        %v790 = vpop.f32.mrb[0].mxu0
        %v791 = vadd.f32 %v669, %v790
        %v792 = vpop.f32.mrb[0].mxu0
        %v793 = vpop.f32.mrb[0].mxu0
        %v794 = vadd.f32 %v669, %v793
        %v795 = vpop.f32.mrb[0].mxu0
        %796 = vmatprep.mubr.bf16.mxu0 0
        %797 = vmatmul.mubr.bf16.gmra.mrb[0].mxu0 %v697
        %v798 = vpop.f32.mrb[0].mxu0
        %v799 = vadd.f32 %v669, %v798
        %v800 = vpop.f32.mrb[0].mxu0
        %v801 = vpop.f32.mrb[0].mxu0
        %v802 = vadd.f32 %v669, %v801
        %v803 = vpop.f32.mrb[0].mxu0
        %804 = vmatprep.mubr.bf16.mxu0 0
        %805 = vmatmul.mubr.bf16.gmra.mrb[0].mxu0 %v700
        %v806 = vpop.f32.mrb[0].mxu0
        %v807 = vadd.f32 %v669, %v806
        %v808 = vpop.f32.mrb[0].mxu0
        %v809 = vpop.f32.mrb[0].mxu0
        %v810 = vadd.f32 %v669, %v809
        %v811 = vpop.f32.mrb[0].mxu0
        %812 = vmatprep.mubr.bf16.mxu0 0
        %813 = vmatmul.mubr.bf16.gmra.mrb[0].mxu0 %v703
        %v814 = vpop.f32.mrb[0].mxu0
        %v815 = vadd.f32 %v669, %v814
        %v816 = vpop.f32.mrb[0].mxu0
        %v817 = vpop.f32.mrb[0].mxu0
        %v818 = vadd.f32 %v669, %v817
        %v819 = vpop.f32.mrb[0].mxu0
        %820 = vmatprep.mubr.bf16.mxu0 0
        %821 = vmatmul.mubr.bf16.gmra.mrb[0].mxu0 %v706
        %v822 = vpop.f32.mrb[0].mxu0
        %v823 = vadd.f32 %v669, %v822
        %v824 = vpop.f32.mrb[0].mxu0
        %v825 = vpop.f32.mrb[0].mxu0
        %v826 = vadd.f32 %v669, %v825
        %v827 = vpop.f32.mrb[0].mxu0
        %828 = vmatprep.mubr.bf16.mxu0 0
        %829 = vmatmul.mubr.bf16.gmra.mrb[0].mxu0 %v709
        %v830 = vpop.f32.mrb[0].mxu0
        %v831 = vadd.f32 %v669, %v830
        %v832 = vpop.f32.mrb[0].mxu0
        %v833 = vpop.f32.mrb[0].mxu0
        %v834 = vadd.f32 %v669, %v833
        %v835 = vpop.f32.mrb[0].mxu0
        %836 = vmatprep.mubr.bf16.mxu0 0
        %837 = vmatmul.mubr.bf16.gmra.mrb[0].mxu0 %v712
        %v838 = vpop.f32.mrb[0].mxu0
        %v839 = vadd.f32 %v669, %v838
        %v840 = vpop.f32.mrb[0].mxu0
        %v841 = vpop.f32.mrb[0].mxu0
        %v842 = vadd.f32 %v669, %v841
        %v843 = vpop.f32.mrb[0].mxu0
        %844 = vmatprep.mubr.bf16.mxu0 0
        %845 = vmatmul.mubr.bf16.gmra.mrb[0].mxu0 %v715
        %v846 = vpop.f32.mrb[0].mxu0
        %v847 = vadd.f32 %v669, %v846
        %v848 = vpop.f32.mrb[0].mxu0
        %v849 = vpop.f32.mrb[0].mxu0
        %v850 = vadd.f32 %v669, %v849
        %v851 = vpop.f32.mrb[0].mxu0
        %852 = vmatprep.mubr.bf16.mxu0 0
        %853 = vmatmul.mubr.bf16.gmra.mrb[0].mxu0 %v718
        %v854 = vpop.f32.mrb[0].mxu0
        %v855 = vadd.f32 %v669, %v854
        %v856 = vpop.f32.mrb[0].mxu0
        %v857 = vpop.f32.mrb[0].mxu0
        %v858 = vadd.f32 %v669, %v857
        %v859 = vpop.f32.mrb[0].mxu0
        %860 = vmatprep.mubr.bf16.mxu0 0
        %861 = vmatmul.mubr.bf16.gmra.mrb[0].mxu0 %v721
        %v862 = vpop.f32.mrb[0].mxu0
        %v863 = vadd.f32 %v669, %v862
        %v864 = vpop.f32.mrb[0].mxu0
        %v865 = vpop.f32.mrb[0].mxu0
        %v866 = vadd.f32 %v669, %v865
        %v867 = vpop.f32.mrb[0].mxu0
        %868 = vmatprep.mubr.bf16.mxu0 0
        %869 = vmatmul.mubr.bf16.gmra.mrb[0].mxu0 %v724
        %v870 = vpop.f32.mrb[0].mxu0
        %v871 = vadd.f32 %v669, %v870
        %v872 = vpop.f32.mrb[0].mxu0
        %v873 = vpop.f32.mrb[0].mxu0
        %v874 = vadd.f32 %v669, %v873
        %v875 = vpop.f32.mrb[0].mxu0
        %876 = vmatprep.mubr.bf16.mxu0 0
        %877 = vmatmul.mubr.bf16.gmra.mrb[0].mxu0 %v727
        %v878 = vpop.f32.mrb[0].mxu0
        %v879 = vadd.f32 %v669, %v878
        %v880 = vpop.f32.mrb[0].mxu0
        %v881 = vpop.f32.mrb[0].mxu0
        %v882 = vadd.f32 %v669, %v881
        %v883 = vpop.f32.mrb[0].mxu0
        %884 = vmatprep.mubr.bf16.mxu0 0
        %885 = vmatmul.mubr.bf16.gmra.mrb[0].mxu0 %v730
        %v886 = vpop.f32.mrb[0].mxu0
        %v887 = vadd.f32 %v669, %v886
        %v888 = vpop.f32.mrb[0].mxu0
        %v889 = vpop.f32.mrb[0].mxu0
        %v890 = vadd.f32 %v669, %v889
        %v891 = vpop.f32.mrb[0].mxu0
        %892 = vdwg.mxu0
        %v893 = vtanh.pop %v767
        %v894 = vtanh.pop %v770
        %v895 = vtanh.pop %v775
        %v896 = vtanh.pop %v778
        %v897 = vtanh.pop %v783
        %v898 = vtanh.pop %v786
        %v899 = vtanh.pop %v791
        %v900 = vtanh.pop %v794
        %v901 = vtanh.pop %v799
        %v902 = vtanh.pop %v802
        %v903 = vtanh.pop %v807
        %v904 = vtanh.pop %v810
        %v905 = vtanh.pop %v815
        %v906 = vtanh.pop %v818
        %v907 = vtanh.pop %v823
        %v908 = vtanh.pop %v826
        %v909 = vtanh.pop %v831
        %v910 = vtanh.pop %v834
        %v911 = vtanh.pop %v839
        %v912 = vtanh.pop %v842
        %v913 = vtanh.pop %v847
        %v914 = vtanh.pop %v850
        %v915 = vtanh.pop %v855
        %v916 = vtanh.pop %v858
        %v917 = vtanh.pop %v863
        %v918 = vtanh.pop %v866
        %v919 = vtanh.pop %v871
        %v920 = vtanh.pop %v874
        %v921 = vtanh.pop %v879
        %v922 = vtanh.pop %v882
        %v923 = vtanh.pop %v887
        %v924 = vtanh.pop %v890
        %v925 = vld [vmem:[%s6] sm:$0x1]
        %v927 = vlaneseq
        %v928 = vshrl.u32 %v927, 7
        %v929 = vsub.s32 0, %v928
        %v930 = vrot.slane %v925, %v929
        %v932 = vmul.f32 %v893, %v930
        %v933 = vmul.f32 %v894, %v930
        %v934 = vmul.f32 %v895, %v930
        %v935 = vmul.f32 %v896, %v930
        %v936 = vmul.f32 %v897, %v930
        %v937 = vmul.f32 %v898, %v930
        %v938 = vmul.f32 %v899, %v930
        %v939 = vmul.f32 %v900, %v930
        %v940 = vmul.f32 %v901, %v930
        %v941 = vmul.f32 %v902, %v930
        %v942 = vmul.f32 %v903, %v930
        %v943 = vmul.f32 %v904, %v930
        %v944 = vmul.f32 %v905, %v930
        %v945 = vmul.f32 %v906, %v930
        %v946 = vmul.f32 %v907, %v930
        %v947 = vmul.f32 %v908, %v930
        %v948 = vmul.f32 %v909, %v930
        %v949 = vmul.f32 %v910, %v930
        %v950 = vmul.f32 %v911, %v930
        %v951 = vmul.f32 %v912, %v930
        %v952 = vmul.f32 %v913, %v930
        %v953 = vmul.f32 %v914, %v930
        %v954 = vmul.f32 %v915, %v930
        %v955 = vmul.f32 %v916, %v930
        %v956 = vmul.f32 %v917, %v930
        %v957 = vmul.f32 %v918, %v930
        %v958 = vmul.f32 %v919, %v930
        %v959 = vmul.f32 %v920, %v930
        %v960 = vmul.f32 %v921, %v930
        %v961 = vmul.f32 %v922, %v930
        %v962 = vmul.f32 %v923, %v930
        %v963 = vmul.f32 %v924, %v930
        %vm964 = vcmask 130048
        %v965 = vsel %vm964, %v932, 0.0
        %966 = vadd.xlane.f32.xlu0 %v965
        %v967 = vpop.xlane.xlu0 %966
        %v968 = vsel %vm964, %v933, 0.0
        %969 = vadd.xlane.f32.xlu0 %v968
        %v970 = vpop.xlane.xlu0 %969
        %v971 = vsel %vm964, %v934, 0.0
        %972 = vadd.xlane.f32.xlu0 %v971
        %v973 = vpop.xlane.xlu0 %972
        %v974 = vsel %vm964, %v935, 0.0
        %975 = vadd.xlane.f32.xlu0 %v974
        %v976 = vpop.xlane.xlu0 %975
        %v977 = vsel %vm964, %v936, 0.0
        %978 = vadd.xlane.f32.xlu0 %v977
        %v979 = vpop.xlane.xlu0 %978
        %v980 = vsel %vm964, %v937, 0.0
        %981 = vadd.xlane.f32.xlu0 %v980
        %v982 = vpop.xlane.xlu0 %981
        %v983 = vsel %vm964, %v938, 0.0
        %984 = vadd.xlane.f32.xlu0 %v983
        %v985 = vpop.xlane.xlu0 %984
        %v986 = vsel %vm964, %v939, 0.0
        %987 = vadd.xlane.f32.xlu0 %v986
        %v988 = vpop.xlane.xlu0 %987
        %v989 = vsel %vm964, %v940, 0.0
        %990 = vadd.xlane.f32.xlu0 %v989
        %v991 = vpop.xlane.xlu0 %990
        %v992 = vsel %vm964, %v941, 0.0
        %993 = vadd.xlane.f32.xlu0 %v992
        %v994 = vpop.xlane.xlu0 %993
        %v995 = vsel %vm964, %v942, 0.0
        %996 = vadd.xlane.f32.xlu0 %v995
        %v997 = vpop.xlane.xlu0 %996
        %v998 = vsel %vm964, %v943, 0.0
        %999 = vadd.xlane.f32.xlu0 %v998
        %v1000 = vpop.xlane.xlu0 %999
        %v1001 = vsel %vm964, %v944, 0.0
        %1002 = vadd.xlane.f32.xlu0 %v1001
        %v1003 = vpop.xlane.xlu0 %1002
        %v1004 = vsel %vm964, %v945, 0.0
        %1005 = vadd.xlane.f32.xlu0 %v1004
        %v1006 = vpop.xlane.xlu0 %1005
        %v1007 = vsel %vm964, %v946, 0.0
        %1008 = vadd.xlane.f32.xlu0 %v1007
        %v1009 = vpop.xlane.xlu0 %1008
        %v1010 = vsel %vm964, %v947, 0.0
        %1011 = vadd.xlane.f32.xlu0 %v1010
        %v1012 = vpop.xlane.xlu0 %1011
        %v1013 = vsel %vm964, %v948, 0.0
        %1014 = vadd.xlane.f32.xlu0 %v1013
        %v1015 = vpop.xlane.xlu0 %1014
        %v1016 = vsel %vm964, %v949, 0.0
        %1017 = vadd.xlane.f32.xlu0 %v1016
        %v1018 = vpop.xlane.xlu0 %1017
        %v1019 = vsel %vm964, %v950, 0.0
        %1020 = vadd.xlane.f32.xlu0 %v1019
        %v1021 = vpop.xlane.xlu0 %1020
        %v1022 = vsel %vm964, %v951, 0.0
        %1023 = vadd.xlane.f32.xlu0 %v1022
        %v1024 = vpop.xlane.xlu0 %1023
        %v1025 = vsel %vm964, %v952, 0.0
        %1026 = vadd.xlane.f32.xlu0 %v1025
        %v1027 = vpop.xlane.xlu0 %1026
        %v1028 = vsel %vm964, %v953, 0.0
        %1029 = vadd.xlane.f32.xlu0 %v1028
        %v1030 = vpop.xlane.xlu0 %1029
        %v1031 = vsel %vm964, %v954, 0.0
        %1032 = vadd.xlane.f32.xlu0 %v1031
        %v1033 = vpop.xlane.xlu0 %1032
        %v1034 = vsel %vm964, %v955, 0.0
        %1035 = vadd.xlane.f32.xlu0 %v1034
        %v1036 = vpop.xlane.xlu0 %1035
        %v1037 = vsel %vm964, %v956, 0.0
        %1038 = vadd.xlane.f32.xlu0 %v1037
        %v1039 = vpop.xlane.xlu0 %1038
        %v1040 = vsel %vm964, %v957, 0.0
        %1041 = vadd.xlane.f32.xlu0 %v1040
        %v1042 = vpop.xlane.xlu0 %1041
        %v1043 = vsel %vm964, %v958, 0.0
        %1044 = vadd.xlane.f32.xlu0 %v1043
        %v1045 = vpop.xlane.xlu0 %1044
        %v1046 = vsel %vm964, %v959, 0.0
        %1047 = vadd.xlane.f32.xlu0 %v1046
        %v1048 = vpop.xlane.xlu0 %1047
        %v1049 = vsel %vm964, %v960, 0.0
        %1050 = vadd.xlane.f32.xlu0 %v1049
        %v1051 = vpop.xlane.xlu0 %1050
        %v1052 = vsel %vm964, %v961, 0.0
        %1053 = vadd.xlane.f32.xlu0 %v1052
        %v1054 = vpop.xlane.xlu0 %1053
        %v1055 = vsel %vm964, %v962, 0.0
        %1056 = vadd.xlane.f32.xlu0 %v1055
        %v1057 = vpop.xlane.xlu0 %1056
        %v1058 = vsel %vm964, %v963, 0.0
        %1059 = vadd.xlane.f32.xlu0 %v1058
        %v1060 = vpop.xlane.xlu0 %1059
        %v1061 = vld [vmem:[%s235] sm:$0xff]
        %v1062 = vld [vmem:[%s235 + $0x8] sm:$0xff]
        %v1063 = vlaneseq
        %v1064 = vand.u32 %v1063, 127
        %1065 = vset.pattern.permute.xlu0 0
        %1066 = vperm.xlu0 %1065, %v1061
        %v1067 = vpop.permute.xlu0 %1066
        %1068 = vset.pattern.permute.xlu0 0
        %1069 = vperm.xlu0 %1068, %v1062
        %v1070 = vpop.permute.xlu0 %1069
        %vm1071 = vcmp.lt.s32.totalorder %v1064, %v1067
        %vm1072 = vcmp.lt.s32.totalorder %v1064, %v1070
        %v1073 = vsel %vm1071, 1, 0
        %v1074 = vsel %vm1072, 1, 0
        %v1075 = vcvt.s32.f32 %v1073
        %v1076 = vcvt.s32.f32 %v1074
        %vm1077 = vcmp.gt.f32.partialorder %v1075, 0.0
        %vm1078 = vcmp.gt.f32.partialorder %v1076, 0.0
        %v1111 = vlaneseq
        %v1112 = vshrl.u32 %v1111, 7
        %v1113 = vsub.s32 %v1064, %v1112
        %v1114 = vrot.slane %v967, %v1113
        %v1115 = vadd.s32 %v1064, 4294967288
        %v1116 = vlaneseq
        %v1117 = vshrl.u32 %v1116, 7
        %v1118 = vsub.s32 %v1115, %v1117
        %v1119 = vrot.slane %v970, %v1118
        %vm1120 = vcmask 130112
        %v1121 = vsel %vm1120, %v1119, %v1114
        %v1122 = vlaneseq
        %v1123 = vshrl.u32 %v1122, 7
        %v1124 = vsub.s32 %v1064, %v1123
        %v1125 = vrot.slane %v973, %v1124
        %v1126 = vlaneseq
        %v1127 = vshrl.u32 %v1126, 7
        %v1128 = vsub.s32 %v1115, %v1127
        %v1129 = vrot.slane %v976, %v1128
        %v1130 = vsel %vm1120, %v1129, %v1125
        %v1131 = vlaneseq
        %v1132 = vshrl.u32 %v1131, 7
        %v1133 = vsub.s32 %v1064, %v1132
        %v1134 = vrot.slane %v979, %v1133
        %v1135 = vlaneseq
        %v1136 = vshrl.u32 %v1135, 7
        %v1137 = vsub.s32 %v1115, %v1136
        %v1138 = vrot.slane %v982, %v1137
        %v1139 = vsel %vm1120, %v1138, %v1134
        %v1140 = vlaneseq
        %v1141 = vshrl.u32 %v1140, 7
        %v1142 = vsub.s32 %v1064, %v1141
        %v1143 = vrot.slane %v985, %v1142
        %v1144 = vlaneseq
        %v1145 = vshrl.u32 %v1144, 7
        %v1146 = vsub.s32 %v1115, %v1145
        %v1147 = vrot.slane %v988, %v1146
        %v1148 = vsel %vm1120, %v1147, %v1143
        %v1149 = vlaneseq
        %v1150 = vshrl.u32 %v1149, 7
        %v1151 = vsub.s32 %v1064, %v1150
        %v1152 = vrot.slane %v991, %v1151
        %v1153 = vlaneseq
        %v1154 = vshrl.u32 %v1153, 7
        %v1155 = vsub.s32 %v1115, %v1154
        %v1156 = vrot.slane %v994, %v1155
        %v1157 = vsel %vm1120, %v1156, %v1152
        %v1158 = vlaneseq
        %v1159 = vshrl.u32 %v1158, 7
        %v1160 = vsub.s32 %v1064, %v1159
        %v1161 = vrot.slane %v997, %v1160
        %v1162 = vlaneseq
        %v1163 = vshrl.u32 %v1162, 7
        %v1164 = vsub.s32 %v1115, %v1163
        %v1165 = vrot.slane %v1000, %v1164
        %v1166 = vsel %vm1120, %v1165, %v1161
        %v1167 = vlaneseq
        %v1168 = vshrl.u32 %v1167, 7
        %v1169 = vsub.s32 %v1064, %v1168
        %v1170 = vrot.slane %v1003, %v1169
        %v1171 = vlaneseq
        %v1172 = vshrl.u32 %v1171, 7
        %v1173 = vsub.s32 %v1115, %v1172
        %v1174 = vrot.slane %v1006, %v1173
        %v1175 = vsel %vm1120, %v1174, %v1170
        %v1176 = vlaneseq
        %v1177 = vshrl.u32 %v1176, 7
        %v1178 = vsub.s32 %v1064, %v1177
        %v1179 = vrot.slane %v1009, %v1178
        %v1180 = vlaneseq
        %v1181 = vshrl.u32 %v1180, 7
        %v1182 = vsub.s32 %v1115, %v1181
        %v1183 = vrot.slane %v1012, %v1182
        %v1184 = vsel %vm1120, %v1183, %v1179
        %v1185 = vlaneseq
        %v1186 = vshrl.u32 %v1185, 7
        %v1187 = vsub.s32 %v1064, %v1186
        %v1188 = vrot.slane %v1015, %v1187
        %v1189 = vlaneseq
        %v1190 = vshrl.u32 %v1189, 7
        %v1191 = vsub.s32 %v1115, %v1190
        %v1192 = vrot.slane %v1018, %v1191
        %v1193 = vsel %vm1120, %v1192, %v1188
        %v1194 = vlaneseq
        %v1195 = vshrl.u32 %v1194, 7
        %v1196 = vsub.s32 %v1064, %v1195
        %v1197 = vrot.slane %v1021, %v1196
        %v1198 = vlaneseq
        %v1199 = vshrl.u32 %v1198, 7
        %v1200 = vsub.s32 %v1115, %v1199
        %v1201 = vrot.slane %v1024, %v1200
        %v1202 = vsel %vm1120, %v1201, %v1197
        %v1203 = vlaneseq
        %v1204 = vshrl.u32 %v1203, 7
        %v1205 = vsub.s32 %v1064, %v1204
        %v1206 = vrot.slane %v1027, %v1205
        %v1207 = vlaneseq
        %v1208 = vshrl.u32 %v1207, 7
        %v1209 = vsub.s32 %v1115, %v1208
        %v1210 = vrot.slane %v1030, %v1209
        %v1211 = vsel %vm1120, %v1210, %v1206
        %v1212 = vlaneseq
        %v1213 = vshrl.u32 %v1212, 7
        %v1214 = vsub.s32 %v1064, %v1213
        %v1215 = vrot.slane %v1033, %v1214
        %v1216 = vlaneseq
        %v1217 = vshrl.u32 %v1216, 7
        %v1218 = vsub.s32 %v1115, %v1217
        %v1219 = vrot.slane %v1036, %v1218
        %v1220 = vsel %vm1120, %v1219, %v1215
        %v1221 = vlaneseq
        %v1222 = vshrl.u32 %v1221, 7
        %v1223 = vsub.s32 %v1064, %v1222
        %v1224 = vrot.slane %v1039, %v1223
        %v1225 = vlaneseq
        %v1226 = vshrl.u32 %v1225, 7
        %v1227 = vsub.s32 %v1115, %v1226
        %v1228 = vrot.slane %v1042, %v1227
        %v1229 = vsel %vm1120, %v1228, %v1224
        %v1230 = vlaneseq
        %v1231 = vshrl.u32 %v1230, 7
        %v1232 = vsub.s32 %v1064, %v1231
        %v1233 = vrot.slane %v1045, %v1232
        %v1234 = vlaneseq
        %v1235 = vshrl.u32 %v1234, 7
        %v1236 = vsub.s32 %v1115, %v1235
        %v1237 = vrot.slane %v1048, %v1236
        %v1238 = vsel %vm1120, %v1237, %v1233
        %v1239 = vlaneseq
        %v1240 = vshrl.u32 %v1239, 7
        %v1241 = vsub.s32 %v1064, %v1240
        %v1242 = vrot.slane %v1051, %v1241
        %v1243 = vlaneseq
        %v1244 = vshrl.u32 %v1243, 7
        %v1245 = vsub.s32 %v1115, %v1244
        %v1246 = vrot.slane %v1054, %v1245
        %v1247 = vsel %vm1120, %v1246, %v1242
        %v1248 = vlaneseq
        %v1249 = vshrl.u32 %v1248, 7
        %v1250 = vsub.s32 %v1064, %v1249
        %v1251 = vrot.slane %v1057, %v1250
        %v1252 = vlaneseq
        %v1253 = vshrl.u32 %v1252, 7
        %v1254 = vsub.s32 %v1115, %v1253
        %v1255 = vrot.slane %v1060, %v1254
        %v1256 = vsel %vm1120, %v1255, %v1251
        %vm1257 = vcmask 1041409
        %v1258 = vsel %vm1257, %v1130, %v1121
        %vm1259 = vcmask 1042434
        %v1260 = vsel %vm1259, %v1139, %v1258
        %vm1261 = vcmask 1043459
        %v1262 = vsel %vm1261, %v1148, %v1260
        %vm1263 = vcmask 1044484
        %v1264 = vsel %vm1263, %v1157, %v1262
        %vm1265 = vcmask 1045509
        %v1266 = vsel %vm1265, %v1166, %v1264
        %vm1267 = vcmask 1046534
        %v1268 = vsel %vm1267, %v1175, %v1266
        %vm1269 = vcmask 1047559
        %v1270 = vsel %vm1269, %v1184, %v1268
        %v1271 = vsel %vm1257, %v1202, %v1193
        %v1272 = vsel %vm1259, %v1211, %v1271
        %v1273 = vsel %vm1261, %v1220, %v1272
        %v1274 = vsel %vm1263, %v1229, %v1273
        %v1275 = vsel %vm1265, %v1238, %v1274
        %v1276 = vsel %vm1267, %v1247, %v1275
        %v1277 = vsel %vm1269, %v1256, %v1276
        %v1280 = vsel %vm1077, %v1270, -3e+38
        %v1281 = vsel %vm1078, %v1277, -3e+38
        %v1282 = vsel %vm964, %v1280, -inf
        %1283 = vmax.xlane.f32.xlu0 %v1282
        %v1284 = vpop.xlane.xlu0 %1283
        %v1285 = vsel %vm964, %v1281, -inf
        %1286 = vmax.xlane.f32.xlu0 %v1285
        %v1287 = vpop.xlane.xlu0 %1286
        %v1288 = vsub.f32 %v1280, %v1284
        %v1289 = vsub.f32 %v1281, %v1287
        %v1290 = vmul.f32 %v1288, 1.442695
        %v1291 = vpow.pop %v1290
        %v1292 = vmul.f32 %v1289, 1.442695
        %v1293 = vpow.pop %v1292
        %v1294 = vmul.f32 %v1291, %v1075
        %v1295 = vmul.f32 %v1293, %v1076
        %v1296 = vsel %vm964, %v1294, 0.0
        %1297 = vadd.xlane.f32.xlu0 %v1296
        %v1298 = vpop.xlane.xlu0 %1297
        %v1299 = vsel %vm964, %v1295, 0.0
        %1300 = vadd.xlane.f32.xlu0 %v1299
        %v1301 = vpop.xlane.xlu0 %1300
        %v1302 = vmax.f32 %v1298, 1e-30
        %v1303 = vmax.f32 %v1301, 1e-30
        %v1304 = vrcp.pop %v1302
        %v1305 = vmul.f32 %v1294, %v1304
        %v1306 = vrcp.pop %v1303
        %v1307 = vmul.f32 %v1295, %v1306
        %v1308 = vpack.c.bf16 %v1307, %v1305
        %v1310 = vcombine.high %v1308, %v1308
        %v1312 = vunpack.c.l.s4 1966171168
        %v1313 = vunpack.c.0.s8 %v1312
        %v1314 = vlaneseq
        %v1315 = vshrl.u32 %v1314, 7
        %v1316 = vsub.s32 %v1313, %v1315
        %v1317 = vrot.slane %v1308, %v1316
        %v1319 = vunpack.c.l.s4 1966171168
        %v1320 = vunpack.c.0.s8 %v1319
        %v1321 = vlaneseq
        %v1322 = vshrl.u32 %v1321, 7
        %v1323 = vsub.s32 %v1320, %v1322
        %v1324 = vrot.slane %v1310, %v1323
        %v1325 = vcombine.high %v1317, %v1317
        %v1326 = vcombine.high %v1324, %v1324
        %v1328 = vunpack.c.l.s4 1966171168
        %v1329 = vunpack.c.0.s8 %v1328
        %v1330 = vlaneseq
        %v1331 = vshrl.u32 %v1330, 7
        %v1332 = vsub.s32 %v1329, %v1331
        %v1333 = vrot.slane %v1317, %v1332
        %v1335 = vunpack.c.l.s4 1966171168
        %v1336 = vunpack.c.0.s8 %v1335
        %v1337 = vlaneseq
        %v1338 = vshrl.u32 %v1337, 7
        %v1339 = vsub.s32 %v1336, %v1338
        %v1340 = vrot.slane %v1324, %v1339
        %v1342 = vunpack.c.l.s4 1966171168
        %v1343 = vunpack.c.0.s8 %v1342
        %v1344 = vlaneseq
        %v1345 = vshrl.u32 %v1344, 7
        %v1346 = vsub.s32 %v1343, %v1345
        %v1347 = vrot.slane %v1325, %v1346
        %v1349 = vunpack.c.l.s4 1966171168
        %v1350 = vunpack.c.0.s8 %v1349
        %v1351 = vlaneseq
        %v1352 = vshrl.u32 %v1351, 7
        %v1353 = vsub.s32 %v1350, %v1352
        %v1354 = vrot.slane %v1326, %v1353
        %v1355 = vcombine.high %v1333, %v1333
        %v1356 = vcombine.high %v1340, %v1340
        %v1357 = vcombine.high %v1347, %v1347
        %v1358 = vcombine.high %v1354, %v1354
        %v1359 = vunpack.i.l.s16 %v1333
        %v1360 = vunpack.i.h.s16 %v1333
        %v1361 = vunpack.i.l.s16 %v1347
        %v1362 = vunpack.i.h.s16 %v1347
        %v1363 = vunpack.i.l.s16 %v1355
        %v1364 = vunpack.i.h.s16 %v1355
        %v1365 = vunpack.i.l.s16 %v1357
        %v1366 = vunpack.i.h.s16 %v1357
        %v1367 = vunpack.i.l.s16 %v1340
        %v1368 = vunpack.i.h.s16 %v1340
        %v1369 = vunpack.i.l.s16 %v1354
        %v1370 = vunpack.i.h.s16 %v1354
        %v1371 = vunpack.i.l.s16 %v1356
        %v1372 = vunpack.i.h.s16 %v1356
        %v1373 = vunpack.i.l.s16 %v1358
        %v1374 = vunpack.i.h.s16 %v1358
        %v1375 = vpack.i.b16 %v1359, %v1359
        %v1376 = vlaneseq
        %v1377 = vshrl.u32 %v1376, 7
        %v1378 = vsub.s32 0, %v1377
        %v1379 = vrot.slane %v1375, %v1378
        %v1381 = vsel %vm964, %v1379, 0
        %1383 = vmatprep.subr.bf16.mxu0 0
        %1384 = vmatpush1.bf16.msra.mxu0 %v299
        %1385 = vmatprep.subr.bf16.mxu0 0
        %1386 = vmatpush1.bf16.msra.mxu0 0
        %1387 = vmatprep.subr.bf16.mxu0 0
        %1388 = vmatpush1.bf16.msra.mxu0 0
        %1389 = vmatprep.subr.bf16.mxu0 0
        %1390 = vmatpush1.bf16.msra.mxu0 0
        %1391 = vmatprep.subr.bf16.mxu0 0
        %1392 = vmatpush1.bf16.msra.mxu0 0
        %1393 = vmatprep.subr.bf16.mxu0 0
        %1394 = vmatpush1.bf16.msra.mxu0 0
        %1395 = vmatprep.subr.bf16.mxu0 0
        %1396 = vmatpush1.bf16.msra.mxu0 0
        %1397 = vmatprep.subr.bf16.mxu0 0
        %1398 = vmatpush1.bf16.msra.mxu0 0
        %1399 = vmatprep.subr.bf16.mxu0 0
        %1400 = vmatpush1.bf16.msra.mxu0 0
        %1401 = vmatprep.subr.bf16.mxu0 0
        %1402 = vmatpush1.bf16.msra.mxu0 0
        %1403 = vmatprep.subr.bf16.mxu0 0
        %1404 = vmatpush1.bf16.msra.mxu0 0
        %1405 = vmatprep.subr.bf16.mxu0 0
        %1406 = vmatpush1.bf16.msra.mxu0 0
        %1407 = vmatprep.subr.bf16.mxu0 0
        %1408 = vmatpush1.bf16.msra.mxu0 0
        %1409 = vmatprep.subr.bf16.mxu0 0
        %1410 = vmatpush1.bf16.msra.mxu0 0
        %1411 = vmatprep.subr.bf16.mxu0 0
        %1412 = vmatpush1.bf16.msra.mxu0 0
        %1413 = vmatprep.subr.bf16.mxu0 0
        %1414 = vmatpush1.bf16.msra.mxu0 0
        %1415 = vmatprep.mubr.bf16.mxu0 0
        %1416 = vmatmul.mubr.bf16.gmra.mrb[0].mxu0 %v1381
        %v1417 = vpop.f32.mrb[0].mxu0
        %v1418 = vadd.f32 0.0, %v1417
        %v1419 = vpop.f32.mrb[0].mxu0
        %v1420 = vpop.f32.mrb[0].mxu0
        %v1421 = vpop.f32.mrb[0].mxu0
        %1422 = vdwg.mxu0
        %v1423 = vpack.i.b16 %v1360, %v1360
        %v1424 = vlaneseq
        %v1425 = vshrl.u32 %v1424, 7
        %v1426 = vsub.s32 0, %v1425
        %v1427 = vrot.slane %v1423, %v1426
        %v1429 = vsel %vm964, %v1427, 0
        %1431 = vmatprep.subr.bf16.mxu0 0
        %1432 = vmatpush1.bf16.msra.mxu0 %v300
        %1433 = vmatprep.subr.bf16.mxu0 0
        %1434 = vmatpush1.bf16.msra.mxu0 0
        %1435 = vmatprep.subr.bf16.mxu0 0
        %1436 = vmatpush1.bf16.msra.mxu0 0
        %1437 = vmatprep.subr.bf16.mxu0 0
        %1438 = vmatpush1.bf16.msra.mxu0 0
        %1439 = vmatprep.subr.bf16.mxu0 0
        %1440 = vmatpush1.bf16.msra.mxu0 0
        %1441 = vmatprep.subr.bf16.mxu0 0
        %1442 = vmatpush1.bf16.msra.mxu0 0
        %1443 = vmatprep.subr.bf16.mxu0 0
        %1444 = vmatpush1.bf16.msra.mxu0 0
        %1445 = vmatprep.subr.bf16.mxu0 0
        %1446 = vmatpush1.bf16.msra.mxu0 0
        %1447 = vmatprep.subr.bf16.mxu0 0
        %1448 = vmatpush1.bf16.msra.mxu0 0
        %1449 = vmatprep.subr.bf16.mxu0 0
        %1450 = vmatpush1.bf16.msra.mxu0 0
        %1451 = vmatprep.subr.bf16.mxu0 0
        %1452 = vmatpush1.bf16.msra.mxu0 0
        %1453 = vmatprep.subr.bf16.mxu0 0
        %1454 = vmatpush1.bf16.msra.mxu0 0
        %1455 = vmatprep.subr.bf16.mxu0 0
        %1456 = vmatpush1.bf16.msra.mxu0 0
        %1457 = vmatprep.subr.bf16.mxu0 0
        %1458 = vmatpush1.bf16.msra.mxu0 0
        %1459 = vmatprep.subr.bf16.mxu0 0
        %1460 = vmatpush1.bf16.msra.mxu0 0
        %1461 = vmatprep.subr.bf16.mxu0 0
        %1462 = vmatpush1.bf16.msra.mxu0 0
        %1463 = vmatprep.mubr.bf16.mxu0 0
        %1464 = vmatmul.mubr.bf16.gmra.mrb[0].mxu0 %v1429
        %v1465 = vpop.f32.mrb[0].mxu0
        %v1466 = vadd.f32 0.0, %v1465
        %v1467 = vpop.f32.mrb[0].mxu0
        %v1468 = vpop.f32.mrb[0].mxu0
        %v1469 = vpop.f32.mrb[0].mxu0
        %1470 = vdwg.mxu0
        %v1471 = vpack.i.b16 %v1361, %v1361
        %v1472 = vlaneseq
        %v1473 = vshrl.u32 %v1472, 7
        %v1474 = vsub.s32 0, %v1473
        %v1475 = vrot.slane %v1471, %v1474
        %v1477 = vsel %vm964, %v1475, 0
        %1479 = vmatprep.subr.bf16.mxu0 0
        %1480 = vmatpush1.bf16.msra.mxu0 %v301
        %1481 = vmatprep.subr.bf16.mxu0 0
        %1482 = vmatpush1.bf16.msra.mxu0 0
        %1483 = vmatprep.subr.bf16.mxu0 0
        %1484 = vmatpush1.bf16.msra.mxu0 0
        %1485 = vmatprep.subr.bf16.mxu0 0
        %1486 = vmatpush1.bf16.msra.mxu0 0
        %1487 = vmatprep.subr.bf16.mxu0 0
        %1488 = vmatpush1.bf16.msra.mxu0 0
        %1489 = vmatprep.subr.bf16.mxu0 0
        %1490 = vmatpush1.bf16.msra.mxu0 0
        %1491 = vmatprep.subr.bf16.mxu0 0
        %1492 = vmatpush1.bf16.msra.mxu0 0
        %1493 = vmatprep.subr.bf16.mxu0 0
        %1494 = vmatpush1.bf16.msra.mxu0 0
        %1495 = vmatprep.subr.bf16.mxu0 0
        %1496 = vmatpush1.bf16.msra.mxu0 0
        %1497 = vmatprep.subr.bf16.mxu0 0
        %1498 = vmatpush1.bf16.msra.mxu0 0
        %1499 = vmatprep.subr.bf16.mxu0 0
        %1500 = vmatpush1.bf16.msra.mxu0 0
        %1501 = vmatprep.subr.bf16.mxu0 0
        %1502 = vmatpush1.bf16.msra.mxu0 0
        %1503 = vmatprep.subr.bf16.mxu0 0
        %1504 = vmatpush1.bf16.msra.mxu0 0
        %1505 = vmatprep.subr.bf16.mxu0 0
        %1506 = vmatpush1.bf16.msra.mxu0 0
        %1507 = vmatprep.subr.bf16.mxu0 0
        %1508 = vmatpush1.bf16.msra.mxu0 0
        %1509 = vmatprep.subr.bf16.mxu0 0
        %1510 = vmatpush1.bf16.msra.mxu0 0
        %1511 = vmatprep.mubr.bf16.mxu0 0
        %1512 = vmatmul.mubr.bf16.gmra.mrb[0].mxu0 %v1477
        %v1513 = vpop.f32.mrb[0].mxu0
        %v1514 = vadd.f32 0.0, %v1513
        %v1515 = vpop.f32.mrb[0].mxu0
        %v1516 = vpop.f32.mrb[0].mxu0
        %v1517 = vpop.f32.mrb[0].mxu0
        %1518 = vdwg.mxu0
        %v1519 = vpack.i.b16 %v1362, %v1362
        %v1520 = vlaneseq
        %v1521 = vshrl.u32 %v1520, 7
        %v1522 = vsub.s32 0, %v1521
        %v1523 = vrot.slane %v1519, %v1522
        %v1525 = vsel %vm964, %v1523, 0
        %1527 = vmatprep.subr.bf16.mxu0 0
        %1528 = vmatpush1.bf16.msra.mxu0 %v302
        %1529 = vmatprep.subr.bf16.mxu0 0
        %1530 = vmatpush1.bf16.msra.mxu0 0
        %1531 = vmatprep.subr.bf16.mxu0 0
        %1532 = vmatpush1.bf16.msra.mxu0 0
        %1533 = vmatprep.subr.bf16.mxu0 0
        %1534 = vmatpush1.bf16.msra.mxu0 0
        %1535 = vmatprep.subr.bf16.mxu0 0
        %1536 = vmatpush1.bf16.msra.mxu0 0
        %1537 = vmatprep.subr.bf16.mxu0 0
        %1538 = vmatpush1.bf16.msra.mxu0 0
        %1539 = vmatprep.subr.bf16.mxu0 0
        %1540 = vmatpush1.bf16.msra.mxu0 0
        %1541 = vmatprep.subr.bf16.mxu0 0
        %1542 = vmatpush1.bf16.msra.mxu0 0
        %1543 = vmatprep.subr.bf16.mxu0 0
        %1544 = vmatpush1.bf16.msra.mxu0 0
        %1545 = vmatprep.subr.bf16.mxu0 0
        %1546 = vmatpush1.bf16.msra.mxu0 0
        %1547 = vmatprep.subr.bf16.mxu0 0
        %1548 = vmatpush1.bf16.msra.mxu0 0
        %1549 = vmatprep.subr.bf16.mxu0 0
        %1550 = vmatpush1.bf16.msra.mxu0 0
        %1551 = vmatprep.subr.bf16.mxu0 0
        %1552 = vmatpush1.bf16.msra.mxu0 0
        %1553 = vmatprep.subr.bf16.mxu0 0
        %1554 = vmatpush1.bf16.msra.mxu0 0
        %1555 = vmatprep.subr.bf16.mxu0 0
        %1556 = vmatpush1.bf16.msra.mxu0 0
        %1557 = vmatprep.subr.bf16.mxu0 0
        %1558 = vmatpush1.bf16.msra.mxu0 0
        %1559 = vmatprep.mubr.bf16.mxu0 0
        %1560 = vmatmul.mubr.bf16.gmra.mrb[0].mxu0 %v1525
        %v1561 = vpop.f32.mrb[0].mxu0
        %v1562 = vadd.f32 0.0, %v1561
        %v1563 = vpop.f32.mrb[0].mxu0
        %v1564 = vpop.f32.mrb[0].mxu0
        %v1565 = vpop.f32.mrb[0].mxu0
        %1566 = vdwg.mxu0
        %v1567 = vpack.i.b16 %v1363, %v1363
        %v1568 = vlaneseq
        %v1569 = vshrl.u32 %v1568, 7
        %v1570 = vsub.s32 0, %v1569
        %v1571 = vrot.slane %v1567, %v1570
        %v1573 = vsel %vm964, %v1571, 0
        %1575 = vmatprep.subr.bf16.mxu0 0
        %1576 = vmatpush1.bf16.msra.mxu0 %v303
        %1577 = vmatprep.subr.bf16.mxu0 0
        %1578 = vmatpush1.bf16.msra.mxu0 0
        %1579 = vmatprep.subr.bf16.mxu0 0
        %1580 = vmatpush1.bf16.msra.mxu0 0
        %1581 = vmatprep.subr.bf16.mxu0 0
        %1582 = vmatpush1.bf16.msra.mxu0 0
        %1583 = vmatprep.subr.bf16.mxu0 0
        %1584 = vmatpush1.bf16.msra.mxu0 0
        %1585 = vmatprep.subr.bf16.mxu0 0
        %1586 = vmatpush1.bf16.msra.mxu0 0
        %1587 = vmatprep.subr.bf16.mxu0 0
        %1588 = vmatpush1.bf16.msra.mxu0 0
        %1589 = vmatprep.subr.bf16.mxu0 0
        %1590 = vmatpush1.bf16.msra.mxu0 0
        %1591 = vmatprep.subr.bf16.mxu0 0
        %1592 = vmatpush1.bf16.msra.mxu0 0
        %1593 = vmatprep.subr.bf16.mxu0 0
        %1594 = vmatpush1.bf16.msra.mxu0 0
        %1595 = vmatprep.subr.bf16.mxu0 0
        %1596 = vmatpush1.bf16.msra.mxu0 0
        %1597 = vmatprep.subr.bf16.mxu0 0
        %1598 = vmatpush1.bf16.msra.mxu0 0
        %1599 = vmatprep.subr.bf16.mxu0 0
        %1600 = vmatpush1.bf16.msra.mxu0 0
        %1601 = vmatprep.subr.bf16.mxu0 0
        %1602 = vmatpush1.bf16.msra.mxu0 0
        %1603 = vmatprep.subr.bf16.mxu0 0
        %1604 = vmatpush1.bf16.msra.mxu0 0
        %1605 = vmatprep.subr.bf16.mxu0 0
        %1606 = vmatpush1.bf16.msra.mxu0 0
        %1607 = vmatprep.mubr.bf16.mxu0 0
        %1608 = vmatmul.mubr.bf16.gmra.mrb[0].mxu0 %v1573
        %v1609 = vpop.f32.mrb[0].mxu0
        %v1610 = vadd.f32 0.0, %v1609
        %v1611 = vpop.f32.mrb[0].mxu0
        %v1612 = vpop.f32.mrb[0].mxu0
        %v1613 = vpop.f32.mrb[0].mxu0
        %1614 = vdwg.mxu0
        %v1615 = vpack.i.b16 %v1364, %v1364
        %v1616 = vlaneseq
        %v1617 = vshrl.u32 %v1616, 7
        %v1618 = vsub.s32 0, %v1617
        %v1619 = vrot.slane %v1615, %v1618
        %v1621 = vsel %vm964, %v1619, 0
        %1623 = vmatprep.subr.bf16.mxu0 0
        %1624 = vmatpush1.bf16.msra.mxu0 %v304
        %1625 = vmatprep.subr.bf16.mxu0 0
        %1626 = vmatpush1.bf16.msra.mxu0 0
        %1627 = vmatprep.subr.bf16.mxu0 0
        %1628 = vmatpush1.bf16.msra.mxu0 0
        %1629 = vmatprep.subr.bf16.mxu0 0
        %1630 = vmatpush1.bf16.msra.mxu0 0
        %1631 = vmatprep.subr.bf16.mxu0 0
        %1632 = vmatpush1.bf16.msra.mxu0 0
        %1633 = vmatprep.subr.bf16.mxu0 0
        %1634 = vmatpush1.bf16.msra.mxu0 0
        %1635 = vmatprep.subr.bf16.mxu0 0
        %1636 = vmatpush1.bf16.msra.mxu0 0
        %1637 = vmatprep.subr.bf16.mxu0 0
        %1638 = vmatpush1.bf16.msra.mxu0 0
        %1639 = vmatprep.subr.bf16.mxu0 0
        %1640 = vmatpush1.bf16.msra.mxu0 0
        %1641 = vmatprep.subr.bf16.mxu0 0
        %1642 = vmatpush1.bf16.msra.mxu0 0
        %1643 = vmatprep.subr.bf16.mxu0 0
        %1644 = vmatpush1.bf16.msra.mxu0 0
        %1645 = vmatprep.subr.bf16.mxu0 0
        %1646 = vmatpush1.bf16.msra.mxu0 0
        %1647 = vmatprep.subr.bf16.mxu0 0
        %1648 = vmatpush1.bf16.msra.mxu0 0
        %1649 = vmatprep.subr.bf16.mxu0 0
        %1650 = vmatpush1.bf16.msra.mxu0 0
        %1651 = vmatprep.subr.bf16.mxu0 0
        %1652 = vmatpush1.bf16.msra.mxu0 0
        %1653 = vmatprep.subr.bf16.mxu0 0
        %1654 = vmatpush1.bf16.msra.mxu0 0
        %1655 = vmatprep.mubr.bf16.mxu0 0
        %1656 = vmatmul.mubr.bf16.gmra.mrb[0].mxu0 %v1621
        %v1657 = vpop.f32.mrb[0].mxu0
        %v1658 = vadd.f32 0.0, %v1657
        %v1659 = vpop.f32.mrb[0].mxu0
        %v1660 = vpop.f32.mrb[0].mxu0
        %v1661 = vpop.f32.mrb[0].mxu0
        %1662 = vdwg.mxu0
        %v1663 = vpack.i.b16 %v1365, %v1365
        %v1664 = vlaneseq
        %v1665 = vshrl.u32 %v1664, 7
        %v1666 = vsub.s32 0, %v1665
        %v1667 = vrot.slane %v1663, %v1666
        %v1669 = vsel %vm964, %v1667, 0
        %1671 = vmatprep.subr.bf16.mxu0 0
        %1672 = vmatpush1.bf16.msra.mxu0 %v305
        %1673 = vmatprep.subr.bf16.mxu0 0
        %1674 = vmatpush1.bf16.msra.mxu0 0
        %1675 = vmatprep.subr.bf16.mxu0 0
        %1676 = vmatpush1.bf16.msra.mxu0 0
        %1677 = vmatprep.subr.bf16.mxu0 0
        %1678 = vmatpush1.bf16.msra.mxu0 0
        %1679 = vmatprep.subr.bf16.mxu0 0
        %1680 = vmatpush1.bf16.msra.mxu0 0
        %1681 = vmatprep.subr.bf16.mxu0 0
        %1682 = vmatpush1.bf16.msra.mxu0 0
        %1683 = vmatprep.subr.bf16.mxu0 0
        %1684 = vmatpush1.bf16.msra.mxu0 0
        %1685 = vmatprep.subr.bf16.mxu0 0
        %1686 = vmatpush1.bf16.msra.mxu0 0
        %1687 = vmatprep.subr.bf16.mxu0 0
        %1688 = vmatpush1.bf16.msra.mxu0 0
        %1689 = vmatprep.subr.bf16.mxu0 0
        %1690 = vmatpush1.bf16.msra.mxu0 0
        %1691 = vmatprep.subr.bf16.mxu0 0
        %1692 = vmatpush1.bf16.msra.mxu0 0
        %1693 = vmatprep.subr.bf16.mxu0 0
        %1694 = vmatpush1.bf16.msra.mxu0 0
        %1695 = vmatprep.subr.bf16.mxu0 0
        %1696 = vmatpush1.bf16.msra.mxu0 0
        %1697 = vmatprep.subr.bf16.mxu0 0
        %1698 = vmatpush1.bf16.msra.mxu0 0
        %1699 = vmatprep.subr.bf16.mxu0 0
        %1700 = vmatpush1.bf16.msra.mxu0 0
        %1701 = vmatprep.subr.bf16.mxu0 0
        %1702 = vmatpush1.bf16.msra.mxu0 0
        %1703 = vmatprep.mubr.bf16.mxu0 0
        %1704 = vmatmul.mubr.bf16.gmra.mrb[0].mxu0 %v1669
        %v1705 = vpop.f32.mrb[0].mxu0
        %v1706 = vadd.f32 0.0, %v1705
        %v1707 = vpop.f32.mrb[0].mxu0
        %v1708 = vpop.f32.mrb[0].mxu0
        %v1709 = vpop.f32.mrb[0].mxu0
        %1710 = vdwg.mxu0
        %v1711 = vpack.i.b16 %v1366, %v1366
        %v1712 = vlaneseq
        %v1713 = vshrl.u32 %v1712, 7
        %v1714 = vsub.s32 0, %v1713
        %v1715 = vrot.slane %v1711, %v1714
        %v1717 = vsel %vm964, %v1715, 0
        %1719 = vmatprep.subr.bf16.mxu0 0
        %1720 = vmatpush1.bf16.msra.mxu0 %v306
        %1721 = vmatprep.subr.bf16.mxu0 0
        %1722 = vmatpush1.bf16.msra.mxu0 0
        %1723 = vmatprep.subr.bf16.mxu0 0
        %1724 = vmatpush1.bf16.msra.mxu0 0
        %1725 = vmatprep.subr.bf16.mxu0 0
        %1726 = vmatpush1.bf16.msra.mxu0 0
        %1727 = vmatprep.subr.bf16.mxu0 0
        %1728 = vmatpush1.bf16.msra.mxu0 0
        %1729 = vmatprep.subr.bf16.mxu0 0
        %1730 = vmatpush1.bf16.msra.mxu0 0
        %1731 = vmatprep.subr.bf16.mxu0 0
        %1732 = vmatpush1.bf16.msra.mxu0 0
        %1733 = vmatprep.subr.bf16.mxu0 0
        %1734 = vmatpush1.bf16.msra.mxu0 0
        %1735 = vmatprep.subr.bf16.mxu0 0
        %1736 = vmatpush1.bf16.msra.mxu0 0
        %1737 = vmatprep.subr.bf16.mxu0 0
        %1738 = vmatpush1.bf16.msra.mxu0 0
        %1739 = vmatprep.subr.bf16.mxu0 0
        %1740 = vmatpush1.bf16.msra.mxu0 0
        %1741 = vmatprep.subr.bf16.mxu0 0
        %1742 = vmatpush1.bf16.msra.mxu0 0
        %1743 = vmatprep.subr.bf16.mxu0 0
        %1744 = vmatpush1.bf16.msra.mxu0 0
        %1745 = vmatprep.subr.bf16.mxu0 0
        %1746 = vmatpush1.bf16.msra.mxu0 0
        %1747 = vmatprep.subr.bf16.mxu0 0
        %1748 = vmatpush1.bf16.msra.mxu0 0
        %1749 = vmatprep.subr.bf16.mxu0 0
        %1750 = vmatpush1.bf16.msra.mxu0 0
        %1751 = vmatprep.mubr.bf16.mxu0 0
        %1752 = vmatmul.mubr.bf16.gmra.mrb[0].mxu0 %v1717
        %v1753 = vpop.f32.mrb[0].mxu0
        %v1754 = vadd.f32 0.0, %v1753
        %v1755 = vpop.f32.mrb[0].mxu0
        %v1756 = vpop.f32.mrb[0].mxu0
        %v1757 = vpop.f32.mrb[0].mxu0
        %1758 = vdwg.mxu0
        %v1759 = vpack.i.b16 %v1367, %v1367
        %v1760 = vlaneseq
        %v1761 = vshrl.u32 %v1760, 7
        %v1762 = vsub.s32 0, %v1761
        %v1763 = vrot.slane %v1759, %v1762
        %v1765 = vsel %vm964, %v1763, 0
        %1767 = vmatprep.subr.bf16.mxu0 0
        %1768 = vmatpush1.bf16.msra.mxu0 %v307
        %1769 = vmatprep.subr.bf16.mxu0 0
        %1770 = vmatpush1.bf16.msra.mxu0 0
        %1771 = vmatprep.subr.bf16.mxu0 0
        %1772 = vmatpush1.bf16.msra.mxu0 0
        %1773 = vmatprep.subr.bf16.mxu0 0
        %1774 = vmatpush1.bf16.msra.mxu0 0
        %1775 = vmatprep.subr.bf16.mxu0 0
        %1776 = vmatpush1.bf16.msra.mxu0 0
        %1777 = vmatprep.subr.bf16.mxu0 0
        %1778 = vmatpush1.bf16.msra.mxu0 0
        %1779 = vmatprep.subr.bf16.mxu0 0
        %1780 = vmatpush1.bf16.msra.mxu0 0
        %1781 = vmatprep.subr.bf16.mxu0 0
        %1782 = vmatpush1.bf16.msra.mxu0 0
        %1783 = vmatprep.subr.bf16.mxu0 0
        %1784 = vmatpush1.bf16.msra.mxu0 0
        %1785 = vmatprep.subr.bf16.mxu0 0
        %1786 = vmatpush1.bf16.msra.mxu0 0
        %1787 = vmatprep.subr.bf16.mxu0 0
        %1788 = vmatpush1.bf16.msra.mxu0 0
        %1789 = vmatprep.subr.bf16.mxu0 0
        %1790 = vmatpush1.bf16.msra.mxu0 0
        %1791 = vmatprep.subr.bf16.mxu0 0
        %1792 = vmatpush1.bf16.msra.mxu0 0
        %1793 = vmatprep.subr.bf16.mxu0 0
        %1794 = vmatpush1.bf16.msra.mxu0 0
        %1795 = vmatprep.subr.bf16.mxu0 0
        %1796 = vmatpush1.bf16.msra.mxu0 0
        %1797 = vmatprep.subr.bf16.mxu0 0
        %1798 = vmatpush1.bf16.msra.mxu0 0
        %1799 = vmatprep.mubr.bf16.mxu0 0
        %1800 = vmatmul.mubr.bf16.gmra.mrb[0].mxu0 %v1765
        %v1801 = vpop.f32.mrb[0].mxu0
        %v1802 = vadd.f32 0.0, %v1801
        %v1803 = vpop.f32.mrb[0].mxu0
        %v1804 = vpop.f32.mrb[0].mxu0
        %v1805 = vpop.f32.mrb[0].mxu0
        %1806 = vdwg.mxu0
        %v1807 = vpack.i.b16 %v1368, %v1368
        %v1808 = vlaneseq
        %v1809 = vshrl.u32 %v1808, 7
        %v1810 = vsub.s32 0, %v1809
        %v1811 = vrot.slane %v1807, %v1810
        %v1813 = vsel %vm964, %v1811, 0
        %1815 = vmatprep.subr.bf16.mxu0 0
        %1816 = vmatpush1.bf16.msra.mxu0 %v308
        %1817 = vmatprep.subr.bf16.mxu0 0
        %1818 = vmatpush1.bf16.msra.mxu0 0
        %1819 = vmatprep.subr.bf16.mxu0 0
        %1820 = vmatpush1.bf16.msra.mxu0 0
        %1821 = vmatprep.subr.bf16.mxu0 0
        %1822 = vmatpush1.bf16.msra.mxu0 0
        %1823 = vmatprep.subr.bf16.mxu0 0
        %1824 = vmatpush1.bf16.msra.mxu0 0
        %1825 = vmatprep.subr.bf16.mxu0 0
        %1826 = vmatpush1.bf16.msra.mxu0 0
        %1827 = vmatprep.subr.bf16.mxu0 0
        %1828 = vmatpush1.bf16.msra.mxu0 0
        %1829 = vmatprep.subr.bf16.mxu0 0
        %1830 = vmatpush1.bf16.msra.mxu0 0
        %1831 = vmatprep.subr.bf16.mxu0 0
        %1832 = vmatpush1.bf16.msra.mxu0 0
        %1833 = vmatprep.subr.bf16.mxu0 0
        %1834 = vmatpush1.bf16.msra.mxu0 0
        %1835 = vmatprep.subr.bf16.mxu0 0
        %1836 = vmatpush1.bf16.msra.mxu0 0
        %1837 = vmatprep.subr.bf16.mxu0 0
        %1838 = vmatpush1.bf16.msra.mxu0 0
        %1839 = vmatprep.subr.bf16.mxu0 0
        %1840 = vmatpush1.bf16.msra.mxu0 0
        %1841 = vmatprep.subr.bf16.mxu0 0
        %1842 = vmatpush1.bf16.msra.mxu0 0
        %1843 = vmatprep.subr.bf16.mxu0 0
        %1844 = vmatpush1.bf16.msra.mxu0 0
        %1845 = vmatprep.subr.bf16.mxu0 0
        %1846 = vmatpush1.bf16.msra.mxu0 0
        %1847 = vmatprep.mubr.bf16.mxu0 0
        %1848 = vmatmul.mubr.bf16.gmra.mrb[0].mxu0 %v1813
        %v1849 = vpop.f32.mrb[0].mxu0
        %v1850 = vadd.f32 0.0, %v1849
        %v1851 = vpop.f32.mrb[0].mxu0
        %v1852 = vpop.f32.mrb[0].mxu0
        %v1853 = vpop.f32.mrb[0].mxu0
        %1854 = vdwg.mxu0
        %v1855 = vpack.i.b16 %v1369, %v1369
        %v1856 = vlaneseq
        %v1857 = vshrl.u32 %v1856, 7
        %v1858 = vsub.s32 0, %v1857
        %v1859 = vrot.slane %v1855, %v1858
        %v1861 = vsel %vm964, %v1859, 0
        %1863 = vmatprep.subr.bf16.mxu0 0
        %1864 = vmatpush1.bf16.msra.mxu0 %v309
        %1865 = vmatprep.subr.bf16.mxu0 0
        %1866 = vmatpush1.bf16.msra.mxu0 0
        %1867 = vmatprep.subr.bf16.mxu0 0
        %1868 = vmatpush1.bf16.msra.mxu0 0
        %1869 = vmatprep.subr.bf16.mxu0 0
        %1870 = vmatpush1.bf16.msra.mxu0 0
        %1871 = vmatprep.subr.bf16.mxu0 0
        %1872 = vmatpush1.bf16.msra.mxu0 0
        %1873 = vmatprep.subr.bf16.mxu0 0
        %1874 = vmatpush1.bf16.msra.mxu0 0
        %1875 = vmatprep.subr.bf16.mxu0 0
        %1876 = vmatpush1.bf16.msra.mxu0 0
        %1877 = vmatprep.subr.bf16.mxu0 0
        %1878 = vmatpush1.bf16.msra.mxu0 0
        %1879 = vmatprep.subr.bf16.mxu0 0
        %1880 = vmatpush1.bf16.msra.mxu0 0
        %1881 = vmatprep.subr.bf16.mxu0 0
        %1882 = vmatpush1.bf16.msra.mxu0 0
        %1883 = vmatprep.subr.bf16.mxu0 0
        %1884 = vmatpush1.bf16.msra.mxu0 0
        %1885 = vmatprep.subr.bf16.mxu0 0
        %1886 = vmatpush1.bf16.msra.mxu0 0
        %1887 = vmatprep.subr.bf16.mxu0 0
        %1888 = vmatpush1.bf16.msra.mxu0 0
        %1889 = vmatprep.subr.bf16.mxu0 0
        %1890 = vmatpush1.bf16.msra.mxu0 0
        %1891 = vmatprep.subr.bf16.mxu0 0
        %1892 = vmatpush1.bf16.msra.mxu0 0
        %1893 = vmatprep.subr.bf16.mxu0 0
        %1894 = vmatpush1.bf16.msra.mxu0 0
        %1895 = vmatprep.mubr.bf16.mxu0 0
        %1896 = vmatmul.mubr.bf16.gmra.mrb[0].mxu0 %v1861
        %v1897 = vpop.f32.mrb[0].mxu0
        %v1898 = vadd.f32 0.0, %v1897
        %v1899 = vpop.f32.mrb[0].mxu0
        %v1900 = vpop.f32.mrb[0].mxu0
        %v1901 = vpop.f32.mrb[0].mxu0
        %1902 = vdwg.mxu0
        %v1903 = vpack.i.b16 %v1370, %v1370
        %v1904 = vlaneseq
        %v1905 = vshrl.u32 %v1904, 7
        %v1906 = vsub.s32 0, %v1905
        %v1907 = vrot.slane %v1903, %v1906
        %v1909 = vsel %vm964, %v1907, 0
        %1911 = vmatprep.subr.bf16.mxu0 0
        %1912 = vmatpush1.bf16.msra.mxu0 %v310
        %1913 = vmatprep.subr.bf16.mxu0 0
        %1914 = vmatpush1.bf16.msra.mxu0 0
        %1915 = vmatprep.subr.bf16.mxu0 0
        %1916 = vmatpush1.bf16.msra.mxu0 0
        %1917 = vmatprep.subr.bf16.mxu0 0
        %1918 = vmatpush1.bf16.msra.mxu0 0
        %1919 = vmatprep.subr.bf16.mxu0 0
        %1920 = vmatpush1.bf16.msra.mxu0 0
        %1921 = vmatprep.subr.bf16.mxu0 0
        %1922 = vmatpush1.bf16.msra.mxu0 0
        %1923 = vmatprep.subr.bf16.mxu0 0
        %1924 = vmatpush1.bf16.msra.mxu0 0
        %1925 = vmatprep.subr.bf16.mxu0 0
        %1926 = vmatpush1.bf16.msra.mxu0 0
        %1927 = vmatprep.subr.bf16.mxu0 0
        %1928 = vmatpush1.bf16.msra.mxu0 0
        %1929 = vmatprep.subr.bf16.mxu0 0
        %1930 = vmatpush1.bf16.msra.mxu0 0
        %1931 = vmatprep.subr.bf16.mxu0 0
        %1932 = vmatpush1.bf16.msra.mxu0 0
        %1933 = vmatprep.subr.bf16.mxu0 0
        %1934 = vmatpush1.bf16.msra.mxu0 0
        %1935 = vmatprep.subr.bf16.mxu0 0
        %1936 = vmatpush1.bf16.msra.mxu0 0
        %1937 = vmatprep.subr.bf16.mxu0 0
        %1938 = vmatpush1.bf16.msra.mxu0 0
        %1939 = vmatprep.subr.bf16.mxu0 0
        %1940 = vmatpush1.bf16.msra.mxu0 0
        %1941 = vmatprep.subr.bf16.mxu0 0
        %1942 = vmatpush1.bf16.msra.mxu0 0
        %1943 = vmatprep.mubr.bf16.mxu0 0
        %1944 = vmatmul.mubr.bf16.gmra.mrb[0].mxu0 %v1909
        %v1945 = vpop.f32.mrb[0].mxu0
        %v1946 = vadd.f32 0.0, %v1945
        %v1947 = vpop.f32.mrb[0].mxu0
        %v1948 = vpop.f32.mrb[0].mxu0
        %v1949 = vpop.f32.mrb[0].mxu0
        %1950 = vdwg.mxu0
        %v1951 = vpack.i.b16 %v1371, %v1371
        %v1952 = vlaneseq
        %v1953 = vshrl.u32 %v1952, 7
        %v1954 = vsub.s32 0, %v1953
        %v1955 = vrot.slane %v1951, %v1954
        %v1957 = vsel %vm964, %v1955, 0
        %1959 = vmatprep.subr.bf16.mxu0 0
        %1960 = vmatpush1.bf16.msra.mxu0 %v311
        %1961 = vmatprep.subr.bf16.mxu0 0
        %1962 = vmatpush1.bf16.msra.mxu0 0
        %1963 = vmatprep.subr.bf16.mxu0 0
        %1964 = vmatpush1.bf16.msra.mxu0 0
        %1965 = vmatprep.subr.bf16.mxu0 0
        %1966 = vmatpush1.bf16.msra.mxu0 0
        %1967 = vmatprep.subr.bf16.mxu0 0
        %1968 = vmatpush1.bf16.msra.mxu0 0
        %1969 = vmatprep.subr.bf16.mxu0 0
        %1970 = vmatpush1.bf16.msra.mxu0 0
        %1971 = vmatprep.subr.bf16.mxu0 0
        %1972 = vmatpush1.bf16.msra.mxu0 0
        %1973 = vmatprep.subr.bf16.mxu0 0
        %1974 = vmatpush1.bf16.msra.mxu0 0
        %1975 = vmatprep.subr.bf16.mxu0 0
        %1976 = vmatpush1.bf16.msra.mxu0 0
        %1977 = vmatprep.subr.bf16.mxu0 0
        %1978 = vmatpush1.bf16.msra.mxu0 0
        %1979 = vmatprep.subr.bf16.mxu0 0
        %1980 = vmatpush1.bf16.msra.mxu0 0
        %1981 = vmatprep.subr.bf16.mxu0 0
        %1982 = vmatpush1.bf16.msra.mxu0 0
        %1983 = vmatprep.subr.bf16.mxu0 0
        %1984 = vmatpush1.bf16.msra.mxu0 0
        %1985 = vmatprep.subr.bf16.mxu0 0
        %1986 = vmatpush1.bf16.msra.mxu0 0
        %1987 = vmatprep.subr.bf16.mxu0 0
        %1988 = vmatpush1.bf16.msra.mxu0 0
        %1989 = vmatprep.subr.bf16.mxu0 0
        %1990 = vmatpush1.bf16.msra.mxu0 0
        %1991 = vmatprep.mubr.bf16.mxu0 0
        %1992 = vmatmul.mubr.bf16.gmra.mrb[0].mxu0 %v1957
        %v1993 = vpop.f32.mrb[0].mxu0
        %v1994 = vadd.f32 0.0, %v1993
        %v1995 = vpop.f32.mrb[0].mxu0
        %v1996 = vpop.f32.mrb[0].mxu0
        %v1997 = vpop.f32.mrb[0].mxu0
        %1998 = vdwg.mxu0
        %v1999 = vpack.i.b16 %v1372, %v1372
        %v2000 = vlaneseq
        %v2001 = vshrl.u32 %v2000, 7
        %v2002 = vsub.s32 0, %v2001
        %v2003 = vrot.slane %v1999, %v2002
        %v2005 = vsel %vm964, %v2003, 0
        %2007 = vmatprep.subr.bf16.mxu0 0
        %2008 = vmatpush1.bf16.msra.mxu0 %v312
        %2009 = vmatprep.subr.bf16.mxu0 0
        %2010 = vmatpush1.bf16.msra.mxu0 0
        %2011 = vmatprep.subr.bf16.mxu0 0
        %2012 = vmatpush1.bf16.msra.mxu0 0
        %2013 = vmatprep.subr.bf16.mxu0 0
        %2014 = vmatpush1.bf16.msra.mxu0 0
        %2015 = vmatprep.subr.bf16.mxu0 0
        %2016 = vmatpush1.bf16.msra.mxu0 0
        %2017 = vmatprep.subr.bf16.mxu0 0
        %2018 = vmatpush1.bf16.msra.mxu0 0
        %2019 = vmatprep.subr.bf16.mxu0 0
        %2020 = vmatpush1.bf16.msra.mxu0 0
        %2021 = vmatprep.subr.bf16.mxu0 0
        %2022 = vmatpush1.bf16.msra.mxu0 0
        %2023 = vmatprep.subr.bf16.mxu0 0
        %2024 = vmatpush1.bf16.msra.mxu0 0
        %2025 = vmatprep.subr.bf16.mxu0 0
        %2026 = vmatpush1.bf16.msra.mxu0 0
        %2027 = vmatprep.subr.bf16.mxu0 0
        %2028 = vmatpush1.bf16.msra.mxu0 0
        %2029 = vmatprep.subr.bf16.mxu0 0
        %2030 = vmatpush1.bf16.msra.mxu0 0
        %2031 = vmatprep.subr.bf16.mxu0 0
        %2032 = vmatpush1.bf16.msra.mxu0 0
        %2033 = vmatprep.subr.bf16.mxu0 0
        %2034 = vmatpush1.bf16.msra.mxu0 0
        %2035 = vmatprep.subr.bf16.mxu0 0
        %2036 = vmatpush1.bf16.msra.mxu0 0
        %2037 = vmatprep.subr.bf16.mxu0 0
        %2038 = vmatpush1.bf16.msra.mxu0 0
        %2039 = vmatprep.mubr.bf16.mxu0 0
        %2040 = vmatmul.mubr.bf16.gmra.mrb[0].mxu0 %v2005
        %v2041 = vpop.f32.mrb[0].mxu0
        %v2042 = vadd.f32 0.0, %v2041
        %v2043 = vpop.f32.mrb[0].mxu0
        %v2044 = vpop.f32.mrb[0].mxu0
        %v2045 = vpop.f32.mrb[0].mxu0
        %2046 = vdwg.mxu0
        %v2047 = vpack.i.b16 %v1373, %v1373
        %v2048 = vlaneseq
        %v2049 = vshrl.u32 %v2048, 7
        %v2050 = vsub.s32 0, %v2049
        %v2051 = vrot.slane %v2047, %v2050
        %v2053 = vsel %vm964, %v2051, 0
        %2055 = vmatprep.subr.bf16.mxu0 0
        %2056 = vmatpush1.bf16.msra.mxu0 %v313
        %2057 = vmatprep.subr.bf16.mxu0 0
        %2058 = vmatpush1.bf16.msra.mxu0 0
        %2059 = vmatprep.subr.bf16.mxu0 0
        %2060 = vmatpush1.bf16.msra.mxu0 0
        %2061 = vmatprep.subr.bf16.mxu0 0
        %2062 = vmatpush1.bf16.msra.mxu0 0
        %2063 = vmatprep.subr.bf16.mxu0 0
        %2064 = vmatpush1.bf16.msra.mxu0 0
        %2065 = vmatprep.subr.bf16.mxu0 0
        %2066 = vmatpush1.bf16.msra.mxu0 0
        %2067 = vmatprep.subr.bf16.mxu0 0
        %2068 = vmatpush1.bf16.msra.mxu0 0
        %2069 = vmatprep.subr.bf16.mxu0 0
        %2070 = vmatpush1.bf16.msra.mxu0 0
        %2071 = vmatprep.subr.bf16.mxu0 0
        %2072 = vmatpush1.bf16.msra.mxu0 0
        %2073 = vmatprep.subr.bf16.mxu0 0
        %2074 = vmatpush1.bf16.msra.mxu0 0
        %2075 = vmatprep.subr.bf16.mxu0 0
        %2076 = vmatpush1.bf16.msra.mxu0 0
        %2077 = vmatprep.subr.bf16.mxu0 0
        %2078 = vmatpush1.bf16.msra.mxu0 0
        %2079 = vmatprep.subr.bf16.mxu0 0
        %2080 = vmatpush1.bf16.msra.mxu0 0
        %2081 = vmatprep.subr.bf16.mxu0 0
        %2082 = vmatpush1.bf16.msra.mxu0 0
        %2083 = vmatprep.subr.bf16.mxu0 0
        %2084 = vmatpush1.bf16.msra.mxu0 0
        %2085 = vmatprep.subr.bf16.mxu0 0
        %2086 = vmatpush1.bf16.msra.mxu0 0
        %2087 = vmatprep.mubr.bf16.mxu0 0
        %2088 = vmatmul.mubr.bf16.gmra.mrb[0].mxu0 %v2053
        %v2089 = vpop.f32.mrb[0].mxu0
        %v2090 = vadd.f32 0.0, %v2089
        %v2091 = vpop.f32.mrb[0].mxu0
        %v2092 = vpop.f32.mrb[0].mxu0
        %v2093 = vpop.f32.mrb[0].mxu0
        %2094 = vdwg.mxu0
        %v2095 = vpack.i.b16 %v1374, %v1374
        %v2096 = vlaneseq
        %v2097 = vshrl.u32 %v2096, 7
        %v2098 = vsub.s32 0, %v2097
        %v2099 = vrot.slane %v2095, %v2098
        %v2101 = vsel %vm964, %v2099, 0
        %2103 = vmatprep.subr.bf16.mxu0 0
        %2104 = vmatpush1.bf16.msra.mxu0 %v314
        %2105 = vmatprep.subr.bf16.mxu0 0
        %2106 = vmatpush1.bf16.msra.mxu0 0
        %2107 = vmatprep.subr.bf16.mxu0 0
        %2108 = vmatpush1.bf16.msra.mxu0 0
        %2109 = vmatprep.subr.bf16.mxu0 0
        %2110 = vmatpush1.bf16.msra.mxu0 0
        %2111 = vmatprep.subr.bf16.mxu0 0
        %2112 = vmatpush1.bf16.msra.mxu0 0
        %2113 = vmatprep.subr.bf16.mxu0 0
        %2114 = vmatpush1.bf16.msra.mxu0 0
        %2115 = vmatprep.subr.bf16.mxu0 0
        %2116 = vmatpush1.bf16.msra.mxu0 0
        %2117 = vmatprep.subr.bf16.mxu0 0
        %2118 = vmatpush1.bf16.msra.mxu0 0
        %2119 = vmatprep.subr.bf16.mxu0 0
        %2120 = vmatpush1.bf16.msra.mxu0 0
        %2121 = vmatprep.subr.bf16.mxu0 0
        %2122 = vmatpush1.bf16.msra.mxu0 0
        %2123 = vmatprep.subr.bf16.mxu0 0
        %2124 = vmatpush1.bf16.msra.mxu0 0
        %2125 = vmatprep.subr.bf16.mxu0 0
        %2126 = vmatpush1.bf16.msra.mxu0 0
        %2127 = vmatprep.subr.bf16.mxu0 0
        %2128 = vmatpush1.bf16.msra.mxu0 0
        %2129 = vmatprep.subr.bf16.mxu0 0
        %2130 = vmatpush1.bf16.msra.mxu0 0
        %2131 = vmatprep.subr.bf16.mxu0 0
        %2132 = vmatpush1.bf16.msra.mxu0 0
        %2133 = vmatprep.subr.bf16.mxu0 0
        %2134 = vmatpush1.bf16.msra.mxu0 0
        %2135 = vmatprep.mubr.bf16.mxu0 0
        %2136 = vmatmul.mubr.bf16.gmra.mrb[0].mxu0 %v2101
        %v2137 = vpop.f32.mrb[0].mxu0
        %v2138 = vadd.f32 0.0, %v2137
        %v2139 = vpop.f32.mrb[0].mxu0
        %v2140 = vpop.f32.mrb[0].mxu0
        %v2141 = vpop.f32.mrb[0].mxu0
        %2142 = vdwg.mxu0
        %v2143 = vpack.c.bf16 %v1418, %v1418
        %v2144 = vpack.c.bf16 %v1466, %v1466
        %v2145 = vpack.c.bf16 %v1514, %v1514
        %v2146 = vpack.c.bf16 %v1562, %v1562
        %v2147 = vpack.c.bf16 %v1610, %v1610
        %v2148 = vpack.c.bf16 %v1658, %v1658
        %v2149 = vpack.c.bf16 %v1706, %v1706
        %v2150 = vpack.c.bf16 %v1754, %v1754
        %v2151 = vpack.c.bf16 %v1802, %v1802
        %v2152 = vpack.c.bf16 %v1850, %v1850
        %v2153 = vpack.c.bf16 %v1898, %v1898
        %v2154 = vpack.c.bf16 %v1946, %v1946
        %v2155 = vpack.c.bf16 %v1994, %v1994
        %v2156 = vpack.c.bf16 %v2042, %v2042
        %v2157 = vpack.c.bf16 %v2090, %v2090
        %v2158 = vpack.c.bf16 %v2138, %v2138
        %v2159 = vpack.i.b16 %v581, %v580
        %v2160 = vpack.i.b16 %v583, %v582
        %v2162 = vcombine.low %v2159, %v2160
        %v2164 = vunpack.c.l.s4 1966171168
        %v2165 = vunpack.c.0.s8 %v2164
        %v2166 = vlaneseq
        %v2167 = vshrl.u32 %v2166, 7
        %v2168 = vsub.s32 %v2165, %v2167
        %v2169 = vrot.slane %v2162, %v2168
        %v2171 = vunpack.c.l.s4 1966171168
        %v2172 = vunpack.c.0.s8 %v2171
        %v2173 = vlaneseq
        %v2174 = vshrl.u32 %v2173, 7
        %v2175 = vsub.s32 %v2172, %v2174
        %v2176 = vrot.slane %v584, %v2175
        %v2177 = vcombine.low %v2169, %v2176
        %v2179 = vunpack.c.l.s4 1966171168
        %v2180 = vunpack.c.0.s8 %v2179
        %v2181 = vlaneseq
        %v2182 = vshrl.u32 %v2181, 7
        %v2183 = vsub.s32 %v2180, %v2182
        %v2184 = vrot.slane %v2177, %v2183
        %v2186 = vsel %vm683, %v2143, 0
        %v2189 = vsel %vm683, %v2184, 0
        %2191 = vmatprep.subr.bf16.mxu0 0
        %2192 = vmatpush1.bf16.xpose.msra.mxu0 %v2189
        %2193 = vmatprep.subr.bf16.mxu0 0
        %2194 = vmatpush1.bf16.xpose.msra.mxu0 0
        %2195 = vmatprep.subr.bf16.mxu0 0
        %2196 = vmatpush1.bf16.xpose.msra.mxu0 0
        %2197 = vmatprep.subr.bf16.mxu0 0
        %2198 = vmatpush1.bf16.xpose.msra.mxu0 0
        %2199 = vmatprep.subr.bf16.mxu0 0
        %2200 = vmatpush1.bf16.xpose.msra.mxu0 0
        %2201 = vmatprep.subr.bf16.mxu0 0
        %2202 = vmatpush1.bf16.xpose.msra.mxu0 0
        %2203 = vmatprep.subr.bf16.mxu0 0
        %2204 = vmatpush1.bf16.xpose.msra.mxu0 0
        %2205 = vmatprep.subr.bf16.mxu0 0
        %2206 = vmatpush1.bf16.xpose.msra.mxu0 0
        %2207 = vmatprep.subr.bf16.mxu0 0
        %2208 = vmatpush1.bf16.xpose.msra.mxu0 0
        %2209 = vmatprep.subr.bf16.mxu0 0
        %2210 = vmatpush1.bf16.xpose.msra.mxu0 0
        %2211 = vmatprep.subr.bf16.mxu0 0
        %2212 = vmatpush1.bf16.xpose.msra.mxu0 0
        %2213 = vmatprep.subr.bf16.mxu0 0
        %2214 = vmatpush1.bf16.xpose.msra.mxu0 0
        %2215 = vmatprep.subr.bf16.mxu0 0
        %2216 = vmatpush1.bf16.xpose.msra.mxu0 0
        %2217 = vmatprep.subr.bf16.mxu0 0
        %2218 = vmatpush1.bf16.xpose.msra.mxu0 0
        %2219 = vmatprep.subr.bf16.mxu0 0
        %2220 = vmatpush1.bf16.xpose.msra.mxu0 0
        %2221 = vmatprep.subr.bf16.mxu0 0
        %2222 = vmatpush1.bf16.xpose.msra.mxu0 0
        %2223 = vmatprep.mubr.bf16.mxu0 0
        %2224 = vmatmul.mubr.bf16.gmra.mrb[0].mxu0 %v2186
        %v2225 = vpop.f32.mrb[0].mxu0
        %v2226 = vadd.f32 0.0, %v2225
        %v2227 = vpop.f32.mrb[0].mxu0
        %v2228 = vpop.f32.mrb[0].mxu0
        %v2229 = vpop.f32.mrb[0].mxu0
        %2230 = vdwg.mxu0
        %v2231 = vpack.i.b16 %v586, %v585
        %v2232 = vpack.i.b16 %v588, %v587
        %v2234 = vcombine.low %v2231, %v2232
        %v2236 = vunpack.c.l.s4 1966171168
        %v2237 = vunpack.c.0.s8 %v2236
        %v2238 = vlaneseq
        %v2239 = vshrl.u32 %v2238, 7
        %v2240 = vsub.s32 %v2237, %v2239
        %v2241 = vrot.slane %v2234, %v2240
        %v2243 = vunpack.c.l.s4 1966171168
        %v2244 = vunpack.c.0.s8 %v2243
        %v2245 = vlaneseq
        %v2246 = vshrl.u32 %v2245, 7
        %v2247 = vsub.s32 %v2244, %v2246
        %v2248 = vrot.slane %v589, %v2247
        %v2249 = vcombine.low %v2241, %v2248
        %v2251 = vunpack.c.l.s4 1966171168
        %v2252 = vunpack.c.0.s8 %v2251
        %v2253 = vlaneseq
        %v2254 = vshrl.u32 %v2253, 7
        %v2255 = vsub.s32 %v2252, %v2254
        %v2256 = vrot.slane %v2249, %v2255
        %v2258 = vsel %vm683, %v2144, 0
        %v2261 = vsel %vm683, %v2256, 0
        %2263 = vmatprep.subr.bf16.mxu0 0
        %2264 = vmatpush1.bf16.xpose.msra.mxu0 %v2261
        %2265 = vmatprep.subr.bf16.mxu0 0
        %2266 = vmatpush1.bf16.xpose.msra.mxu0 0
        %2267 = vmatprep.subr.bf16.mxu0 0
        %2268 = vmatpush1.bf16.xpose.msra.mxu0 0
        %2269 = vmatprep.subr.bf16.mxu0 0
        %2270 = vmatpush1.bf16.xpose.msra.mxu0 0
        %2271 = vmatprep.subr.bf16.mxu0 0
        %2272 = vmatpush1.bf16.xpose.msra.mxu0 0
        %2273 = vmatprep.subr.bf16.mxu0 0
        %2274 = vmatpush1.bf16.xpose.msra.mxu0 0
        %2275 = vmatprep.subr.bf16.mxu0 0
        %2276 = vmatpush1.bf16.xpose.msra.mxu0 0
        %2277 = vmatprep.subr.bf16.mxu0 0
        %2278 = vmatpush1.bf16.xpose.msra.mxu0 0
        %2279 = vmatprep.subr.bf16.mxu0 0
        %2280 = vmatpush1.bf16.xpose.msra.mxu0 0
        %2281 = vmatprep.subr.bf16.mxu0 0
        %2282 = vmatpush1.bf16.xpose.msra.mxu0 0
        %2283 = vmatprep.subr.bf16.mxu0 0
        %2284 = vmatpush1.bf16.xpose.msra.mxu0 0
        %2285 = vmatprep.subr.bf16.mxu0 0
        %2286 = vmatpush1.bf16.xpose.msra.mxu0 0
        %2287 = vmatprep.subr.bf16.mxu0 0
        %2288 = vmatpush1.bf16.xpose.msra.mxu0 0
        %2289 = vmatprep.subr.bf16.mxu0 0
        %2290 = vmatpush1.bf16.xpose.msra.mxu0 0
        %2291 = vmatprep.subr.bf16.mxu0 0
        %2292 = vmatpush1.bf16.xpose.msra.mxu0 0
        %2293 = vmatprep.subr.bf16.mxu0 0
        %2294 = vmatpush1.bf16.xpose.msra.mxu0 0
        %2295 = vmatprep.mubr.bf16.mxu0 0
        %2296 = vmatmul.mubr.bf16.gmra.mrb[0].mxu0 %v2258
        %v2297 = vpop.f32.mrb[0].mxu0
        %v2298 = vadd.f32 0.0, %v2297
        %v2299 = vpop.f32.mrb[0].mxu0
        %v2300 = vpop.f32.mrb[0].mxu0
        %v2301 = vpop.f32.mrb[0].mxu0
        %2302 = vdwg.mxu0
        %v2303 = vpack.i.b16 %v591, %v590
        %v2304 = vpack.i.b16 %v593, %v592
        %v2306 = vcombine.low %v2303, %v2304
        %v2308 = vunpack.c.l.s4 1966171168
        %v2309 = vunpack.c.0.s8 %v2308
        %v2310 = vlaneseq
        %v2311 = vshrl.u32 %v2310, 7
        %v2312 = vsub.s32 %v2309, %v2311
        %v2313 = vrot.slane %v2306, %v2312
        %v2315 = vunpack.c.l.s4 1966171168
        %v2316 = vunpack.c.0.s8 %v2315
        %v2317 = vlaneseq
        %v2318 = vshrl.u32 %v2317, 7
        %v2319 = vsub.s32 %v2316, %v2318
        %v2320 = vrot.slane %v594, %v2319
        %v2321 = vcombine.low %v2313, %v2320
        %v2323 = vunpack.c.l.s4 1966171168
        %v2324 = vunpack.c.0.s8 %v2323
        %v2325 = vlaneseq
        %v2326 = vshrl.u32 %v2325, 7
        %v2327 = vsub.s32 %v2324, %v2326
        %v2328 = vrot.slane %v2321, %v2327
        %v2330 = vsel %vm683, %v2145, 0
        %v2333 = vsel %vm683, %v2328, 0
        %2335 = vmatprep.subr.bf16.mxu0 0
        %2336 = vmatpush1.bf16.xpose.msra.mxu0 %v2333
        %2337 = vmatprep.subr.bf16.mxu0 0
        %2338 = vmatpush1.bf16.xpose.msra.mxu0 0
        %2339 = vmatprep.subr.bf16.mxu0 0
        %2340 = vmatpush1.bf16.xpose.msra.mxu0 0
        %2341 = vmatprep.subr.bf16.mxu0 0
        %2342 = vmatpush1.bf16.xpose.msra.mxu0 0
        %2343 = vmatprep.subr.bf16.mxu0 0
        %2344 = vmatpush1.bf16.xpose.msra.mxu0 0
        %2345 = vmatprep.subr.bf16.mxu0 0
        %2346 = vmatpush1.bf16.xpose.msra.mxu0 0
        %2347 = vmatprep.subr.bf16.mxu0 0
        %2348 = vmatpush1.bf16.xpose.msra.mxu0 0
        %2349 = vmatprep.subr.bf16.mxu0 0
        %2350 = vmatpush1.bf16.xpose.msra.mxu0 0
        %2351 = vmatprep.subr.bf16.mxu0 0
        %2352 = vmatpush1.bf16.xpose.msra.mxu0 0
        %2353 = vmatprep.subr.bf16.mxu0 0
        %2354 = vmatpush1.bf16.xpose.msra.mxu0 0
        %2355 = vmatprep.subr.bf16.mxu0 0
        %2356 = vmatpush1.bf16.xpose.msra.mxu0 0
        %2357 = vmatprep.subr.bf16.mxu0 0
        %2358 = vmatpush1.bf16.xpose.msra.mxu0 0
        %2359 = vmatprep.subr.bf16.mxu0 0
        %2360 = vmatpush1.bf16.xpose.msra.mxu0 0
        %2361 = vmatprep.subr.bf16.mxu0 0
        %2362 = vmatpush1.bf16.xpose.msra.mxu0 0
        %2363 = vmatprep.subr.bf16.mxu0 0
        %2364 = vmatpush1.bf16.xpose.msra.mxu0 0
        %2365 = vmatprep.subr.bf16.mxu0 0
        %2366 = vmatpush1.bf16.xpose.msra.mxu0 0
        %2367 = vmatprep.mubr.bf16.mxu0 0
        %2368 = vmatmul.mubr.bf16.gmra.mrb[0].mxu0 %v2330
        %v2369 = vpop.f32.mrb[0].mxu0
        %v2370 = vadd.f32 0.0, %v2369
        %v2371 = vpop.f32.mrb[0].mxu0
        %v2372 = vpop.f32.mrb[0].mxu0
        %v2373 = vpop.f32.mrb[0].mxu0
        %2374 = vdwg.mxu0
        %v2375 = vpack.i.b16 %v596, %v595
        %v2376 = vpack.i.b16 %v598, %v597
        %v2378 = vcombine.low %v2375, %v2376
        %v2380 = vunpack.c.l.s4 1966171168
        %v2381 = vunpack.c.0.s8 %v2380
        %v2382 = vlaneseq
        %v2383 = vshrl.u32 %v2382, 7
        %v2384 = vsub.s32 %v2381, %v2383
        %v2385 = vrot.slane %v2378, %v2384
        %v2387 = vunpack.c.l.s4 1966171168
        %v2388 = vunpack.c.0.s8 %v2387
        %v2389 = vlaneseq
        %v2390 = vshrl.u32 %v2389, 7
        %v2391 = vsub.s32 %v2388, %v2390
        %v2392 = vrot.slane %v599, %v2391
        %v2393 = vcombine.low %v2385, %v2392
        %v2395 = vunpack.c.l.s4 1966171168
        %v2396 = vunpack.c.0.s8 %v2395
        %v2397 = vlaneseq
        %v2398 = vshrl.u32 %v2397, 7
        %v2399 = vsub.s32 %v2396, %v2398
        %v2400 = vrot.slane %v2393, %v2399
        %v2402 = vsel %vm683, %v2146, 0
        %v2405 = vsel %vm683, %v2400, 0
        %2407 = vmatprep.subr.bf16.mxu0 0
        %2408 = vmatpush1.bf16.xpose.msra.mxu0 %v2405
        %2409 = vmatprep.subr.bf16.mxu0 0
        %2410 = vmatpush1.bf16.xpose.msra.mxu0 0
        %2411 = vmatprep.subr.bf16.mxu0 0
        %2412 = vmatpush1.bf16.xpose.msra.mxu0 0
        %2413 = vmatprep.subr.bf16.mxu0 0
        %2414 = vmatpush1.bf16.xpose.msra.mxu0 0
        %2415 = vmatprep.subr.bf16.mxu0 0
        %2416 = vmatpush1.bf16.xpose.msra.mxu0 0
        %2417 = vmatprep.subr.bf16.mxu0 0
        %2418 = vmatpush1.bf16.xpose.msra.mxu0 0
        %2419 = vmatprep.subr.bf16.mxu0 0
        %2420 = vmatpush1.bf16.xpose.msra.mxu0 0
        %2421 = vmatprep.subr.bf16.mxu0 0
        %2422 = vmatpush1.bf16.xpose.msra.mxu0 0
        %2423 = vmatprep.subr.bf16.mxu0 0
        %2424 = vmatpush1.bf16.xpose.msra.mxu0 0
        %2425 = vmatprep.subr.bf16.mxu0 0
        %2426 = vmatpush1.bf16.xpose.msra.mxu0 0
        %2427 = vmatprep.subr.bf16.mxu0 0
        %2428 = vmatpush1.bf16.xpose.msra.mxu0 0
        %2429 = vmatprep.subr.bf16.mxu0 0
        %2430 = vmatpush1.bf16.xpose.msra.mxu0 0
        %2431 = vmatprep.subr.bf16.mxu0 0
        %2432 = vmatpush1.bf16.xpose.msra.mxu0 0
        %2433 = vmatprep.subr.bf16.mxu0 0
        %2434 = vmatpush1.bf16.xpose.msra.mxu0 0
        %2435 = vmatprep.subr.bf16.mxu0 0
        %2436 = vmatpush1.bf16.xpose.msra.mxu0 0
        %2437 = vmatprep.subr.bf16.mxu0 0
        %2438 = vmatpush1.bf16.xpose.msra.mxu0 0
        %2439 = vmatprep.mubr.bf16.mxu0 0
        %2440 = vmatmul.mubr.bf16.gmra.mrb[0].mxu0 %v2402
        %v2441 = vpop.f32.mrb[0].mxu0
        %v2442 = vadd.f32 0.0, %v2441
        %v2443 = vpop.f32.mrb[0].mxu0
        %v2444 = vpop.f32.mrb[0].mxu0
        %v2445 = vpop.f32.mrb[0].mxu0
        %2446 = vdwg.mxu0
        %v2447 = vpack.i.b16 %v601, %v600
        %v2448 = vpack.i.b16 %v603, %v602
        %v2450 = vcombine.low %v2447, %v2448
        %v2452 = vunpack.c.l.s4 1966171168
        %v2453 = vunpack.c.0.s8 %v2452
        %v2454 = vlaneseq
        %v2455 = vshrl.u32 %v2454, 7
        %v2456 = vsub.s32 %v2453, %v2455
        %v2457 = vrot.slane %v2450, %v2456
        %v2459 = vunpack.c.l.s4 1966171168
        %v2460 = vunpack.c.0.s8 %v2459
        %v2461 = vlaneseq
        %v2462 = vshrl.u32 %v2461, 7
        %v2463 = vsub.s32 %v2460, %v2462
        %v2464 = vrot.slane %v604, %v2463
        %v2465 = vcombine.low %v2457, %v2464
        %v2467 = vunpack.c.l.s4 1966171168
        %v2468 = vunpack.c.0.s8 %v2467
        %v2469 = vlaneseq
        %v2470 = vshrl.u32 %v2469, 7
        %v2471 = vsub.s32 %v2468, %v2470
        %v2472 = vrot.slane %v2465, %v2471
        %v2474 = vsel %vm683, %v2147, 0
        %v2477 = vsel %vm683, %v2472, 0
        %2479 = vmatprep.subr.bf16.mxu0 0
        %2480 = vmatpush1.bf16.xpose.msra.mxu0 %v2477
        %2481 = vmatprep.subr.bf16.mxu0 0
        %2482 = vmatpush1.bf16.xpose.msra.mxu0 0
        %2483 = vmatprep.subr.bf16.mxu0 0
        %2484 = vmatpush1.bf16.xpose.msra.mxu0 0
        %2485 = vmatprep.subr.bf16.mxu0 0
        %2486 = vmatpush1.bf16.xpose.msra.mxu0 0
        %2487 = vmatprep.subr.bf16.mxu0 0
        %2488 = vmatpush1.bf16.xpose.msra.mxu0 0
        %2489 = vmatprep.subr.bf16.mxu0 0
        %2490 = vmatpush1.bf16.xpose.msra.mxu0 0
        %2491 = vmatprep.subr.bf16.mxu0 0
        %2492 = vmatpush1.bf16.xpose.msra.mxu0 0
        %2493 = vmatprep.subr.bf16.mxu0 0
        %2494 = vmatpush1.bf16.xpose.msra.mxu0 0
        %2495 = vmatprep.subr.bf16.mxu0 0
        %2496 = vmatpush1.bf16.xpose.msra.mxu0 0
        %2497 = vmatprep.subr.bf16.mxu0 0
        %2498 = vmatpush1.bf16.xpose.msra.mxu0 0
        %2499 = vmatprep.subr.bf16.mxu0 0
        %2500 = vmatpush1.bf16.xpose.msra.mxu0 0
        %2501 = vmatprep.subr.bf16.mxu0 0
        %2502 = vmatpush1.bf16.xpose.msra.mxu0 0
        %2503 = vmatprep.subr.bf16.mxu0 0
        %2504 = vmatpush1.bf16.xpose.msra.mxu0 0
        %2505 = vmatprep.subr.bf16.mxu0 0
        %2506 = vmatpush1.bf16.xpose.msra.mxu0 0
        %2507 = vmatprep.subr.bf16.mxu0 0
        %2508 = vmatpush1.bf16.xpose.msra.mxu0 0
        %2509 = vmatprep.subr.bf16.mxu0 0
        %2510 = vmatpush1.bf16.xpose.msra.mxu0 0
        %2511 = vmatprep.mubr.bf16.mxu0 0
        %2512 = vmatmul.mubr.bf16.gmra.mrb[0].mxu0 %v2474
        %v2513 = vpop.f32.mrb[0].mxu0
        %v2514 = vadd.f32 0.0, %v2513
        %v2515 = vpop.f32.mrb[0].mxu0
        %v2516 = vpop.f32.mrb[0].mxu0
        %v2517 = vpop.f32.mrb[0].mxu0
        %2518 = vdwg.mxu0
        %v2519 = vpack.i.b16 %v606, %v605
        %v2520 = vpack.i.b16 %v608, %v607
        %v2522 = vcombine.low %v2519, %v2520
        %v2524 = vunpack.c.l.s4 1966171168
        %v2525 = vunpack.c.0.s8 %v2524
        %v2526 = vlaneseq
        %v2527 = vshrl.u32 %v2526, 7
        %v2528 = vsub.s32 %v2525, %v2527
        %v2529 = vrot.slane %v2522, %v2528
        %v2531 = vunpack.c.l.s4 1966171168
        %v2532 = vunpack.c.0.s8 %v2531
        %v2533 = vlaneseq
        %v2534 = vshrl.u32 %v2533, 7
        %v2535 = vsub.s32 %v2532, %v2534
        %v2536 = vrot.slane %v609, %v2535
        %v2537 = vcombine.low %v2529, %v2536
        %v2539 = vunpack.c.l.s4 1966171168
        %v2540 = vunpack.c.0.s8 %v2539
        %v2541 = vlaneseq
        %v2542 = vshrl.u32 %v2541, 7
        %v2543 = vsub.s32 %v2540, %v2542
        %v2544 = vrot.slane %v2537, %v2543
        %v2546 = vsel %vm683, %v2148, 0
        %v2549 = vsel %vm683, %v2544, 0
        %2551 = vmatprep.subr.bf16.mxu0 0
        %2552 = vmatpush1.bf16.xpose.msra.mxu0 %v2549
        %2553 = vmatprep.subr.bf16.mxu0 0
        %2554 = vmatpush1.bf16.xpose.msra.mxu0 0
        %2555 = vmatprep.subr.bf16.mxu0 0
        %2556 = vmatpush1.bf16.xpose.msra.mxu0 0
        %2557 = vmatprep.subr.bf16.mxu0 0
        %2558 = vmatpush1.bf16.xpose.msra.mxu0 0
        %2559 = vmatprep.subr.bf16.mxu0 0
        %2560 = vmatpush1.bf16.xpose.msra.mxu0 0
        %2561 = vmatprep.subr.bf16.mxu0 0
        %2562 = vmatpush1.bf16.xpose.msra.mxu0 0
        %2563 = vmatprep.subr.bf16.mxu0 0
        %2564 = vmatpush1.bf16.xpose.msra.mxu0 0
        %2565 = vmatprep.subr.bf16.mxu0 0
        %2566 = vmatpush1.bf16.xpose.msra.mxu0 0
        %2567 = vmatprep.subr.bf16.mxu0 0
        %2568 = vmatpush1.bf16.xpose.msra.mxu0 0
        %2569 = vmatprep.subr.bf16.mxu0 0
        %2570 = vmatpush1.bf16.xpose.msra.mxu0 0
        %2571 = vmatprep.subr.bf16.mxu0 0
        %2572 = vmatpush1.bf16.xpose.msra.mxu0 0
        %2573 = vmatprep.subr.bf16.mxu0 0
        %2574 = vmatpush1.bf16.xpose.msra.mxu0 0
        %2575 = vmatprep.subr.bf16.mxu0 0
        %2576 = vmatpush1.bf16.xpose.msra.mxu0 0
        %2577 = vmatprep.subr.bf16.mxu0 0
        %2578 = vmatpush1.bf16.xpose.msra.mxu0 0
        %2579 = vmatprep.subr.bf16.mxu0 0
        %2580 = vmatpush1.bf16.xpose.msra.mxu0 0
        %2581 = vmatprep.subr.bf16.mxu0 0
        %2582 = vmatpush1.bf16.xpose.msra.mxu0 0
        %2583 = vmatprep.mubr.bf16.mxu0 0
        %2584 = vmatmul.mubr.bf16.gmra.mrb[0].mxu0 %v2546
        %v2585 = vpop.f32.mrb[0].mxu0
        %v2586 = vadd.f32 0.0, %v2585
        %v2587 = vpop.f32.mrb[0].mxu0
        %v2588 = vpop.f32.mrb[0].mxu0
        %v2589 = vpop.f32.mrb[0].mxu0
        %2590 = vdwg.mxu0
        %v2591 = vpack.i.b16 %v611, %v610
        %v2592 = vpack.i.b16 %v613, %v612
        %v2594 = vcombine.low %v2591, %v2592
        %v2596 = vunpack.c.l.s4 1966171168
        %v2597 = vunpack.c.0.s8 %v2596
        %v2598 = vlaneseq
        %v2599 = vshrl.u32 %v2598, 7
        %v2600 = vsub.s32 %v2597, %v2599
        %v2601 = vrot.slane %v2594, %v2600
        %v2603 = vunpack.c.l.s4 1966171168
        %v2604 = vunpack.c.0.s8 %v2603
        %v2605 = vlaneseq
        %v2606 = vshrl.u32 %v2605, 7
        %v2607 = vsub.s32 %v2604, %v2606
        %v2608 = vrot.slane %v614, %v2607
        %v2609 = vcombine.low %v2601, %v2608
        %v2611 = vunpack.c.l.s4 1966171168
        %v2612 = vunpack.c.0.s8 %v2611
        %v2613 = vlaneseq
        %v2614 = vshrl.u32 %v2613, 7
        %v2615 = vsub.s32 %v2612, %v2614
        %v2616 = vrot.slane %v2609, %v2615
        %v2618 = vsel %vm683, %v2149, 0
        %v2621 = vsel %vm683, %v2616, 0
        %2623 = vmatprep.subr.bf16.mxu0 0
        %2624 = vmatpush1.bf16.xpose.msra.mxu0 %v2621
        %2625 = vmatprep.subr.bf16.mxu0 0
        %2626 = vmatpush1.bf16.xpose.msra.mxu0 0
        %2627 = vmatprep.subr.bf16.mxu0 0
        %2628 = vmatpush1.bf16.xpose.msra.mxu0 0
        %2629 = vmatprep.subr.bf16.mxu0 0
        %2630 = vmatpush1.bf16.xpose.msra.mxu0 0
        %2631 = vmatprep.subr.bf16.mxu0 0
        %2632 = vmatpush1.bf16.xpose.msra.mxu0 0
        %2633 = vmatprep.subr.bf16.mxu0 0
        %2634 = vmatpush1.bf16.xpose.msra.mxu0 0
        %2635 = vmatprep.subr.bf16.mxu0 0
        %2636 = vmatpush1.bf16.xpose.msra.mxu0 0
        %2637 = vmatprep.subr.bf16.mxu0 0
        %2638 = vmatpush1.bf16.xpose.msra.mxu0 0
        %2639 = vmatprep.subr.bf16.mxu0 0
        %2640 = vmatpush1.bf16.xpose.msra.mxu0 0
        %2641 = vmatprep.subr.bf16.mxu0 0
        %2642 = vmatpush1.bf16.xpose.msra.mxu0 0
        %2643 = vmatprep.subr.bf16.mxu0 0
        %2644 = vmatpush1.bf16.xpose.msra.mxu0 0
        %2645 = vmatprep.subr.bf16.mxu0 0
        %2646 = vmatpush1.bf16.xpose.msra.mxu0 0
        %2647 = vmatprep.subr.bf16.mxu0 0
        %2648 = vmatpush1.bf16.xpose.msra.mxu0 0
        %2649 = vmatprep.subr.bf16.mxu0 0
        %2650 = vmatpush1.bf16.xpose.msra.mxu0 0
        %2651 = vmatprep.subr.bf16.mxu0 0
        %2652 = vmatpush1.bf16.xpose.msra.mxu0 0
        %2653 = vmatprep.subr.bf16.mxu0 0
        %2654 = vmatpush1.bf16.xpose.msra.mxu0 0
        %2655 = vmatprep.mubr.bf16.mxu0 0
        %2656 = vmatmul.mubr.bf16.gmra.mrb[0].mxu0 %v2618
        %v2657 = vpop.f32.mrb[0].mxu0
        %v2658 = vadd.f32 0.0, %v2657
        %v2659 = vpop.f32.mrb[0].mxu0
        %v2660 = vpop.f32.mrb[0].mxu0
        %v2661 = vpop.f32.mrb[0].mxu0
        %2662 = vdwg.mxu0
        %v2663 = vpack.i.b16 %v616, %v615
        %v2664 = vpack.i.b16 %v618, %v617
        %v2666 = vcombine.low %v2663, %v2664
        %v2668 = vunpack.c.l.s4 1966171168
        %v2669 = vunpack.c.0.s8 %v2668
        %v2670 = vlaneseq
        %v2671 = vshrl.u32 %v2670, 7
        %v2672 = vsub.s32 %v2669, %v2671
        %v2673 = vrot.slane %v2666, %v2672
        %v2675 = vunpack.c.l.s4 1966171168
        %v2676 = vunpack.c.0.s8 %v2675
        %v2677 = vlaneseq
        %v2678 = vshrl.u32 %v2677, 7
        %v2679 = vsub.s32 %v2676, %v2678
        %v2680 = vrot.slane %v619, %v2679
        %v2681 = vcombine.low %v2673, %v2680
        %v2683 = vunpack.c.l.s4 1966171168
        %v2684 = vunpack.c.0.s8 %v2683
        %v2685 = vlaneseq
        %v2686 = vshrl.u32 %v2685, 7
        %v2687 = vsub.s32 %v2684, %v2686
        %v2688 = vrot.slane %v2681, %v2687
        %v2690 = vsel %vm683, %v2150, 0
        %v2693 = vsel %vm683, %v2688, 0
        %2695 = vmatprep.subr.bf16.mxu0 0
        %2696 = vmatpush1.bf16.xpose.msra.mxu0 %v2693
        %2697 = vmatprep.subr.bf16.mxu0 0
        %2698 = vmatpush1.bf16.xpose.msra.mxu0 0
        %2699 = vmatprep.subr.bf16.mxu0 0
        %2700 = vmatpush1.bf16.xpose.msra.mxu0 0
        %2701 = vmatprep.subr.bf16.mxu0 0
        %2702 = vmatpush1.bf16.xpose.msra.mxu0 0
        %2703 = vmatprep.subr.bf16.mxu0 0
        %2704 = vmatpush1.bf16.xpose.msra.mxu0 0
        %2705 = vmatprep.subr.bf16.mxu0 0
        %2706 = vmatpush1.bf16.xpose.msra.mxu0 0
        %2707 = vmatprep.subr.bf16.mxu0 0
        %2708 = vmatpush1.bf16.xpose.msra.mxu0 0
        %2709 = vmatprep.subr.bf16.mxu0 0
        %2710 = vmatpush1.bf16.xpose.msra.mxu0 0
        %2711 = vmatprep.subr.bf16.mxu0 0
        %2712 = vmatpush1.bf16.xpose.msra.mxu0 0
        %2713 = vmatprep.subr.bf16.mxu0 0
        %2714 = vmatpush1.bf16.xpose.msra.mxu0 0
        %2715 = vmatprep.subr.bf16.mxu0 0
        %2716 = vmatpush1.bf16.xpose.msra.mxu0 0
        %2717 = vmatprep.subr.bf16.mxu0 0
        %2718 = vmatpush1.bf16.xpose.msra.mxu0 0
        %2719 = vmatprep.subr.bf16.mxu0 0
        %2720 = vmatpush1.bf16.xpose.msra.mxu0 0
        %2721 = vmatprep.subr.bf16.mxu0 0
        %2722 = vmatpush1.bf16.xpose.msra.mxu0 0
        %2723 = vmatprep.subr.bf16.mxu0 0
        %2724 = vmatpush1.bf16.xpose.msra.mxu0 0
        %2725 = vmatprep.subr.bf16.mxu0 0
        %2726 = vmatpush1.bf16.xpose.msra.mxu0 0
        %2727 = vmatprep.mubr.bf16.mxu0 0
        %2728 = vmatmul.mubr.bf16.gmra.mrb[0].mxu0 %v2690
        %v2729 = vpop.f32.mrb[0].mxu0
        %v2730 = vadd.f32 0.0, %v2729
        %v2731 = vpop.f32.mrb[0].mxu0
        %v2732 = vpop.f32.mrb[0].mxu0
        %v2733 = vpop.f32.mrb[0].mxu0
        %2734 = vdwg.mxu0
        %v2735 = vpack.i.b16 %v621, %v620
        %v2736 = vpack.i.b16 %v623, %v622
        %v2738 = vcombine.low %v2735, %v2736
        %v2740 = vunpack.c.l.s4 1966171168
        %v2741 = vunpack.c.0.s8 %v2740
        %v2742 = vlaneseq
        %v2743 = vshrl.u32 %v2742, 7
        %v2744 = vsub.s32 %v2741, %v2743
        %v2745 = vrot.slane %v2738, %v2744
        %v2747 = vunpack.c.l.s4 1966171168
        %v2748 = vunpack.c.0.s8 %v2747
        %v2749 = vlaneseq
        %v2750 = vshrl.u32 %v2749, 7
        %v2751 = vsub.s32 %v2748, %v2750
        %v2752 = vrot.slane %v624, %v2751
        %v2753 = vcombine.low %v2745, %v2752
        %v2755 = vunpack.c.l.s4 1966171168
        %v2756 = vunpack.c.0.s8 %v2755
        %v2757 = vlaneseq
        %v2758 = vshrl.u32 %v2757, 7
        %v2759 = vsub.s32 %v2756, %v2758
        %v2760 = vrot.slane %v2753, %v2759
        %v2762 = vsel %vm683, %v2151, 0
        %v2765 = vsel %vm683, %v2760, 0
        %2767 = vmatprep.subr.bf16.mxu0 0
        %2768 = vmatpush1.bf16.xpose.msra.mxu0 %v2765
        %2769 = vmatprep.subr.bf16.mxu0 0
        %2770 = vmatpush1.bf16.xpose.msra.mxu0 0
        %2771 = vmatprep.subr.bf16.mxu0 0
        %2772 = vmatpush1.bf16.xpose.msra.mxu0 0
        %2773 = vmatprep.subr.bf16.mxu0 0
        %2774 = vmatpush1.bf16.xpose.msra.mxu0 0
        %2775 = vmatprep.subr.bf16.mxu0 0
        %2776 = vmatpush1.bf16.xpose.msra.mxu0 0
        %2777 = vmatprep.subr.bf16.mxu0 0
        %2778 = vmatpush1.bf16.xpose.msra.mxu0 0
        %2779 = vmatprep.subr.bf16.mxu0 0
        %2780 = vmatpush1.bf16.xpose.msra.mxu0 0
        %2781 = vmatprep.subr.bf16.mxu0 0
        %2782 = vmatpush1.bf16.xpose.msra.mxu0 0
        %2783 = vmatprep.subr.bf16.mxu0 0
        %2784 = vmatpush1.bf16.xpose.msra.mxu0 0
        %2785 = vmatprep.subr.bf16.mxu0 0
        %2786 = vmatpush1.bf16.xpose.msra.mxu0 0
        %2787 = vmatprep.subr.bf16.mxu0 0
        %2788 = vmatpush1.bf16.xpose.msra.mxu0 0
        %2789 = vmatprep.subr.bf16.mxu0 0
        %2790 = vmatpush1.bf16.xpose.msra.mxu0 0
        %2791 = vmatprep.subr.bf16.mxu0 0
        %2792 = vmatpush1.bf16.xpose.msra.mxu0 0
        %2793 = vmatprep.subr.bf16.mxu0 0
        %2794 = vmatpush1.bf16.xpose.msra.mxu0 0
        %2795 = vmatprep.subr.bf16.mxu0 0
        %2796 = vmatpush1.bf16.xpose.msra.mxu0 0
        %2797 = vmatprep.subr.bf16.mxu0 0
        %2798 = vmatpush1.bf16.xpose.msra.mxu0 0
        %2799 = vmatprep.mubr.bf16.mxu0 0
        %2800 = vmatmul.mubr.bf16.gmra.mrb[0].mxu0 %v2762
        %v2801 = vpop.f32.mrb[0].mxu0
        %v2802 = vadd.f32 0.0, %v2801
        %v2803 = vpop.f32.mrb[0].mxu0
        %v2804 = vpop.f32.mrb[0].mxu0
        %v2805 = vpop.f32.mrb[0].mxu0
        %2806 = vdwg.mxu0
        %v2807 = vpack.i.b16 %v626, %v625
        %v2808 = vpack.i.b16 %v628, %v627
        %v2810 = vcombine.low %v2807, %v2808
        %v2812 = vunpack.c.l.s4 1966171168
        %v2813 = vunpack.c.0.s8 %v2812
        %v2814 = vlaneseq
        %v2815 = vshrl.u32 %v2814, 7
        %v2816 = vsub.s32 %v2813, %v2815
        %v2817 = vrot.slane %v2810, %v2816
        %v2819 = vunpack.c.l.s4 1966171168
        %v2820 = vunpack.c.0.s8 %v2819
        %v2821 = vlaneseq
        %v2822 = vshrl.u32 %v2821, 7
        %v2823 = vsub.s32 %v2820, %v2822
        %v2824 = vrot.slane %v629, %v2823
        %v2825 = vcombine.low %v2817, %v2824
        %v2827 = vunpack.c.l.s4 1966171168
        %v2828 = vunpack.c.0.s8 %v2827
        %v2829 = vlaneseq
        %v2830 = vshrl.u32 %v2829, 7
        %v2831 = vsub.s32 %v2828, %v2830
        %v2832 = vrot.slane %v2825, %v2831
        %v2834 = vsel %vm683, %v2152, 0
        %v2837 = vsel %vm683, %v2832, 0
        %2839 = vmatprep.subr.bf16.mxu0 0
        %2840 = vmatpush1.bf16.xpose.msra.mxu0 %v2837
        %2841 = vmatprep.subr.bf16.mxu0 0
        %2842 = vmatpush1.bf16.xpose.msra.mxu0 0
        %2843 = vmatprep.subr.bf16.mxu0 0
        %2844 = vmatpush1.bf16.xpose.msra.mxu0 0
        %2845 = vmatprep.subr.bf16.mxu0 0
        %2846 = vmatpush1.bf16.xpose.msra.mxu0 0
        %2847 = vmatprep.subr.bf16.mxu0 0
        %2848 = vmatpush1.bf16.xpose.msra.mxu0 0
        %2849 = vmatprep.subr.bf16.mxu0 0
        %2850 = vmatpush1.bf16.xpose.msra.mxu0 0
        %2851 = vmatprep.subr.bf16.mxu0 0
        %2852 = vmatpush1.bf16.xpose.msra.mxu0 0
        %2853 = vmatprep.subr.bf16.mxu0 0
        %2854 = vmatpush1.bf16.xpose.msra.mxu0 0
        %2855 = vmatprep.subr.bf16.mxu0 0
        %2856 = vmatpush1.bf16.xpose.msra.mxu0 0
        %2857 = vmatprep.subr.bf16.mxu0 0
        %2858 = vmatpush1.bf16.xpose.msra.mxu0 0
        %2859 = vmatprep.subr.bf16.mxu0 0
        %2860 = vmatpush1.bf16.xpose.msra.mxu0 0
        %2861 = vmatprep.subr.bf16.mxu0 0
        %2862 = vmatpush1.bf16.xpose.msra.mxu0 0
        %2863 = vmatprep.subr.bf16.mxu0 0
        %2864 = vmatpush1.bf16.xpose.msra.mxu0 0
        %2865 = vmatprep.subr.bf16.mxu0 0
        %2866 = vmatpush1.bf16.xpose.msra.mxu0 0
        %2867 = vmatprep.subr.bf16.mxu0 0
        %2868 = vmatpush1.bf16.xpose.msra.mxu0 0
        %2869 = vmatprep.subr.bf16.mxu0 0
        %2870 = vmatpush1.bf16.xpose.msra.mxu0 0
        %2871 = vmatprep.mubr.bf16.mxu0 0
        %2872 = vmatmul.mubr.bf16.gmra.mrb[0].mxu0 %v2834
        %v2873 = vpop.f32.mrb[0].mxu0
        %v2874 = vadd.f32 0.0, %v2873
        %v2875 = vpop.f32.mrb[0].mxu0
        %v2876 = vpop.f32.mrb[0].mxu0
        %v2877 = vpop.f32.mrb[0].mxu0
        %2878 = vdwg.mxu0
        %v2879 = vpack.i.b16 %v631, %v630
        %v2880 = vpack.i.b16 %v633, %v632
        %v2882 = vcombine.low %v2879, %v2880
        %v2884 = vunpack.c.l.s4 1966171168
        %v2885 = vunpack.c.0.s8 %v2884
        %v2886 = vlaneseq
        %v2887 = vshrl.u32 %v2886, 7
        %v2888 = vsub.s32 %v2885, %v2887
        %v2889 = vrot.slane %v2882, %v2888
        %v2891 = vunpack.c.l.s4 1966171168
        %v2892 = vunpack.c.0.s8 %v2891
        %v2893 = vlaneseq
        %v2894 = vshrl.u32 %v2893, 7
        %v2895 = vsub.s32 %v2892, %v2894
        %v2896 = vrot.slane %v634, %v2895
        %v2897 = vcombine.low %v2889, %v2896
        %v2899 = vunpack.c.l.s4 1966171168
        %v2900 = vunpack.c.0.s8 %v2899
        %v2901 = vlaneseq
        %v2902 = vshrl.u32 %v2901, 7
        %v2903 = vsub.s32 %v2900, %v2902
        %v2904 = vrot.slane %v2897, %v2903
        %v2906 = vsel %vm683, %v2153, 0
        %v2909 = vsel %vm683, %v2904, 0
        %2911 = vmatprep.subr.bf16.mxu0 0
        %2912 = vmatpush1.bf16.xpose.msra.mxu0 %v2909
        %2913 = vmatprep.subr.bf16.mxu0 0
        %2914 = vmatpush1.bf16.xpose.msra.mxu0 0
        %2915 = vmatprep.subr.bf16.mxu0 0
        %2916 = vmatpush1.bf16.xpose.msra.mxu0 0
        %2917 = vmatprep.subr.bf16.mxu0 0
        %2918 = vmatpush1.bf16.xpose.msra.mxu0 0
        %2919 = vmatprep.subr.bf16.mxu0 0
        %2920 = vmatpush1.bf16.xpose.msra.mxu0 0
        %2921 = vmatprep.subr.bf16.mxu0 0
        %2922 = vmatpush1.bf16.xpose.msra.mxu0 0
        %2923 = vmatprep.subr.bf16.mxu0 0
        %2924 = vmatpush1.bf16.xpose.msra.mxu0 0
        %2925 = vmatprep.subr.bf16.mxu0 0
        %2926 = vmatpush1.bf16.xpose.msra.mxu0 0
        %2927 = vmatprep.subr.bf16.mxu0 0
        %2928 = vmatpush1.bf16.xpose.msra.mxu0 0
        %2929 = vmatprep.subr.bf16.mxu0 0
        %2930 = vmatpush1.bf16.xpose.msra.mxu0 0
        %2931 = vmatprep.subr.bf16.mxu0 0
        %2932 = vmatpush1.bf16.xpose.msra.mxu0 0
        %2933 = vmatprep.subr.bf16.mxu0 0
        %2934 = vmatpush1.bf16.xpose.msra.mxu0 0
        %2935 = vmatprep.subr.bf16.mxu0 0
        %2936 = vmatpush1.bf16.xpose.msra.mxu0 0
        %2937 = vmatprep.subr.bf16.mxu0 0
        %2938 = vmatpush1.bf16.xpose.msra.mxu0 0
        %2939 = vmatprep.subr.bf16.mxu0 0
        %2940 = vmatpush1.bf16.xpose.msra.mxu0 0
        %2941 = vmatprep.subr.bf16.mxu0 0
        %2942 = vmatpush1.bf16.xpose.msra.mxu0 0
        %2943 = vmatprep.mubr.bf16.mxu0 0
        %2944 = vmatmul.mubr.bf16.gmra.mrb[0].mxu0 %v2906
        %v2945 = vpop.f32.mrb[0].mxu0
        %v2946 = vadd.f32 0.0, %v2945
        %v2947 = vpop.f32.mrb[0].mxu0
        %v2948 = vpop.f32.mrb[0].mxu0
        %v2949 = vpop.f32.mrb[0].mxu0
        %2950 = vdwg.mxu0
        %v2951 = vpack.i.b16 %v636, %v635
        %v2952 = vpack.i.b16 %v638, %v637
        %v2954 = vcombine.low %v2951, %v2952
        %v2956 = vunpack.c.l.s4 1966171168
        %v2957 = vunpack.c.0.s8 %v2956
        %v2958 = vlaneseq
        %v2959 = vshrl.u32 %v2958, 7
        %v2960 = vsub.s32 %v2957, %v2959
        %v2961 = vrot.slane %v2954, %v2960
        %v2963 = vunpack.c.l.s4 1966171168
        %v2964 = vunpack.c.0.s8 %v2963
        %v2965 = vlaneseq
        %v2966 = vshrl.u32 %v2965, 7
        %v2967 = vsub.s32 %v2964, %v2966
        %v2968 = vrot.slane %v639, %v2967
        %v2969 = vcombine.low %v2961, %v2968
        %v2971 = vunpack.c.l.s4 1966171168
        %v2972 = vunpack.c.0.s8 %v2971
        %v2973 = vlaneseq
        %v2974 = vshrl.u32 %v2973, 7
        %v2975 = vsub.s32 %v2972, %v2974
        %v2976 = vrot.slane %v2969, %v2975
        %v2978 = vsel %vm683, %v2154, 0
        %v2981 = vsel %vm683, %v2976, 0
        %2983 = vmatprep.subr.bf16.mxu0 0
        %2984 = vmatpush1.bf16.xpose.msra.mxu0 %v2981
        %2985 = vmatprep.subr.bf16.mxu0 0
        %2986 = vmatpush1.bf16.xpose.msra.mxu0 0
        %2987 = vmatprep.subr.bf16.mxu0 0
        %2988 = vmatpush1.bf16.xpose.msra.mxu0 0
        %2989 = vmatprep.subr.bf16.mxu0 0
        %2990 = vmatpush1.bf16.xpose.msra.mxu0 0
        %2991 = vmatprep.subr.bf16.mxu0 0
        %2992 = vmatpush1.bf16.xpose.msra.mxu0 0
        %2993 = vmatprep.subr.bf16.mxu0 0
        %2994 = vmatpush1.bf16.xpose.msra.mxu0 0
        %2995 = vmatprep.subr.bf16.mxu0 0
        %2996 = vmatpush1.bf16.xpose.msra.mxu0 0
        %2997 = vmatprep.subr.bf16.mxu0 0
        %2998 = vmatpush1.bf16.xpose.msra.mxu0 0
        %2999 = vmatprep.subr.bf16.mxu0 0
        %3000 = vmatpush1.bf16.xpose.msra.mxu0 0
        %3001 = vmatprep.subr.bf16.mxu0 0
        %3002 = vmatpush1.bf16.xpose.msra.mxu0 0
        %3003 = vmatprep.subr.bf16.mxu0 0
        %3004 = vmatpush1.bf16.xpose.msra.mxu0 0
        %3005 = vmatprep.subr.bf16.mxu0 0
        %3006 = vmatpush1.bf16.xpose.msra.mxu0 0
        %3007 = vmatprep.subr.bf16.mxu0 0
        %3008 = vmatpush1.bf16.xpose.msra.mxu0 0
        %3009 = vmatprep.subr.bf16.mxu0 0
        %3010 = vmatpush1.bf16.xpose.msra.mxu0 0
        %3011 = vmatprep.subr.bf16.mxu0 0
        %3012 = vmatpush1.bf16.xpose.msra.mxu0 0
        %3013 = vmatprep.subr.bf16.mxu0 0
        %3014 = vmatpush1.bf16.xpose.msra.mxu0 0
        %3015 = vmatprep.mubr.bf16.mxu0 0
        %3016 = vmatmul.mubr.bf16.gmra.mrb[0].mxu0 %v2978
        %v3017 = vpop.f32.mrb[0].mxu0
        %v3018 = vadd.f32 0.0, %v3017
        %v3019 = vpop.f32.mrb[0].mxu0
        %v3020 = vpop.f32.mrb[0].mxu0
        %v3021 = vpop.f32.mrb[0].mxu0
        %3022 = vdwg.mxu0
        %v3023 = vpack.i.b16 %v641, %v640
        %v3024 = vpack.i.b16 %v643, %v642
        %v3026 = vcombine.low %v3023, %v3024
        %v3028 = vunpack.c.l.s4 1966171168
        %v3029 = vunpack.c.0.s8 %v3028
        %v3030 = vlaneseq
        %v3031 = vshrl.u32 %v3030, 7
        %v3032 = vsub.s32 %v3029, %v3031
        %v3033 = vrot.slane %v3026, %v3032
        %v3035 = vunpack.c.l.s4 1966171168
        %v3036 = vunpack.c.0.s8 %v3035
        %v3037 = vlaneseq
        %v3038 = vshrl.u32 %v3037, 7
        %v3039 = vsub.s32 %v3036, %v3038
        %v3040 = vrot.slane %v644, %v3039
        %v3041 = vcombine.low %v3033, %v3040
        %v3043 = vunpack.c.l.s4 1966171168
        %v3044 = vunpack.c.0.s8 %v3043
        %v3045 = vlaneseq
        %v3046 = vshrl.u32 %v3045, 7
        %v3047 = vsub.s32 %v3044, %v3046
        %v3048 = vrot.slane %v3041, %v3047
        %v3050 = vsel %vm683, %v2155, 0
        %v3053 = vsel %vm683, %v3048, 0
        %3055 = vmatprep.subr.bf16.mxu0 0
        %3056 = vmatpush1.bf16.xpose.msra.mxu0 %v3053
        %3057 = vmatprep.subr.bf16.mxu0 0
        %3058 = vmatpush1.bf16.xpose.msra.mxu0 0
        %3059 = vmatprep.subr.bf16.mxu0 0
        %3060 = vmatpush1.bf16.xpose.msra.mxu0 0
        %3061 = vmatprep.subr.bf16.mxu0 0
        %3062 = vmatpush1.bf16.xpose.msra.mxu0 0
        %3063 = vmatprep.subr.bf16.mxu0 0
        %3064 = vmatpush1.bf16.xpose.msra.mxu0 0
        %3065 = vmatprep.subr.bf16.mxu0 0
        %3066 = vmatpush1.bf16.xpose.msra.mxu0 0
        %3067 = vmatprep.subr.bf16.mxu0 0
        %3068 = vmatpush1.bf16.xpose.msra.mxu0 0
        %3069 = vmatprep.subr.bf16.mxu0 0
        %3070 = vmatpush1.bf16.xpose.msra.mxu0 0
        %3071 = vmatprep.subr.bf16.mxu0 0
        %3072 = vmatpush1.bf16.xpose.msra.mxu0 0
        %3073 = vmatprep.subr.bf16.mxu0 0
        %3074 = vmatpush1.bf16.xpose.msra.mxu0 0
        %3075 = vmatprep.subr.bf16.mxu0 0
        %3076 = vmatpush1.bf16.xpose.msra.mxu0 0
        %3077 = vmatprep.subr.bf16.mxu0 0
        %3078 = vmatpush1.bf16.xpose.msra.mxu0 0
        %3079 = vmatprep.subr.bf16.mxu0 0
        %3080 = vmatpush1.bf16.xpose.msra.mxu0 0
        %3081 = vmatprep.subr.bf16.mxu0 0
        %3082 = vmatpush1.bf16.xpose.msra.mxu0 0
        %3083 = vmatprep.subr.bf16.mxu0 0
        %3084 = vmatpush1.bf16.xpose.msra.mxu0 0
        %3085 = vmatprep.subr.bf16.mxu0 0
        %3086 = vmatpush1.bf16.xpose.msra.mxu0 0
        %3087 = vmatprep.mubr.bf16.mxu0 0
        %3088 = vmatmul.mubr.bf16.gmra.mrb[0].mxu0 %v3050
        %v3089 = vpop.f32.mrb[0].mxu0
        %v3090 = vadd.f32 0.0, %v3089
        %v3091 = vpop.f32.mrb[0].mxu0
        %v3092 = vpop.f32.mrb[0].mxu0
        %v3093 = vpop.f32.mrb[0].mxu0
        %3094 = vdwg.mxu0
        %v3095 = vpack.i.b16 %v646, %v645
        %v3096 = vpack.i.b16 %v648, %v647
        %v3098 = vcombine.low %v3095, %v3096
        %v3100 = vunpack.c.l.s4 1966171168
        %v3101 = vunpack.c.0.s8 %v3100
        %v3102 = vlaneseq
        %v3103 = vshrl.u32 %v3102, 7
        %v3104 = vsub.s32 %v3101, %v3103
        %v3105 = vrot.slane %v3098, %v3104
        %v3107 = vunpack.c.l.s4 1966171168
        %v3108 = vunpack.c.0.s8 %v3107
        %v3109 = vlaneseq
        %v3110 = vshrl.u32 %v3109, 7
        %v3111 = vsub.s32 %v3108, %v3110
        %v3112 = vrot.slane %v649, %v3111
        %v3113 = vcombine.low %v3105, %v3112
        %v3115 = vunpack.c.l.s4 1966171168
        %v3116 = vunpack.c.0.s8 %v3115
        %v3117 = vlaneseq
        %v3118 = vshrl.u32 %v3117, 7
        %v3119 = vsub.s32 %v3116, %v3118
        %v3120 = vrot.slane %v3113, %v3119
        %v3122 = vsel %vm683, %v2156, 0
        %v3125 = vsel %vm683, %v3120, 0
        %3127 = vmatprep.subr.bf16.mxu0 0
        %3128 = vmatpush1.bf16.xpose.msra.mxu0 %v3125
        %3129 = vmatprep.subr.bf16.mxu0 0
        %3130 = vmatpush1.bf16.xpose.msra.mxu0 0
        %3131 = vmatprep.subr.bf16.mxu0 0
        %3132 = vmatpush1.bf16.xpose.msra.mxu0 0
        %3133 = vmatprep.subr.bf16.mxu0 0
        %3134 = vmatpush1.bf16.xpose.msra.mxu0 0
        %3135 = vmatprep.subr.bf16.mxu0 0
        %3136 = vmatpush1.bf16.xpose.msra.mxu0 0
        %3137 = vmatprep.subr.bf16.mxu0 0
        %3138 = vmatpush1.bf16.xpose.msra.mxu0 0
        %3139 = vmatprep.subr.bf16.mxu0 0
        %3140 = vmatpush1.bf16.xpose.msra.mxu0 0
        %3141 = vmatprep.subr.bf16.mxu0 0
        %3142 = vmatpush1.bf16.xpose.msra.mxu0 0
        %3143 = vmatprep.subr.bf16.mxu0 0
        %3144 = vmatpush1.bf16.xpose.msra.mxu0 0
        %3145 = vmatprep.subr.bf16.mxu0 0
        %3146 = vmatpush1.bf16.xpose.msra.mxu0 0
        %3147 = vmatprep.subr.bf16.mxu0 0
        %3148 = vmatpush1.bf16.xpose.msra.mxu0 0
        %3149 = vmatprep.subr.bf16.mxu0 0
        %3150 = vmatpush1.bf16.xpose.msra.mxu0 0
        %3151 = vmatprep.subr.bf16.mxu0 0
        %3152 = vmatpush1.bf16.xpose.msra.mxu0 0
        %3153 = vmatprep.subr.bf16.mxu0 0
        %3154 = vmatpush1.bf16.xpose.msra.mxu0 0
        %3155 = vmatprep.subr.bf16.mxu0 0
        %3156 = vmatpush1.bf16.xpose.msra.mxu0 0
        %3157 = vmatprep.subr.bf16.mxu0 0
        %3158 = vmatpush1.bf16.xpose.msra.mxu0 0
        %3159 = vmatprep.mubr.bf16.mxu0 0
        %3160 = vmatmul.mubr.bf16.gmra.mrb[0].mxu0 %v3122
        %v3161 = vpop.f32.mrb[0].mxu0
        %v3162 = vadd.f32 0.0, %v3161
        %v3163 = vpop.f32.mrb[0].mxu0
        %v3164 = vpop.f32.mrb[0].mxu0
        %v3165 = vpop.f32.mrb[0].mxu0
        %3166 = vdwg.mxu0
        %v3167 = vpack.i.b16 %v651, %v650
        %v3168 = vpack.i.b16 %v653, %v652
        %v3170 = vcombine.low %v3167, %v3168
        %v3172 = vunpack.c.l.s4 1966171168
        %v3173 = vunpack.c.0.s8 %v3172
        %v3174 = vlaneseq
        %v3175 = vshrl.u32 %v3174, 7
        %v3176 = vsub.s32 %v3173, %v3175
        %v3177 = vrot.slane %v3170, %v3176
        %v3179 = vunpack.c.l.s4 1966171168
        %v3180 = vunpack.c.0.s8 %v3179
        %v3181 = vlaneseq
        %v3182 = vshrl.u32 %v3181, 7
        %v3183 = vsub.s32 %v3180, %v3182
        %v3184 = vrot.slane %v654, %v3183
        %v3185 = vcombine.low %v3177, %v3184
        %v3187 = vunpack.c.l.s4 1966171168
        %v3188 = vunpack.c.0.s8 %v3187
        %v3189 = vlaneseq
        %v3190 = vshrl.u32 %v3189, 7
        %v3191 = vsub.s32 %v3188, %v3190
        %v3192 = vrot.slane %v3185, %v3191
        %v3194 = vsel %vm683, %v2157, 0
        %v3197 = vsel %vm683, %v3192, 0
        %3199 = vmatprep.subr.bf16.mxu0 0
        %3200 = vmatpush1.bf16.xpose.msra.mxu0 %v3197
        %3201 = vmatprep.subr.bf16.mxu0 0
        %3202 = vmatpush1.bf16.xpose.msra.mxu0 0
        %3203 = vmatprep.subr.bf16.mxu0 0
        %3204 = vmatpush1.bf16.xpose.msra.mxu0 0
        %3205 = vmatprep.subr.bf16.mxu0 0
        %3206 = vmatpush1.bf16.xpose.msra.mxu0 0
        %3207 = vmatprep.subr.bf16.mxu0 0
        %3208 = vmatpush1.bf16.xpose.msra.mxu0 0
        %3209 = vmatprep.subr.bf16.mxu0 0
        %3210 = vmatpush1.bf16.xpose.msra.mxu0 0
        %3211 = vmatprep.subr.bf16.mxu0 0
        %3212 = vmatpush1.bf16.xpose.msra.mxu0 0
        %3213 = vmatprep.subr.bf16.mxu0 0
        %3214 = vmatpush1.bf16.xpose.msra.mxu0 0
        %3215 = vmatprep.subr.bf16.mxu0 0
        %3216 = vmatpush1.bf16.xpose.msra.mxu0 0
        %3217 = vmatprep.subr.bf16.mxu0 0
        %3218 = vmatpush1.bf16.xpose.msra.mxu0 0
        %3219 = vmatprep.subr.bf16.mxu0 0
        %3220 = vmatpush1.bf16.xpose.msra.mxu0 0
        %3221 = vmatprep.subr.bf16.mxu0 0
        %3222 = vmatpush1.bf16.xpose.msra.mxu0 0
        %3223 = vmatprep.subr.bf16.mxu0 0
        %3224 = vmatpush1.bf16.xpose.msra.mxu0 0
        %3225 = vmatprep.subr.bf16.mxu0 0
        %3226 = vmatpush1.bf16.xpose.msra.mxu0 0
        %3227 = vmatprep.subr.bf16.mxu0 0
        %3228 = vmatpush1.bf16.xpose.msra.mxu0 0
        %3229 = vmatprep.subr.bf16.mxu0 0
        %3230 = vmatpush1.bf16.xpose.msra.mxu0 0
        %3231 = vmatprep.mubr.bf16.mxu0 0
        %3232 = vmatmul.mubr.bf16.gmra.mrb[0].mxu0 %v3194
        %v3233 = vpop.f32.mrb[0].mxu0
        %v3234 = vadd.f32 0.0, %v3233
        %v3235 = vpop.f32.mrb[0].mxu0
        %v3236 = vpop.f32.mrb[0].mxu0
        %v3237 = vpop.f32.mrb[0].mxu0
        %3238 = vdwg.mxu0
        %v3239 = vpack.i.b16 %v656, %v655
        %v3240 = vpack.i.b16 %v658, %v657
        %v3242 = vcombine.low %v3239, %v3240
        %v3244 = vunpack.c.l.s4 1966171168
        %v3245 = vunpack.c.0.s8 %v3244
        %v3246 = vlaneseq
        %v3247 = vshrl.u32 %v3246, 7
        %v3248 = vsub.s32 %v3245, %v3247
        %v3249 = vrot.slane %v3242, %v3248
        %v3251 = vunpack.c.l.s4 1966171168
        %v3252 = vunpack.c.0.s8 %v3251
        %v3253 = vlaneseq
        %v3254 = vshrl.u32 %v3253, 7
        %v3255 = vsub.s32 %v3252, %v3254
        %v3256 = vrot.slane %v659, %v3255
        %v3257 = vcombine.low %v3249, %v3256
        %v3259 = vunpack.c.l.s4 1966171168
        %v3260 = vunpack.c.0.s8 %v3259
        %v3261 = vlaneseq
        %v3262 = vshrl.u32 %v3261, 7
        %v3263 = vsub.s32 %v3260, %v3262
        %v3264 = vrot.slane %v3257, %v3263
        %v3266 = vsel %vm683, %v2158, 0
        %v3269 = vsel %vm683, %v3264, 0
        %3271 = vmatprep.subr.bf16.mxu0 0
        %3272 = vmatpush1.bf16.xpose.msra.mxu0 %v3269
        %3273 = vmatprep.subr.bf16.mxu0 0
        %3274 = vmatpush1.bf16.xpose.msra.mxu0 0
        %3275 = vmatprep.subr.bf16.mxu0 0
        %3276 = vmatpush1.bf16.xpose.msra.mxu0 0
        %3277 = vmatprep.subr.bf16.mxu0 0
        %3278 = vmatpush1.bf16.xpose.msra.mxu0 0
        %3279 = vmatprep.subr.bf16.mxu0 0
        %3280 = vmatpush1.bf16.xpose.msra.mxu0 0
        %3281 = vmatprep.subr.bf16.mxu0 0
        %3282 = vmatpush1.bf16.xpose.msra.mxu0 0
        %3283 = vmatprep.subr.bf16.mxu0 0
        %3284 = vmatpush1.bf16.xpose.msra.mxu0 0
        %3285 = vmatprep.subr.bf16.mxu0 0
        %3286 = vmatpush1.bf16.xpose.msra.mxu0 0
        %3287 = vmatprep.subr.bf16.mxu0 0
        %3288 = vmatpush1.bf16.xpose.msra.mxu0 0
        %3289 = vmatprep.subr.bf16.mxu0 0
        %3290 = vmatpush1.bf16.xpose.msra.mxu0 0
        %3291 = vmatprep.subr.bf16.mxu0 0
        %3292 = vmatpush1.bf16.xpose.msra.mxu0 0
        %3293 = vmatprep.subr.bf16.mxu0 0
        %3294 = vmatpush1.bf16.xpose.msra.mxu0 0
        %3295 = vmatprep.subr.bf16.mxu0 0
        %3296 = vmatpush1.bf16.xpose.msra.mxu0 0
        %3297 = vmatprep.subr.bf16.mxu0 0
        %3298 = vmatpush1.bf16.xpose.msra.mxu0 0
        %3299 = vmatprep.subr.bf16.mxu0 0
        %3300 = vmatpush1.bf16.xpose.msra.mxu0 0
        %3301 = vmatprep.subr.bf16.mxu0 0
        %3302 = vmatpush1.bf16.xpose.msra.mxu0 0
        %3303 = vmatprep.mubr.bf16.mxu0 0
        %3304 = vmatmul.mubr.bf16.gmra.mrb[0].mxu0 %v3266
        %v3305 = vpop.f32.mrb[0].mxu0
        %v3306 = vadd.f32 0.0, %v3305
        %v3307 = vpop.f32.mrb[0].mxu0
        %v3308 = vpop.f32.mrb[0].mxu0
        %v3309 = vpop.f32.mrb[0].mxu0
        %3310 = vdwg.mxu0
        %v3327 = vrot.slane %v2298, 7
        %v3328 = vsel %vm1257, %v3327, %v2226
        %v3329 = vrot.slane %v2370, 6
        %v3330 = vsel %vm1259, %v3329, %v3328
        %v3331 = vrot.slane %v2442, 5
        %v3332 = vsel %vm1261, %v3331, %v3330
        %v3333 = vrot.slane %v2514, 4
        %v3334 = vsel %vm1263, %v3333, %v3332
        %v3335 = vrot.slane %v2586, 3
        %v3336 = vsel %vm1265, %v3335, %v3334
        %v3337 = vrot.slane %v2658, 2
        %v3338 = vsel %vm1267, %v3337, %v3336
        %v3339 = vrot.slane %v2730, 1
        %v3340 = vsel %vm1269, %v3339, %v3338
        %v3341 = vrot.slane %v2874, 7
        %v3342 = vsel %vm1257, %v3341, %v2802
        %v3343 = vrot.slane %v2946, 6
        %v3344 = vsel %vm1259, %v3343, %v3342
        %v3345 = vrot.slane %v3018, 5
        %v3346 = vsel %vm1261, %v3345, %v3344
        %v3347 = vrot.slane %v3090, 4
        %v3348 = vsel %vm1263, %v3347, %v3346
        %v3349 = vrot.slane %v3162, 3
        %v3350 = vsel %vm1265, %v3349, %v3348
        %v3351 = vrot.slane %v3234, 2
        %v3352 = vsel %vm1267, %v3351, %v3350
        %v3353 = vrot.slane %v3306, 1
        %v3354 = vsel %vm1269, %v3353, %v3352
        %vm3357 = vcmask 39936
        %v3358 = vsel %vm3357, %v3340, -inf
        %3359 = vmax.xlane.f32.xlu0 %v3358
        %v3360 = vpop.xlane.xlu0 %3359
        %v3361 = vsel %vm3357, %v3354, -inf
        %3362 = vmax.xlane.f32.xlu0 %v3361
        %v3363 = vpop.xlane.xlu0 %3362
        %v3366 = vrot.slane %v3360, 1
        %v3367 = vrot.slane %v3360, 2
        %v3368 = vrot.slane %v3360, 3
        %v3369 = vrot.slane %v3360, 4
        %v3370 = vrot.slane %v3360, 5
        %v3371 = vrot.slane %v3360, 6
        %v3372 = vrot.slane %v3360, 7
        %v3373 = vrot.slane %v3363, 1
        %v3374 = vrot.slane %v3363, 2
        %v3375 = vrot.slane %v3363, 3
        %v3376 = vrot.slane %v3363, 4
        %v3377 = vrot.slane %v3363, 5
        %v3378 = vrot.slane %v3363, 6
        %v3379 = vrot.slane %v3363, 7
        %v3396 = vsub.f32 %v2226, %v3360
        %v3397 = vsub.f32 %v2298, %v3366
        %v3398 = vsub.f32 %v2370, %v3367
        %v3399 = vsub.f32 %v2442, %v3368
        %v3400 = vsub.f32 %v2514, %v3369
        %v3401 = vsub.f32 %v2586, %v3370
        %v3402 = vsub.f32 %v2658, %v3371
        %v3403 = vsub.f32 %v2730, %v3372
        %v3404 = vsub.f32 %v2802, %v3363
        %v3405 = vsub.f32 %v2874, %v3373
        %v3406 = vsub.f32 %v2946, %v3374
        %v3407 = vsub.f32 %v3018, %v3375
        %v3408 = vsub.f32 %v3090, %v3376
        %v3409 = vsub.f32 %v3162, %v3377
        %v3410 = vsub.f32 %v3234, %v3378
        %v3411 = vsub.f32 %v3306, %v3379
        %v3412 = vmul.f32 %v3396, 1.442695
        %v3413 = vpow.pop %v3412
        %v3414 = vmul.f32 %v3397, 1.442695
        %v3415 = vpow.pop %v3414
        %v3416 = vmul.f32 %v3398, 1.442695
        %v3417 = vpow.pop %v3416
        %v3418 = vmul.f32 %v3399, 1.442695
        %v3419 = vpow.pop %v3418
        %v3420 = vmul.f32 %v3400, 1.442695
        %v3421 = vpow.pop %v3420
        %v3422 = vmul.f32 %v3401, 1.442695
        %v3423 = vpow.pop %v3422
        %v3424 = vmul.f32 %v3402, 1.442695
        %v3425 = vpow.pop %v3424
        %v3426 = vmul.f32 %v3403, 1.442695
        %v3427 = vpow.pop %v3426
        %v3428 = vmul.f32 %v3404, 1.442695
        %v3429 = vpow.pop %v3428
        %v3430 = vmul.f32 %v3405, 1.442695
        %v3431 = vpow.pop %v3430
        %v3432 = vmul.f32 %v3406, 1.442695
        %v3433 = vpow.pop %v3432
        %v3434 = vmul.f32 %v3407, 1.442695
        %v3435 = vpow.pop %v3434
        %v3436 = vmul.f32 %v3408, 1.442695
        %v3437 = vpow.pop %v3436
        %v3438 = vmul.f32 %v3409, 1.442695
        %v3439 = vpow.pop %v3438
        %v3440 = vmul.f32 %v3410, 1.442695
        %v3441 = vpow.pop %v3440
        %v3442 = vmul.f32 %v3411, 1.442695
        %v3443 = vpow.pop %v3442
        %v3460 = vrot.slane %v3415, 7
        %v3461 = vsel %vm1257, %v3460, %v3413
        %v3462 = vrot.slane %v3417, 6
        %v3463 = vsel %vm1259, %v3462, %v3461
        %v3464 = vrot.slane %v3419, 5
        %v3465 = vsel %vm1261, %v3464, %v3463
        %v3466 = vrot.slane %v3421, 4
        %v3467 = vsel %vm1263, %v3466, %v3465
        %v3468 = vrot.slane %v3423, 3
        %v3469 = vsel %vm1265, %v3468, %v3467
        %v3470 = vrot.slane %v3425, 2
        %v3471 = vsel %vm1267, %v3470, %v3469
        %v3472 = vrot.slane %v3427, 1
        %v3473 = vsel %vm1269, %v3472, %v3471
        %v3474 = vrot.slane %v3431, 7
        %v3475 = vsel %vm1257, %v3474, %v3429
        %v3476 = vrot.slane %v3433, 6
        %v3477 = vsel %vm1259, %v3476, %v3475
        %v3478 = vrot.slane %v3435, 5
        %v3479 = vsel %vm1261, %v3478, %v3477
        %v3480 = vrot.slane %v3437, 4
        %v3481 = vsel %vm1263, %v3480, %v3479
        %v3482 = vrot.slane %v3439, 3
        %v3483 = vsel %vm1265, %v3482, %v3481
        %v3484 = vrot.slane %v3441, 2
        %v3485 = vsel %vm1267, %v3484, %v3483
        %v3486 = vrot.slane %v3443, 1
        %v3487 = vsel %vm1269, %v3486, %v3485
        %v3490 = vsel %vm3357, %v3473, 0.0
        %3491 = vadd.xlane.f32.xlu0 %v3490
        %v3492 = vpop.xlane.xlu0 %3491
        %v3493 = vsel %vm3357, %v3487, 0.0
        %3494 = vadd.xlane.f32.xlu0 %v3493
        %v3495 = vpop.xlane.xlu0 %3494
        %v3496 = vlog2.pop %v3492
        %v3497 = vmul.f32 %v3496, 0.6931472
        %v3498 = vlog2.pop %v3495
        %v3499 = vmul.f32 %v3498, 0.6931472
        %v3500 = vadd.f32 %v3497, %v3360
        %v3501 = vadd.f32 %v3499, %v3363
        %v3502 = vsub.f32 %v3500, %v3340
        %v3503 = vsub.f32 %v3501, %v3354
        %3504 = vst [vmem:[%s230] sm:$0xff] 0.0
        %3505 = vst [vmem:[%s230 + $0x8] sm:$0xff] 0.0
        %3506 = vst.msk [vmem:[%s230] sm:$0xff] %vm3357, %v3340
        %3507 = vst.msk [vmem:[%s230 + $0x8] sm:$0xff] %vm3357, %v3354
        %3510 = vrot.lane.b32.xlu0 %v3502, 5
        %v3511 = vpop.permute.xlu0 %3510
        %3512 = vrot.lane.b32.xlu0 %v3503, 5
        %v3513 = vpop.permute.xlu0 %3512
        %vm3516 = vcmask 48168
        %3517 = vst.msk [vmem:[%s230] sm:$0xff] %vm3516, %v3511
        %3518 = vst.msk [vmem:[%s230 + $0x8] sm:$0xff] %vm3516, %v3513
        %s3519 = sand.u32 %s149, 1
        %s3520 = scalar_lea.sflag [#allocation8], %s3519
        %s3521 = sand.u32 %s149, 1
        %s3522 = smul.addr %s3521, 16
        %s3523 = scalar_lea.vmem [#allocation7], %s3522
        // Predicated region
        $region55: #{tpu_custom_call.1} parent=39 // pred_check
          %p3524 = pneg %p159
        $region56: #{tpu_custom_call.1} parent=39 // pred_check_branch
          %3526 = sbr.rel (%p3524) target = $region58
        $region57: #{tpu_custom_call.1} parent=39 // pred_region
          %s3527 = smul.u32 2, %s31
          %s3529 = ssub.s32 256, 256
          %3530 = vsyncadd %s3520, %s3529
          %s3531 = smul.addr %s3527, 128
          %s3532 = scalar_lea.hbm %s7, %s3531
          %s3533 = sshll.u32 %s3523, 4
          %s3534 = int_to_ptr.vmem [resolvable:$true] %s3533
          %3539 = dma.vmem_to_hbm [thread:$0]  %s3534, 256, %s3532, %s3520, 128, 128, 8
        $region58: #{tpu_custom_call.1} parent=39 // pred_fallthru
          _
      $region40: #{tpu_custom_call.1} parent=5 // pred_fallthru
        _
      %p3540 = scmp.le.s32.totalorder 2, %s26
      // Predicated region
      $region59: #{tpu_custom_call.1} parent=5 // pred_check
        %p3541 = pneg %p3540
      $region60: #{tpu_custom_call.1} parent=5 // pred_check_branch
        %3543 = sbr.rel (%p3541) target = $region62
      $region61: #{tpu_custom_call.1} parent=5 // pred_region
        %s3544 = ssub.s32 %s26, 2
        // Predicated region
        $region63: #{tpu_custom_call.1} parent=61 // pred_check
          %p3545 = pneg %p165
        $region64: #{tpu_custom_call.1} parent=61 // pred_check_branch
          %3547 = sbr.rel (%p3545) target = $region66
        $region65: #{tpu_custom_call.1} parent=61 // pred_region
          %s3548 = sand.u32 %s150, 1
          %s3549 = scalar_lea.sflag [#allocation8], %s3548
          %s3550 = sand.u32 %s150, 1
          %s3551 = smul.addr %s3550, 16
          %s3552 = scalar_lea.vmem [#allocation7], %s3551
          %3553 = dma.done %s3549, 256
        $region66: #{tpu_custom_call.1} parent=61 // pred_fallthru
          _
      $region62: #{tpu_custom_call.1} parent=5 // pred_fallthru
        _
    $region6: #{tpu_custom_call.1} parent=1 // loop_footer
      %s30 = sadd.s32 1, %s26
    $region7: #{tpu_custom_call.1} parent=1 // loop_footer_branch
      %25 = sbr.rel target = $region3
    $region8: #{tpu_custom_call.1} parent=1 // loop_exit
      _
    %3554 = vsyncpa [#allocation8], 1
    %s3555 = scalar_lea.sflag [#allocation8], 1
    %3556 = vsyncpa %s3555, 1

</llo_original>
